<compile_context>
chip_gen: v6e
topology: v6e:2x2x1
jax: 0.10.0
libtpu: 0.0.40
codegen_flags: <defaults>
</compile_context>

<pallas_src>
import functools

import jax
import jax.numpy as jnp
from jax.experimental import pallas as pl
from jax.experimental.pallas import tpu as pltpu

BN_EPS = 1e-5
LANE = 128
VMEM_LIMIT = 32 * 1024 * 1024   # explicit; size per-generation at real scale


# ---------------------- kernel 1: conv + BN batch stats --------------------- #

def _conv_stats_kernel(x_ref, w_ref, conv_ref, stats_ref, xpad_ref, col_ref):
    # x_ref    : (1, H, W, Cin)   f32   one image of the batch (grid over N)
    # w_ref    : (9*Cin, Cp)      bf16  3x3 taps flattened on K, Cout lane-padded
    # conv_ref : (H*W, Cp)        f32   conv rows for this image (lane-dense)
    # stats_ref: (2, Cp)          f32   [sum; sum_of_squares] resident accumulator
    # xpad_ref : (H+2, W+2, Cin)  f32   scratch: zero-padded image (halo-only zeroing)
    # col_ref  : (H*W, 9*Cin)     bf16  scratch: im2col patches (bf16 MXU operand)
    _, H, W, Cin = x_ref.shape
    HW = H * W
    n = pl.program_id(0)

    @pl.when(n == 0)
    def _init():
        # Zero the stats accumulator and ONLY the halo strips of the padded
        # image.  Scratch persists across grid steps, so the halo stays zero.
        stats_ref[...] = jnp.zeros_like(stats_ref)
        zrow = jnp.zeros((1, W + 2, Cin), xpad_ref.dtype)
        zcol = jnp.zeros((H + 2, 1, Cin), xpad_ref.dtype)
        xpad_ref[0:1, :, :] = zrow
        xpad_ref[H + 1:H + 2, :, :] = zrow
        xpad_ref[:, 0:1, :] = zcol
        xpad_ref[:, W + 1:W + 2, :] = zcol

    # Interior written exactly once per image.
    xpad_ref[1:H + 1, 1:W + 1, :] = x_ref[0]
    xp = xpad_ref[...]

    # im2col slab, K ordered (tap, cin), stored as bf16 for the MXU.
    for dy in range(3):
        for dx in range(3):
            t = dy * 3 + dx
            col_ref[:, t * Cin:(t + 1) * Cin] = (
                xp[dy:dy + H, dx:dx + W, :].reshape(HW, Cin)
                .astype(jnp.bfloat16))

    # ONE MXU matmul: bf16 operands, f32 accumulation.  The conv bias is
    # deliberately omitted: training-mode BN subtracts the batch mean, so the
    # bias cancels exactly in the forward output.
    acc = jnp.dot(col_ref[...], w_ref[...], preferred_element_type=jnp.float32)

    conv_ref[...] = acc

    # Phase-1 BN statistics: per-tile per-channel sum and sum of squares
    # (no full-problem acc*acc tensor is ever materialized).
    s1 = jnp.sum(acc, axis=0, keepdims=True)
    s2 = jnp.sum(acc * acc, axis=0, keepdims=True)
    stats_ref[0:1, :] += s1
    stats_ref[1:2, :] += s2


# ------------------- kernel 2: BN normalize + affine + ReLU ----------------- #

def _bn_relu_kernel(conv_ref, stats_ref, g_ref, beta_ref, o_ref, *, m_total):
    # conv_ref : (TM, Cp) f32, stats_ref : (2, Cp) f32, g/beta : (1, Cp) f32
    inv_m = 1.0 / m_total
    mean = stats_ref[0:1, :] * inv_m
    ex2 = stats_ref[1:2, :] * inv_m
    var = jnp.maximum(ex2 - mean * mean, 0.0)
    scale = g_ref[...] * jax.lax.rsqrt(var + BN_EPS)
    shift = beta_ref[...] - mean * scale
    o_ref[...] = jnp.maximum(conv_ref[...] * scale + shift, 0.0)


# ----------------------------------- wrapper -------------------------------- #

def single_conv_forward(x_nchw, params, *, ch_out):
    """Matches single_conv.forward: ReLU(BN(Conv2d_3x3(x))). NCHW in / out."""
    x = jnp.transpose(x_nchw, (0, 2, 3, 1)).astype(jnp.float32)   # NCHW -> NHWC
    N, H, W, Cin = x.shape
    w = params["w"]                      # (9*Cin, Cp) bf16, Cout lane-padded
    Cp = w.shape[-1]
    HW = H * W
    M = N * HW

    # Phase 1: conv + batch statistics (reduction over N -> "arbitrary").
    conv_flat, stats = pl.pallas_call(
        _conv_stats_kernel,
        out_shape=(jax.ShapeDtypeStruct((M, Cp), jnp.float32),
                   jax.ShapeDtypeStruct((2, Cp), jnp.float32)),
        grid=(N,),
        in_specs=[pl.BlockSpec((1, H, W, Cin), lambda n: (n, 0, 0, 0)),
                  pl.BlockSpec((9 * Cin, Cp), lambda n: (0, 0))],
        out_specs=(pl.BlockSpec((HW, Cp), lambda n: (n, 0)),
                   pl.BlockSpec((2, Cp), lambda n: (0, 0))),
        scratch_shapes=[pltpu.VMEM((H + 2, W + 2, Cin), jnp.float32),
                        pltpu.VMEM((HW, 9 * Cin), jnp.bfloat16)],
        compiler_params=pltpu.CompilerParams(
            dimension_semantics=("arbitrary",),
            vmem_limit_bytes=VMEM_LIMIT),
    )(x, w)

    # Phase 2: normalize + affine + ReLU, tiled over M, fully parallel.
    TM = 256 if M % 256 == 0 else HW
    assert M % TM == 0 and TM % 8 == 0, (M, TM)
    out_flat = pl.pallas_call(
        functools.partial(_bn_relu_kernel, m_total=float(M)),
        out_shape=jax.ShapeDtypeStruct((M, Cp), jnp.float32),
        grid=(M // TM,),
        in_specs=[pl.BlockSpec((TM, Cp), lambda i: (i, 0)),
                  pl.BlockSpec((2, Cp), lambda i: (0, 0)),
                  pl.BlockSpec((1, Cp), lambda i: (0, 0)),
                  pl.BlockSpec((1, Cp), lambda i: (0, 0))],
        out_specs=pl.BlockSpec((TM, Cp), lambda i: (i, 0)),
        compiler_params=pltpu.CompilerParams(
            dimension_semantics=("parallel",),       # megacore split on v7x
            vmem_limit_bytes=VMEM_LIMIT),
    )(conv_flat, stats, params["gamma"], params["beta"])

    out = out_flat.reshape(N, H, W, Cp)[..., :ch_out]   # crop lane padding
    return jnp.transpose(out, (0, 3, 1, 2))             # NHWC -> NCHW


# --------------------------- pure-JAX reference ----------------------------- #

def reference_forward(x_nchw, params, ch_out):
    x = jnp.transpose(x_nchw, (0, 2, 3, 1)).astype(jnp.float32)   # NHWC
    cin = x.shape[-1]
    w = params["w"].astype(jnp.float32)[:, :ch_out].reshape(3, 3, cin, ch_out)
    gamma = params["gamma"][0, :ch_out]
    beta = params["beta"][0, :ch_out]

    xq = x.astype(jnp.bfloat16).astype(jnp.float32)     # bf16 MXU operands
    y = jax.lax.conv_general_dilated(
        xq, w, window_strides=(1, 1), padding="SAME",
        dimension_numbers=("NHWC", "HWIO", "NHWC"),
        precision=jax.lax.Precision.HIGHEST) + params["b"][:ch_out]
    mean = jnp.mean(y, axis=(0, 1, 2), keepdims=True)
    var = jnp.mean((y - mean) ** 2, axis=(0, 1, 2), keepdims=True)
    y = (y - mean) * jax.lax.rsqrt(var + BN_EPS) * gamma + beta
    return jnp.transpose(jnp.maximum(y, 0.0), (0, 3, 1, 2))       # NCHW


# ----------------------------- parameter init ------------------------------- #

def init_params(key, ch_in, ch_out):
    """Conv2d-style init; Cout zero-padded to a multiple of 128 lanes (pad
    channels: weight 0, gamma 1, beta 0 -> they normalize to 0 and are cropped).
    The conv bias only feeds the reference: it cancels under training-mode BN."""
    cp = ((ch_out + LANE - 1) // LANE) * LANE
    fan_in = 9 * ch_in
    bound = 1.0 / (fan_in ** 0.5)
    k_w, k_b = jax.random.split(key)
    w = jax.random.uniform(k_w, (9 * ch_in, ch_out), jnp.float32, -bound, bound)
    b = jax.random.uniform(k_b, (ch_out,), jnp.float32, -bound, bound)

    w_p = jnp.zeros((9 * ch_in, cp), jnp.float32).at[:, :ch_out].set(w)
    return {
        "w": w_p.astype(jnp.bfloat16),               # bf16 MXU operand
        "b": b,                                      # reference-only (cancels)
        "gamma": jnp.ones((1, cp), jnp.float32),
        "beta": jnp.zeros((1, cp), jnp.float32),
    }


# ----------------------------------- main ----------------------------------- #

if __name__ == "__main__":
    key = jax.random.PRNGKey(0)
    pkey, xkey = jax.random.split(key)

    N, ch_in, ch_out, H, W = 2, 4, 8, 16, 16
    params = init_params(pkey, ch_in, ch_out)
    x = jax.random.normal(xkey, (N, ch_in, H, W), jnp.float32)   # NCHW like PyTorch

    fwd = jax.jit(functools.partial(single_conv_forward, ch_out=ch_out))
    out = jax.block_until_ready(fwd(x, params))

    assert out.shape == (N, ch_out, H, W), out.shape
    ref = reference_forward(x, params, ch_out)
    max_err = float(jnp.max(jnp.abs(out - ref)))
    assert jnp.allclose(out, ref, atol=1e-3, rtol=1e-3), f"max_err={max_err}"

    print("KERNEL_OK")
</pallas_src>

<mosaic_0001>
module attributes {stable_mosaic.version = 11 : i64} {
  func.func @_conv_stats_kernel(%arg0: i32, %arg1: memref<1x16x16x4xf32, #tpu.memory_space<vmem>>, %arg2: memref<36x128xbf16, #tpu.memory_space<vmem>>, %arg3: memref<256x128xf32, #tpu.memory_space<vmem>>, %arg4: memref<2x128xf32, #tpu.memory_space<vmem>>, %arg5: memref<18x18x4xf32, #tpu.memory_space<vmem>>, %arg6: memref<256x36xbf16, #tpu.memory_space<vmem>>) attributes {dimension_semantics = [#tpu.dimension_semantics<arbitrary>], iteration_bounds = array<i64: 2>, scalar_prefetch = 0 : i64, scratch_operands = 2 : i64, tpu.core_type = #tpu.core_type<tc>, window_params = [{transform_indices = @transform_0, window_bounds = array<i64: 1, 16, 16, 4>}, {pipeline_mode = #tpu.pipeline_mode<synchronous>, transform_indices = @transform_1, window_bounds = array<i64: 36, 128>}, {transform_indices = @transform_2, window_bounds = array<i64: 256, 128>}, {pipeline_mode = #tpu.pipeline_mode<synchronous>, transform_indices = @transform_3, window_bounds = array<i64: 2, 128>}]} {
    %c0_i32 = arith.constant 0 : i32
    %0 = arith.cmpi eq, %arg0, %c0_i32 : i32
    %1 = arith.extui %0 : i1 to i32
    %c0_i32_0 = arith.constant 0 : i32
    %2 = arith.cmpi ne, %1, %c0_i32_0 : i32
    scf.if %2 {
      %cst_35 = arith.constant 0.000000e+00 : f32
      %58 = vector.broadcast %cst_35 : f32 to vector<2x128xf32>
      %c0_36 = arith.constant 0 : index
      %c0_37 = arith.constant 0 : index
      %59 = vector.load %arg4[%c0_36, %c0_37] : memref<2x128xf32, #tpu.memory_space<vmem>>, vector<2x128xf32>
      tpu.vector_store %arg4[%c0_36, %c0_37], %58 {strides = array<i32>} : memref<2x128xf32, #tpu.memory_space<vmem>>, vector<2x128xf32>,
      %cst_38 = arith.constant 0.000000e+00 : f32
      %60 = vector.broadcast %cst_38 : f32 to vector<1x18x4xf32>
      %cst_39 = arith.constant 0.000000e+00 : f32
      %61 = vector.broadcast %cst_39 : f32 to vector<18x1x4xf32>
      %c0_40 = arith.constant 0 : index
      %c0_41 = arith.constant 0 : index
      %c0_42 = arith.constant 0 : index
      %62 = vector.load %arg5[%c0_40, %c0_41, %c0_42] : memref<18x18x4xf32, #tpu.memory_space<vmem>>, vector<1x18x4xf32>
      tpu.vector_store %arg5[%c0_40, %c0_41, %c0_42], %60 {strides = array<i32>} : memref<18x18x4xf32, #tpu.memory_space<vmem>>, vector<1x18x4xf32>,
      %c17 = arith.constant 17 : index
      %c0_43 = arith.constant 0 : index
      %c0_44 = arith.constant 0 : index
      %63 = vector.load %arg5[%c17, %c0_43, %c0_44] : memref<18x18x4xf32, #tpu.memory_space<vmem>>, vector<1x18x4xf32>
      tpu.vector_store %arg5[%c17, %c0_43, %c0_44], %60 {strides = array<i32>} : memref<18x18x4xf32, #tpu.memory_space<vmem>>, vector<1x18x4xf32>,
      %c0_45 = arith.constant 0 : index
      %c0_46 = arith.constant 0 : index
      %c0_47 = arith.constant 0 : index
      %64 = vector.load %arg5[%c0_45, %c0_46, %c0_47] : memref<18x18x4xf32, #tpu.memory_space<vmem>>, vector<18x1x4xf32>
      tpu.vector_store %arg5[%c0_45, %c0_46, %c0_47], %61 {strides = array<i32>} : memref<18x18x4xf32, #tpu.memory_space<vmem>>, vector<18x1x4xf32>,
      %c0_48 = arith.constant 0 : index
      %c17_49 = arith.constant 17 : index
      %c0_50 = arith.constant 0 : index
      %65 = vector.load %arg5[%c0_48, %c17_49, %c0_50] : memref<18x18x4xf32, #tpu.memory_space<vmem>>, vector<18x1x4xf32>
      tpu.vector_store %arg5[%c0_48, %c17_49, %c0_50], %61 {strides = array<i32>} : memref<18x18x4xf32, #tpu.memory_space<vmem>>, vector<18x1x4xf32>,
    } else {
    }
    %c0 = arith.constant 0 : index
    %c0_1 = arith.constant 0 : index
    %c0_2 = arith.constant 0 : index
    %c0_3 = arith.constant 0 : index
    %3 = vector.load %arg1[%c0, %c0_1, %c0_2, %c0_3] : memref<1x16x16x4xf32, #tpu.memory_space<vmem>>, vector<1x16x16x4xf32>
    %4 = vector.shape_cast %3 : vector<1x16x16x4xf32> to vector<16x16x4xf32>
    %c1 = arith.constant 1 : index
    %c1_4 = arith.constant 1 : index
    %c0_5 = arith.constant 0 : index
    %5 = vector.load %arg5[%c1, %c1_4, %c0_5] : memref<18x18x4xf32, #tpu.memory_space<vmem>>, vector<16x16x4xf32>
    tpu.vector_store %arg5[%c1, %c1_4, %c0_5], %4 {strides = array<i32>} : memref<18x18x4xf32, #tpu.memory_space<vmem>>, vector<16x16x4xf32>,
    %c0_6 = arith.constant 0 : index
    %c0_7 = arith.constant 0 : index
    %c0_8 = arith.constant 0 : index
    %6 = vector.load %arg5[%c0_6, %c0_7, %c0_8] : memref<18x18x4xf32, #tpu.memory_space<vmem>>, vector<18x18x4xf32>
    %7 = vector.extract_strided_slice %6 {offsets = [0, 0, 0], sizes = [16, 16, 4], strides = [1, 1, 1]} : vector<18x18x4xf32> to vector<16x16x4xf32>
    %8 = vector.shape_cast %7 : vector<16x16x4xf32> to vector<256x4xf32>
    %9 = arith.truncf %8 : vector<256x4xf32> to vector<256x4xbf16>
    %c0_9 = arith.constant 0 : index
    %c0_10 = arith.constant 0 : index
    %10 = vector.load %arg6[%c0_9, %c0_10] : memref<256x36xbf16, #tpu.memory_space<vmem>>, vector<256x4xbf16>
    tpu.vector_store %arg6[%c0_9, %c0_10], %9 {strides = array<i32>} : memref<256x36xbf16, #tpu.memory_space<vmem>>, vector<256x4xbf16>,
    %11 = vector.extract_strided_slice %6 {offsets = [0, 1, 0], sizes = [16, 16, 4], strides = [1, 1, 1]} : vector<18x18x4xf32> to vector<16x16x4xf32>
    %12 = vector.shape_cast %11 : vector<16x16x4xf32> to vector<256x4xf32>
    %13 = arith.truncf %12 : vector<256x4xf32> to vector<256x4xbf16>
    %c0_11 = arith.constant 0 : index
    %c4 = arith.constant 4 : index
    %14 = vector.load %arg6[%c0_11, %c4] : memref<256x36xbf16, #tpu.memory_space<vmem>>, vector<256x4xbf16>
    tpu.vector_store %arg6[%c0_11, %c4], %13 {strides = array<i32>} : memref<256x36xbf16, #tpu.memory_space<vmem>>, vector<256x4xbf16>,
    %15 = vector.extract_strided_slice %6 {offsets = [0, 2, 0], sizes = [16, 16, 4], strides = [1, 1, 1]} : vector<18x18x4xf32> to vector<16x16x4xf32>
    %16 = vector.shape_cast %15 : vector<16x16x4xf32> to vector<256x4xf32>
    %17 = arith.truncf %16 : vector<256x4xf32> to vector<256x4xbf16>
    %c0_12 = arith.constant 0 : index
    %c8 = arith.constant 8 : index
    %18 = vector.load %arg6[%c0_12, %c8] : memref<256x36xbf16, #tpu.memory_space<vmem>>, vector<256x4xbf16>
    tpu.vector_store %arg6[%c0_12, %c8], %17 {strides = array<i32>} : memref<256x36xbf16, #tpu.memory_space<vmem>>, vector<256x4xbf16>,
    %19 = vector.extract_strided_slice %6 {offsets = [1, 0, 0], sizes = [16, 16, 4], strides = [1, 1, 1]} : vector<18x18x4xf32> to vector<16x16x4xf32>
    %20 = vector.shape_cast %19 : vector<16x16x4xf32> to vector<256x4xf32>
    %21 = arith.truncf %20 : vector<256x4xf32> to vector<256x4xbf16>
    %c0_13 = arith.constant 0 : index
    %c12 = arith.constant 12 : index
    %22 = vector.load %arg6[%c0_13, %c12] : memref<256x36xbf16, #tpu.memory_space<vmem>>, vector<256x4xbf16>
    tpu.vector_store %arg6[%c0_13, %c12], %21 {strides = array<i32>} : memref<256x36xbf16, #tpu.memory_space<vmem>>, vector<256x4xbf16>,
    %23 = vector.extract_strided_slice %6 {offsets = [1, 1, 0], sizes = [16, 16, 4], strides = [1, 1, 1]} : vector<18x18x4xf32> to vector<16x16x4xf32>
    %24 = vector.shape_cast %23 : vector<16x16x4xf32> to vector<256x4xf32>
    %25 = arith.truncf %24 : vector<256x4xf32> to vector<256x4xbf16>
    %c0_14 = arith.constant 0 : index
    %c16 = arith.constant 16 : index
    %26 = vector.load %arg6[%c0_14, %c16] : memref<256x36xbf16, #tpu.memory_space<vmem>>, vector<256x4xbf16>
    tpu.vector_store %arg6[%c0_14, %c16], %25 {strides = array<i32>} : memref<256x36xbf16, #tpu.memory_space<vmem>>, vector<256x4xbf16>,
    %27 = vector.extract_strided_slice %6 {offsets = [1, 2, 0], sizes = [16, 16, 4], strides = [1, 1, 1]} : vector<18x18x4xf32> to vector<16x16x4xf32>
    %28 = vector.shape_cast %27 : vector<16x16x4xf32> to vector<256x4xf32>
    %29 = arith.truncf %28 : vector<256x4xf32> to vector<256x4xbf16>
    %c0_15 = arith.constant 0 : index
    %c20 = arith.constant 20 : index
    %30 = vector.load %arg6[%c0_15, %c20] : memref<256x36xbf16, #tpu.memory_space<vmem>>, vector<256x4xbf16>
    tpu.vector_store %arg6[%c0_15, %c20], %29 {strides = array<i32>} : memref<256x36xbf16, #tpu.memory_space<vmem>>, vector<256x4xbf16>,
    %31 = vector.extract_strided_slice %6 {offsets = [2, 0, 0], sizes = [16, 16, 4], strides = [1, 1, 1]} : vector<18x18x4xf32> to vector<16x16x4xf32>
    %32 = vector.shape_cast %31 : vector<16x16x4xf32> to vector<256x4xf32>
    %33 = arith.truncf %32 : vector<256x4xf32> to vector<256x4xbf16>
    %c0_16 = arith.constant 0 : index
    %c24 = arith.constant 24 : index
    %34 = vector.load %arg6[%c0_16, %c24] : memref<256x36xbf16, #tpu.memory_space<vmem>>, vector<256x4xbf16>
    tpu.vector_store %arg6[%c0_16, %c24], %33 {strides = array<i32>} : memref<256x36xbf16, #tpu.memory_space<vmem>>, vector<256x4xbf16>,
    %35 = vector.extract_strided_slice %6 {offsets = [2, 1, 0], sizes = [16, 16, 4], strides = [1, 1, 1]} : vector<18x18x4xf32> to vector<16x16x4xf32>
    %36 = vector.shape_cast %35 : vector<16x16x4xf32> to vector<256x4xf32>
    %37 = arith.truncf %36 : vector<256x4xf32> to vector<256x4xbf16>
    %c0_17 = arith.constant 0 : index
    %c28 = arith.constant 28 : index
    %38 = vector.load %arg6[%c0_17, %c28] : memref<256x36xbf16, #tpu.memory_space<vmem>>, vector<256x4xbf16>
    tpu.vector_store %arg6[%c0_17, %c28], %37 {strides = array<i32>} : memref<256x36xbf16, #tpu.memory_space<vmem>>, vector<256x4xbf16>,
    %39 = vector.extract_strided_slice %6 {offsets = [2, 2, 0], sizes = [16, 16, 4], strides = [1, 1, 1]} : vector<18x18x4xf32> to vector<16x16x4xf32>
    %40 = vector.shape_cast %39 : vector<16x16x4xf32> to vector<256x4xf32>
    %41 = arith.truncf %40 : vector<256x4xf32> to vector<256x4xbf16>
    %c0_18 = arith.constant 0 : index
    %c32 = arith.constant 32 : index
    %42 = vector.load %arg6[%c0_18, %c32] : memref<256x36xbf16, #tpu.memory_space<vmem>>, vector<256x4xbf16>
    tpu.vector_store %arg6[%c0_18, %c32], %41 {strides = array<i32>} : memref<256x36xbf16, #tpu.memory_space<vmem>>, vector<256x4xbf16>,
    %c0_19 = arith.constant 0 : index
    %c0_20 = arith.constant 0 : index
    %43 = vector.load %arg6[%c0_19, %c0_20] : memref<256x36xbf16, #tpu.memory_space<vmem>>, vector<256x36xbf16>
    %c0_21 = arith.constant 0 : index
    %c0_22 = arith.constant 0 : index
    %44 = vector.load %arg2[%c0_21, %c0_22] : memref<36x128xbf16, #tpu.memory_space<vmem>>, vector<36x128xbf16>
    %cst = arith.constant dense<0.000000e+00> : vector<256x128xf32>
    %45 = tpu.matmul %43, %44, %cst {dimension_numbers = #tpu.dot_dimension_numbers<[1], [0], [0], [1], [0, 0, 1, 1], [], []>} : vector<256x36xbf16>, vector<36x128xbf16>, vector<256x128xf32> -> vector<256x128xf32>
    %c0_23 = arith.constant 0 : index
    %c0_24 = arith.constant 0 : index
    %46 = vector.load %arg3[%c0_23, %c0_24] : memref<256x128xf32, #tpu.memory_space<vmem>>, vector<256x128xf32>
    tpu.vector_store %arg3[%c0_23, %c0_24], %45 {strides = array<i32>} : memref<256x128xf32, #tpu.memory_space<vmem>>, vector<256x128xf32>,
    %cst_25 = arith.constant dense<0.000000e+00> : vector<128xf32>
    %47 = vector.multi_reduction <add>, %45, %cst_25 [0] : vector<256x128xf32> to vector<128xf32>
    %48 = vector.shape_cast %47 : vector<128xf32> to vector<1x128xf32>
    %49 = arith.mulf %45, %45 : vector<256x128xf32>
    %cst_26 = arith.constant dense<0.000000e+00> : vector<128xf32>
    %50 = vector.multi_reduction <add>, %49, %cst_26 [0] : vector<256x128xf32> to vector<128xf32>
    %51 = vector.shape_cast %50 : vector<128xf32> to vector<1x128xf32>
    %c0_27 = arith.constant 0 : index
    %c0_28 = arith.constant 0 : index
    %52 = vector.load %arg4[%c0_27, %c0_28] : memref<2x128xf32, #tpu.memory_space<vmem>>, vector<1x128xf32>
    %53 = arith.addf %52, %48 : vector<1x128xf32>
    %c0_29 = arith.constant 0 : index
    %c0_30 = arith.constant 0 : index
    %54 = vector.load %arg4[%c0_29, %c0_30] : memref<2x128xf32, #tpu.memory_space<vmem>>, vector<1x128xf32>
    tpu.vector_store %arg4[%c0_29, %c0_30], %53 {strides = array<i32>} : memref<2x128xf32, #tpu.memory_space<vmem>>, vector<1x128xf32>,
    %c1_31 = arith.constant 1 : index
    %c0_32 = arith.constant 0 : index
    %55 = vector.load %arg4[%c1_31, %c0_32] : memref<2x128xf32, #tpu.memory_space<vmem>>, vector<1x128xf32>
    %56 = arith.addf %55, %51 : vector<1x128xf32>
    %c1_33 = arith.constant 1 : index
    %c0_34 = arith.constant 0 : index
    %57 = vector.load %arg4[%c1_33, %c0_34] : memref<2x128xf32, #tpu.memory_space<vmem>>, vector<1x128xf32>
    tpu.vector_store %arg4[%c1_33, %c0_34], %56 {strides = array<i32>} : memref<2x128xf32, #tpu.memory_space<vmem>>, vector<1x128xf32>,
    return
  }
  func.func @transform_0(%arg0: i32) -> (i32, i32, i32, i32) {
    %c0_i32 = arith.constant 0 : i32
    %c0_i32_0 = arith.constant 0 : i32
    %c0_i32_1 = arith.constant 0 : i32
    %c0_i32_2 = arith.constant 0 : i32
    return %arg0, %c0_i32, %c0_i32_0, %c0_i32_1 : i32, i32, i32, i32
  }
  func.func @transform_1(%arg0: i32) -> (i32, i32) {
    %c0_i32 = arith.constant 0 : i32
    %c0_i32_0 = arith.constant 0 : i32
    %c0_i32_1 = arith.constant 0 : i32
    return %c0_i32, %c0_i32_0 : i32, i32
  }
  func.func @transform_2(%arg0: i32) -> (i32, i32) {
    %c0_i32 = arith.constant 0 : i32
    %c0_i32_0 = arith.constant 0 : i32
    return %arg0, %c0_i32 : i32, i32
  }
  func.func @transform_3(%arg0: i32) -> (i32, i32) {
    %c0_i32 = arith.constant 0 : i32
    %c0_i32_0 = arith.constant 0 : i32
    %c0_i32_1 = arith.constant 0 : i32
    return %c0_i32, %c0_i32_0 : i32, i32
  }
}

module attributes {stable_mosaic.version = 11 : i64} {
  func.func @_bn_relu_kernel(%arg0: i32, %arg1: memref<256x128xf32, #tpu.memory_space<vmem>>, %arg2: memref<2x128xf32, #tpu.memory_space<vmem>>, %arg3: memref<1x128xf32, #tpu.memory_space<vmem>>, %arg4: memref<1x128xf32, #tpu.memory_space<vmem>>, %arg5: memref<256x128xf32, #tpu.memory_space<vmem>>) attributes {dimension_semantics = [#tpu.dimension_semantics<parallel>], iteration_bounds = array<i64: 2>, scalar_prefetch = 0 : i64, scratch_operands = 0 : i64, tpu.core_type = #tpu.core_type<tc>, window_params = [{transform_indices = @transform_0, window_bounds = array<i64: 256, 128>}, {pipeline_mode = #tpu.pipeline_mode<synchronous>, transform_indices = @transform_1, window_bounds = array<i64: 2, 128>}, {pipeline_mode = #tpu.pipeline_mode<synchronous>, transform_indices = @transform_2, window_bounds = array<i64: 1, 128>}, {pipeline_mode = #tpu.pipeline_mode<synchronous>, transform_indices = @transform_3, window_bounds = array<i64: 1, 128>}, {transform_indices = @transform_4, window_bounds = array<i64: 256, 128>}]} {
    %c0 = arith.constant 0 : index
    %c0_0 = arith.constant 0 : index
    %0 = vector.load %arg2[%c0, %c0_0] : memref<2x128xf32, #tpu.memory_space<vmem>>, vector<1x128xf32>
    %cst = arith.constant 0.001953125 : f32
    %1 = vector.broadcast %cst : f32 to vector<1x128xf32>
    %2 = arith.mulf %0, %1 : vector<1x128xf32>
    %c1 = arith.constant 1 : index
    %c0_1 = arith.constant 0 : index
    %3 = vector.load %arg2[%c1, %c0_1] : memref<2x128xf32, #tpu.memory_space<vmem>>, vector<1x128xf32>
    %cst_2 = arith.constant 0.001953125 : f32
    %4 = vector.broadcast %cst_2 : f32 to vector<1x128xf32>
    %5 = arith.mulf %3, %4 : vector<1x128xf32>
    %6 = arith.mulf %2, %2 : vector<1x128xf32>
    %7 = arith.subf %5, %6 : vector<1x128xf32>
    %cst_3 = arith.constant 0.000000e+00 : f32
    %8 = vector.broadcast %cst_3 : f32 to vector<1x128xf32>
    %9 = arith.maximumf %7, %8 : vector<1x128xf32>
    %c0_4 = arith.constant 0 : index
    %c0_5 = arith.constant 0 : index
    %10 = vector.load %arg3[%c0_4, %c0_5] : memref<1x128xf32, #tpu.memory_space<vmem>>, vector<1x128xf32>
    %cst_6 = arith.constant 9.99999974E-6 : f32
    %11 = vector.broadcast %cst_6 : f32 to vector<1x128xf32>
    %12 = arith.addf %9, %11 : vector<1x128xf32>
    %13 = math.rsqrt %12 : vector<1x128xf32>
    %14 = arith.mulf %10, %13 : vector<1x128xf32>
    %c0_7 = arith.constant 0 : index
    %c0_8 = arith.constant 0 : index
    %15 = vector.load %arg4[%c0_7, %c0_8] : memref<1x128xf32, #tpu.memory_space<vmem>>, vector<1x128xf32>
    %16 = arith.mulf %2, %14 : vector<1x128xf32>
    %17 = arith.subf %15, %16 : vector<1x128xf32>
    %c0_9 = arith.constant 0 : index
    %c0_10 = arith.constant 0 : index
    %18 = vector.load %arg1[%c0_9, %c0_10] : memref<256x128xf32, #tpu.memory_space<vmem>>, vector<256x128xf32>
    %19 = vector.broadcast %14 : vector<1x128xf32> to vector<256x128xf32>
    %20 = arith.mulf %18, %19 : vector<256x128xf32>
    %21 = vector.broadcast %17 : vector<1x128xf32> to vector<256x128xf32>
    %22 = arith.addf %20, %21 : vector<256x128xf32>
    %cst_11 = arith.constant 0.000000e+00 : f32
    %23 = vector.broadcast %cst_11 : f32 to vector<256x128xf32>
    %24 = arith.maximumf %22, %23 : vector<256x128xf32>
    %c0_12 = arith.constant 0 : index
    %c0_13 = arith.constant 0 : index
    %25 = vector.load %arg5[%c0_12, %c0_13] : memref<256x128xf32, #tpu.memory_space<vmem>>, vector<256x128xf32>
    tpu.vector_store %arg5[%c0_12, %c0_13], %24 {strides = array<i32>} : memref<256x128xf32, #tpu.memory_space<vmem>>, vector<256x128xf32>,
    return
  }
  func.func @transform_0(%arg0: i32) -> (i32, i32) {
    %c0_i32 = arith.constant 0 : i32
    %c0_i32_0 = arith.constant 0 : i32
    return %arg0, %c0_i32 : i32, i32
  }
  func.func @transform_1(%arg0: i32) -> (i32, i32) {
    %c0_i32 = arith.constant 0 : i32
    %c0_i32_0 = arith.constant 0 : i32
    %c0_i32_1 = arith.constant 0 : i32
    return %c0_i32, %c0_i32_0 : i32, i32
  }
  func.func @transform_2(%arg0: i32) -> (i32, i32) {
    %c0_i32 = arith.constant 0 : i32
    %c0_i32_0 = arith.constant 0 : i32
    %c0_i32_1 = arith.constant 0 : i32
    return %c0_i32, %c0_i32_0 : i32, i32
  }
  func.func @transform_3(%arg0: i32) -> (i32, i32) {
    %c0_i32 = arith.constant 0 : i32
    %c0_i32_0 = arith.constant 0 : i32
    %c0_i32_1 = arith.constant 0 : i32
    return %c0_i32, %c0_i32_0 : i32, i32
  }
  func.func @transform_4(%arg0: i32) -> (i32, i32) {
    %c0_i32 = arith.constant 0 : i32
    %c0_i32_0 = arith.constant 0 : i32
    return %arg0, %c0_i32 : i32, i32
  }
}

</mosaic_0001>

<llo_original>
// kernel: single_conv_forward.3
$region0: #{single_conv_forward.3}
  #allocation0 [shape = 'u32[]', space=smem, size = 0x4, offset = 0x4, fixed_abs, tag = 'smem constant byte address 0x4 - core index']
  #allocation1 [shape = 'u32[144,128]{1,0:T(1,128)}', space=vmem, size = 0x12000, scoped, tag = 'internal scratch']
  %s0 = inlined_call_operand.vmem [shape: f32[512,128], index: 0, kind: input, shape index: {}]
  %s1 = inlined_call_operand.vmem [shape: f32[2,128], index: 1, kind: input, shape index: {}]
  %s2 = inlined_call_operand.vmem [shape: f32[1,128], index: 2, kind: input, shape index: {}]
  %s3 = inlined_call_operand.vmem [shape: f32[1,128], index: 3, kind: input, shape index: {}]
  %s4 = inlined_call_operand.vmem [shape: f32[512,128], index: 4, kind: output, shape index: {}]
  %s5 = sld [smem:[#allocation0]]
  $region49: #{single_conv_forward.3} parent=0
    _
  %s7 = ssub.s32 1, %s5
  %s8 = scalar_select 0, %s7, %s5
  loop: start=0, step=1, limit=4
  $region2: #{single_conv_forward.3} parent=0 // loop_pre_header
    _
  $region3: #{single_conv_forward.3} parent=0 // loop_header
    %s10 = sphi 0, %s14
    %p11 = scmp.ge.s32.totalorder %s10, 4
    %s20 = sphi 0, %s22
    %s23 = sphi 0, %s20
    %s24 = sphi 0, %s23
    %s40 = sphi 0, %s24
    %s44 = sphi 0, %s44
    %s46 = sphi 0, %s44
    %s47 = sphi 0, %s46
    %s61 = sphi 0, %s47
    %s65 = sphi 0, %s65
    %s67 = sphi 0, %s65
    %s68 = sphi 0, %s67
    %s82 = sphi 0, %s68
    %s86 = sphi 0, %s86
    %s88 = sphi 0, %s86
    %s89 = sphi 0, %s88
    %s103 = sphi 0, %s89
    %s109 = sphi 0, %s111
    %s112 = sphi 0, %s109
    %s113 = sphi 0, %s112
    %s129 = sphi 0, %s113
  $region4: #{single_conv_forward.3} parent=0 // loop_header_branch
    %13 = sbr.rel (%p11) target = $region8
  $region5: #{single_conv_forward.3} parent=0 // loop_body
    %s15 = ssub.s32 %s10, 1
    %s16 = ssub.s32 %s10, 2
    %s17 = sadd.s32 %s10, 1
    %s18 = ssub.s32 %s10, %s17
    %p19 = scmp.eq.s32.totalorder %s18, 0
    %s21 = sadd.s32 %s20, 1
    %s22 = scalar_select %p19, %s20, %s21
    %p25 = pneg %p19
    %p26 = scmp.eq.s32.totalorder %s10, 1
    %p27 = por %p25, %p26
    %p28 = scmp.ne.s32.totalorder %s20, %s23
    %p29 = scmp.eq.s32.totalorder %s10, 0
    %p30 = por %p28, %p29
    %p31 = scmp.ne.s32.totalorder %s20, %s23
    %p32 = scmp.eq.s32.totalorder %s15, 1
    %p33 = por %p31, %p32
    %p34 = scmp.ne.s32.totalorder %s23, %s24
    %p35 = scmp.eq.s32.totalorder %s15, 0
    %p36 = por %p34, %p35
    %p37 = scmp.ne.s32.totalorder %s23, %s24
    %p38 = scmp.eq.s32.totalorder %s16, 1
    %p39 = por %p37, %p38
    %p41 = scmp.ne.s32.totalorder %s24, %s40
    %p42 = scmp.eq.s32.totalorder %s16, 0
    %p43 = por %p41, %p42
    %s45 = sadd.s32 %s44, 1
    %p48 = scmp.eq.s32.totalorder %s10, 1
    %p49 = scmp.ne.s32.totalorder %s44, %s46
    %p50 = scmp.eq.s32.totalorder %s10, 0
    %p51 = por %p49, %p50
    %p52 = scmp.ne.s32.totalorder %s44, %s46
    %p53 = scmp.eq.s32.totalorder %s15, 1
    %p54 = por %p52, %p53
    %p55 = scmp.ne.s32.totalorder %s46, %s47
    %p56 = scmp.eq.s32.totalorder %s15, 0
    %p57 = por %p55, %p56
    %p58 = scmp.ne.s32.totalorder %s46, %s47
    %p59 = scmp.eq.s32.totalorder %s16, 1
    %p60 = por %p58, %p59
    %p62 = scmp.ne.s32.totalorder %s47, %s61
    %p63 = scmp.eq.s32.totalorder %s16, 0
    %p64 = por %p62, %p63
    %s66 = sadd.s32 %s65, 1
    %p69 = scmp.eq.s32.totalorder %s10, 1
    %p70 = scmp.ne.s32.totalorder %s65, %s67
    %p71 = scmp.eq.s32.totalorder %s10, 0
    %p72 = por %p70, %p71
    %p73 = scmp.ne.s32.totalorder %s65, %s67
    %p74 = scmp.eq.s32.totalorder %s15, 1
    %p75 = por %p73, %p74
    %p76 = scmp.ne.s32.totalorder %s67, %s68
    %p77 = scmp.eq.s32.totalorder %s15, 0
    %p78 = por %p76, %p77
    %p79 = scmp.ne.s32.totalorder %s67, %s68
    %p80 = scmp.eq.s32.totalorder %s16, 1
    %p81 = por %p79, %p80
    %p83 = scmp.ne.s32.totalorder %s68, %s82
    %p84 = scmp.eq.s32.totalorder %s16, 0
    %p85 = por %p83, %p84
    %s87 = sadd.s32 %s86, 1
    %p90 = scmp.eq.s32.totalorder %s10, 1
    %p91 = scmp.ne.s32.totalorder %s86, %s88
    %p92 = scmp.eq.s32.totalorder %s10, 0
    %p93 = por %p91, %p92
    %p94 = scmp.ne.s32.totalorder %s86, %s88
    %p95 = scmp.eq.s32.totalorder %s15, 1
    %p96 = por %p94, %p95
    %p97 = scmp.ne.s32.totalorder %s88, %s89
    %p98 = scmp.eq.s32.totalorder %s15, 0
    %p99 = por %p97, %p98
    %p100 = scmp.ne.s32.totalorder %s88, %s89
    %p101 = scmp.eq.s32.totalorder %s16, 1
    %p102 = por %p100, %p101
    %p104 = scmp.ne.s32.totalorder %s89, %s103
    %p105 = scmp.eq.s32.totalorder %s16, 0
    %p106 = por %p104, %p105
    %s107 = ssub.s32 %s10, %s17
    %p108 = scmp.eq.s32.totalorder %s107, 0
    %s110 = sadd.s32 %s109, 1
    %s111 = scalar_select %p108, %s109, %s110
    %p114 = pneg %p108
    %p115 = scmp.eq.s32.totalorder %s10, 1
    %p116 = por %p114, %p115
    %p117 = scmp.ne.s32.totalorder %s109, %s112
    %p118 = scmp.eq.s32.totalorder %s10, 0
    %p119 = por %p117, %p118
    %p120 = scmp.ne.s32.totalorder %s109, %s112
    %p121 = scmp.eq.s32.totalorder %s15, 1
    %p122 = por %p120, %p121
    %p123 = scmp.ne.s32.totalorder %s112, %s113
    %p124 = scmp.eq.s32.totalorder %s15, 0
    %p125 = por %p123, %p124
    %p126 = scmp.ne.s32.totalorder %s112, %s113
    %p127 = scmp.eq.s32.totalorder %s16, 1
    %p128 = por %p126, %p127
    %p130 = scmp.ne.s32.totalorder %s113, %s129
    %p131 = scmp.eq.s32.totalorder %s16, 0
    %p132 = por %p130, %p131
    %p133 = scmp.le.s32.totalorder 1, %s10
    %p134 = scmp.lt.s32.totalorder %s10, 3
    %p135 = pnand %p133, %p134
    %p136 = pneg %p135
    // Predicated region
    $region9: #{single_conv_forward.3} parent=5 // pred_check
      _
    $region10: #{single_conv_forward.3} parent=5 // pred_check_branch
      %138 = sbr.rel (%p135) target = $region12
    $region11: #{single_conv_forward.3} parent=5 // pred_region
      %s139 = ssub.s32 %s10, 1
      // Predicated region
      $region13: #{single_conv_forward.3} parent=11 // pred_check
        %p140 = pneg %p57
      $region14: #{single_conv_forward.3} parent=11 // pred_check_branch
        %142 = sbr.rel (%p140) target = $region16
      $region15: #{single_conv_forward.3} parent=11 // pred_region
        _
      $region16: #{single_conv_forward.3} parent=11 // pred_fallthru
        _
      // Predicated region
      $region17: #{single_conv_forward.3} parent=11 // pred_check
        %p143 = pneg %p78
      $region18: #{single_conv_forward.3} parent=11 // pred_check_branch
        %145 = sbr.rel (%p143) target = $region20
      $region19: #{single_conv_forward.3} parent=11 // pred_region
        _
      $region20: #{single_conv_forward.3} parent=11 // pred_fallthru
        _
      // Predicated region
      $region21: #{single_conv_forward.3} parent=11 // pred_check
        %p146 = pneg %p99
      $region22: #{single_conv_forward.3} parent=11 // pred_check_branch
        %148 = sbr.rel (%p146) target = $region24
      $region23: #{single_conv_forward.3} parent=11 // pred_region
        _
      $region24: #{single_conv_forward.3} parent=11 // pred_fallthru
        _
    $region12: #{single_conv_forward.3} parent=5 // pred_fallthru
      _
    %p149 = scmp.lt.s32.totalorder %s10, 2
    // Predicated region
    $region25: #{single_conv_forward.3} parent=5 // pred_check
      %p150 = pneg %p149
    $region26: #{single_conv_forward.3} parent=5 // pred_check_branch
      %152 = sbr.rel (%p150) target = $region28
    $region27: #{single_conv_forward.3} parent=5 // pred_region
      // Predicated region
      $region29: #{single_conv_forward.3} parent=27 // pred_check
        %p153 = pneg %p30
      $region30: #{single_conv_forward.3} parent=27 // pred_check_branch
        %155 = sbr.rel (%p153) target = $region32
      $region31: #{single_conv_forward.3} parent=27 // pred_region
        %s156 = smul.u32 32, %s10
        %p157 = scmp.lt.s32.totalorder %s156, 63
        %s158 = scalar_select %p157, %s156, 63
        %s159 = smul.addr %s158, 8
        %s160 = scalar_lea.vmem %s0, %s159
        %s161 = smul.u32 32, %s10
      $region32: #{single_conv_forward.3} parent=27 // pred_fallthru
        _
    $region28: #{single_conv_forward.3} parent=5 // pred_fallthru
      _
    %p162 = scmp.le.s32.totalorder 1, %s10
    %p163 = scmp.lt.s32.totalorder %s10, 3
    %p164 = pnand %p162, %p163
    %p165 = pneg %p164
    // Predicated region
    $region33: #{single_conv_forward.3} parent=5 // pred_check
      _
    $region34: #{single_conv_forward.3} parent=5 // pred_check_branch
      %167 = sbr.rel (%p164) target = $region36
    $region35: #{single_conv_forward.3} parent=5 // pred_region
      %s168 = ssub.s32 %s10, 1
      %s169 = smul.u32 32, %s15
      %p170 = scmp.lt.s32.totalorder %s169, 63
      %s171 = scalar_select %p170, %s169, 63
      %s172 = smul.addr %s171, 8
      %s173 = scalar_lea.vmem %s0, %s172
      %p174 = pneg %p36
      %p175 = pneg %p33
      %p176 = pneg %p57
      %p177 = pneg %p54
      %p178 = pneg %p78
      %p179 = pneg %p75
      %p180 = pneg %p99
      %p181 = pneg %p96
      %p182 = pneg %p125
      %p183 = pneg %p122
      %s184 = smul.u32 32, %s15
      %p185 = scmp.lt.s32.totalorder %s184, 63
      %s186 = scalar_select %p185, %s184, 63
      %s187 = smul.addr %s186, 8
      %s188 = scalar_lea.vmem %s4, %s187
      %s189 = smul.u32 32, %s15
      %p190 = scmp.lt.s32.totalorder %s189, 63
      %s191 = scalar_select %p190, %s189, 63
      %s192 = smul.addr %s191, 8
      %s193 = scalar_lea.vmem %s0, %s192
      %s194 = smul.u32 32, %s15
      %s195 = smul.u32 32, %s15
      %p196 = scmp.lt.s32.totalorder %s195, 63
      %s197 = scalar_select %p196, %s195, 63
      %s198 = smul.addr %s197, 8
      %s199 = scalar_lea.vmem %s4, %s198
      %s200 = smul.u32 32, %s15
      %v201 = vld [vmem:[%s1] sm:$0x1]
      %v202 = vmul.f32 %v201, 0.001953125
      %v203 = vld [vmem:[%s1 + $0x1] sm:$0x1]
      %v204 = vmul.f32 %v203, 0.001953125
      %v205 = vmul.f32 %v202, %v202
      %v206 = vsub.f32 %v204, %v205
      %v207 = vmax.f32 %v206, 0.0
      %v208 = vld [vmem:[%s2] sm:$0x1]
      %v209 = vadd.f32 %v207, 1e-05
      %v210 = vrsqrt.pop %v209
      %v211 = vmul.f32 %v208, %v210
      %v212 = vld [vmem:[%s3] sm:$0x1]
      %v213 = vmul.f32 %v202, %v211
      %v214 = vsub.f32 %v212, %v213
      %v215 = vld [vmem:[%s193] sm:$0xff]
      %v216 = vld [vmem:[%s193 + $0x8] sm:$0xff]
      %v217 = vld [vmem:[%s193 + $0x10] sm:$0xff]
      %v218 = vld [vmem:[%s193 + $0x18] sm:$0xff]
      %v219 = vld [vmem:[%s193 + $0x20] sm:$0xff]
      %v220 = vld [vmem:[%s193 + $0x28] sm:$0xff]
      %v221 = vld [vmem:[%s193 + $0x30] sm:$0xff]
      %v222 = vld [vmem:[%s193 + $0x38] sm:$0xff]
      %v223 = vld [vmem:[%s193 + $0x40] sm:$0xff]
      %v224 = vld [vmem:[%s193 + $0x48] sm:$0xff]
      %v225 = vld [vmem:[%s193 + $0x50] sm:$0xff]
      %v226 = vld [vmem:[%s193 + $0x58] sm:$0xff]
      %v227 = vld [vmem:[%s193 + $0x60] sm:$0xff]
      %v228 = vld [vmem:[%s193 + $0x68] sm:$0xff]
      %v229 = vld [vmem:[%s193 + $0x70] sm:$0xff]
      %v230 = vld [vmem:[%s193 + $0x78] sm:$0xff]
      %v231 = vld [vmem:[%s193 + $0x80] sm:$0xff]
      %v232 = vld [vmem:[%s193 + $0x88] sm:$0xff]
      %v233 = vld [vmem:[%s193 + $0x90] sm:$0xff]
      %v234 = vld [vmem:[%s193 + $0x98] sm:$0xff]
      %v235 = vld [vmem:[%s193 + $0xa0] sm:$0xff]
      %v236 = vld [vmem:[%s193 + $0xa8] sm:$0xff]
      %v237 = vld [vmem:[%s193 + $0xb0] sm:$0xff]
      %v238 = vld [vmem:[%s193 + $0xb8] sm:$0xff]
      %v239 = vld [vmem:[%s193 + $0xc0] sm:$0xff]
      %v240 = vld [vmem:[%s193 + $0xc8] sm:$0xff]
      %v241 = vld [vmem:[%s193 + $0xd0] sm:$0xff]
      %v242 = vld [vmem:[%s193 + $0xd8] sm:$0xff]
      %v243 = vld [vmem:[%s193 + $0xe0] sm:$0xff]
      %v244 = vld [vmem:[%s193 + $0xe8] sm:$0xff]
      %v245 = vld [vmem:[%s193 + $0xf0] sm:$0xff]
      %v246 = vld [vmem:[%s193 + $0xf8] sm:$0xff]
      %v248 = vlaneseq
      %v249 = vshrl.u32 %v248, 7
      %v250 = vsub.s32 0, %v249
      %v251 = vrot.slane %v211, %v250
      %v253 = vmul.f32 %v215, %v251
      %v254 = vmul.f32 %v216, %v251
      %v255 = vmul.f32 %v217, %v251
      %v256 = vmul.f32 %v218, %v251
      %v257 = vmul.f32 %v219, %v251
      %v258 = vmul.f32 %v220, %v251
      %v259 = vmul.f32 %v221, %v251
      %v260 = vmul.f32 %v222, %v251
      %v261 = vmul.f32 %v223, %v251
      %v262 = vmul.f32 %v224, %v251
      %v263 = vmul.f32 %v225, %v251
      %v264 = vmul.f32 %v226, %v251
      %v265 = vmul.f32 %v227, %v251
      %v266 = vmul.f32 %v228, %v251
      %v267 = vmul.f32 %v229, %v251
      %v268 = vmul.f32 %v230, %v251
      %v269 = vmul.f32 %v231, %v251
      %v270 = vmul.f32 %v232, %v251
      %v271 = vmul.f32 %v233, %v251
      %v272 = vmul.f32 %v234, %v251
      %v273 = vmul.f32 %v235, %v251
      %v274 = vmul.f32 %v236, %v251
      %v275 = vmul.f32 %v237, %v251
      %v276 = vmul.f32 %v238, %v251
      %v277 = vmul.f32 %v239, %v251
      %v278 = vmul.f32 %v240, %v251
      %v279 = vmul.f32 %v241, %v251
      %v280 = vmul.f32 %v242, %v251
      %v281 = vmul.f32 %v243, %v251
      %v282 = vmul.f32 %v244, %v251
      %v283 = vmul.f32 %v245, %v251
      %v284 = vmul.f32 %v246, %v251
      %v286 = vlaneseq
      %v287 = vshrl.u32 %v286, 7
      %v288 = vsub.s32 0, %v287
      %v289 = vrot.slane %v214, %v288
      %v291 = vadd.f32 %v253, %v289
      %v292 = vadd.f32 %v254, %v289
      %v293 = vadd.f32 %v255, %v289
      %v294 = vadd.f32 %v256, %v289
      %v295 = vadd.f32 %v257, %v289
      %v296 = vadd.f32 %v258, %v289
      %v297 = vadd.f32 %v259, %v289
      %v298 = vadd.f32 %v260, %v289
      %v299 = vadd.f32 %v261, %v289
      %v300 = vadd.f32 %v262, %v289
      %v301 = vadd.f32 %v263, %v289
      %v302 = vadd.f32 %v264, %v289
      %v303 = vadd.f32 %v265, %v289
      %v304 = vadd.f32 %v266, %v289
      %v305 = vadd.f32 %v267, %v289
      %v306 = vadd.f32 %v268, %v289
      %v307 = vadd.f32 %v269, %v289
      %v308 = vadd.f32 %v270, %v289
      %v309 = vadd.f32 %v271, %v289
      %v310 = vadd.f32 %v272, %v289
      %v311 = vadd.f32 %v273, %v289
      %v312 = vadd.f32 %v274, %v289
      %v313 = vadd.f32 %v275, %v289
      %v314 = vadd.f32 %v276, %v289
      %v315 = vadd.f32 %v277, %v289
      %v316 = vadd.f32 %v278, %v289
      %v317 = vadd.f32 %v279, %v289
      %v318 = vadd.f32 %v280, %v289
      %v319 = vadd.f32 %v281, %v289
      %v320 = vadd.f32 %v282, %v289
      %v321 = vadd.f32 %v283, %v289
      %v322 = vadd.f32 %v284, %v289
      %v323 = vmax.f32 %v291, 0.0
      %v324 = vmax.f32 %v292, 0.0
      %v325 = vmax.f32 %v293, 0.0
      %v326 = vmax.f32 %v294, 0.0
      %v327 = vmax.f32 %v295, 0.0
      %v328 = vmax.f32 %v296, 0.0
      %v329 = vmax.f32 %v297, 0.0
      %v330 = vmax.f32 %v298, 0.0
      %v331 = vmax.f32 %v299, 0.0
      %v332 = vmax.f32 %v300, 0.0
      %v333 = vmax.f32 %v301, 0.0
      %v334 = vmax.f32 %v302, 0.0
      %v335 = vmax.f32 %v303, 0.0
      %v336 = vmax.f32 %v304, 0.0
      %v337 = vmax.f32 %v305, 0.0
      %v338 = vmax.f32 %v306, 0.0
      %v339 = vmax.f32 %v307, 0.0
      %v340 = vmax.f32 %v308, 0.0
      %v341 = vmax.f32 %v309, 0.0
      %v342 = vmax.f32 %v310, 0.0
      %v343 = vmax.f32 %v311, 0.0
      %v344 = vmax.f32 %v312, 0.0
      %v345 = vmax.f32 %v313, 0.0
      %v346 = vmax.f32 %v314, 0.0
      %v347 = vmax.f32 %v315, 0.0
      %v348 = vmax.f32 %v316, 0.0
      %v349 = vmax.f32 %v317, 0.0
      %v350 = vmax.f32 %v318, 0.0
      %v351 = vmax.f32 %v319, 0.0
      %v352 = vmax.f32 %v320, 0.0
      %v353 = vmax.f32 %v321, 0.0
      %v354 = vmax.f32 %v322, 0.0
      %355 = vst [vmem:[%s199] sm:$0xff] %v323
      %356 = vst [vmem:[%s199 + $0x8] sm:$0xff] %v324
      %357 = vst [vmem:[%s199 + $0x10] sm:$0xff] %v325
      %358 = vst [vmem:[%s199 + $0x18] sm:$0xff] %v326
      %359 = vst [vmem:[%s199 + $0x20] sm:$0xff] %v327
      %360 = vst [vmem:[%s199 + $0x28] sm:$0xff] %v328
      %361 = vst [vmem:[%s199 + $0x30] sm:$0xff] %v329
      %362 = vst [vmem:[%s199 + $0x38] sm:$0xff] %v330
      %363 = vst [vmem:[%s199 + $0x40] sm:$0xff] %v331
      %364 = vst [vmem:[%s199 + $0x48] sm:$0xff] %v332
      %365 = vst [vmem:[%s199 + $0x50] sm:$0xff] %v333
      %366 = vst [vmem:[%s199 + $0x58] sm:$0xff] %v334
      %367 = vst [vmem:[%s199 + $0x60] sm:$0xff] %v335
      %368 = vst [vmem:[%s199 + $0x68] sm:$0xff] %v336
      %369 = vst [vmem:[%s199 + $0x70] sm:$0xff] %v337
      %370 = vst [vmem:[%s199 + $0x78] sm:$0xff] %v338
      %371 = vst [vmem:[%s199 + $0x80] sm:$0xff] %v339
      %372 = vst [vmem:[%s199 + $0x88] sm:$0xff] %v340
      %373 = vst [vmem:[%s199 + $0x90] sm:$0xff] %v341
      %374 = vst [vmem:[%s199 + $0x98] sm:$0xff] %v342
      %375 = vst [vmem:[%s199 + $0xa0] sm:$0xff] %v343
      %376 = vst [vmem:[%s199 + $0xa8] sm:$0xff] %v344
      %377 = vst [vmem:[%s199 + $0xb0] sm:$0xff] %v345
      %378 = vst [vmem:[%s199 + $0xb8] sm:$0xff] %v346
      %379 = vst [vmem:[%s199 + $0xc0] sm:$0xff] %v347
      %380 = vst [vmem:[%s199 + $0xc8] sm:$0xff] %v348
      %381 = vst [vmem:[%s199 + $0xd0] sm:$0xff] %v349
      %382 = vst [vmem:[%s199 + $0xd8] sm:$0xff] %v350
      %383 = vst [vmem:[%s199 + $0xe0] sm:$0xff] %v351
      %384 = vst [vmem:[%s199 + $0xe8] sm:$0xff] %v352
      %385 = vst [vmem:[%s199 + $0xf0] sm:$0xff] %v353
      %386 = vst [vmem:[%s199 + $0xf8] sm:$0xff] %v354
      %s387 = smul.u32 32, %s15
      %p388 = scmp.lt.s32.totalorder %s387, 63
      %s389 = scalar_select %p388, %s387, 63
      %s390 = smul.addr %s389, 8
      %s391 = scalar_lea.vmem %s4, %s390
      // Predicated region
      $region37: #{single_conv_forward.3} parent=35 // pred_check
        %p392 = pneg %p122
      $region38: #{single_conv_forward.3} parent=35 // pred_check_branch
        %394 = sbr.rel (%p392) target = $region40
      $region39: #{single_conv_forward.3} parent=35 // pred_region
        %s395 = smul.u32 32, %s15
      $region40: #{single_conv_forward.3} parent=35 // pred_fallthru
        _
    $region36: #{single_conv_forward.3} parent=5 // pred_fallthru
      _
    %p396 = scmp.le.s32.totalorder 2, %s10
    // Predicated region
    $region41: #{single_conv_forward.3} parent=5 // pred_check
      %p397 = pneg %p396
    $region42: #{single_conv_forward.3} parent=5 // pred_check_branch
      %399 = sbr.rel (%p397) target = $region44
    $region43: #{single_conv_forward.3} parent=5 // pred_region
      %s400 = ssub.s32 %s10, 2
      // Predicated region
      $region45: #{single_conv_forward.3} parent=43 // pred_check
        %p401 = pneg %p128
      $region46: #{single_conv_forward.3} parent=43 // pred_check_branch
        %403 = sbr.rel (%p401) target = $region48
      $region47: #{single_conv_forward.3} parent=43 // pred_region
        %s404 = smul.u32 32, %s16
        %p405 = scmp.lt.s32.totalorder %s404, 63
        %s406 = scalar_select %p405, %s404, 63
        %s407 = smul.addr %s406, 8
        %s408 = scalar_lea.vmem %s4, %s407
      $region48: #{single_conv_forward.3} parent=43 // pred_fallthru
        _
    $region44: #{single_conv_forward.3} parent=5 // pred_fallthru
      _
  $region6: #{single_conv_forward.3} parent=0 // loop_footer
    %s14 = sadd.s32 1, %s10
  $region7: #{single_conv_forward.3} parent=0 // loop_footer_branch
    %9 = sbr.rel target = $region3
  $region8: #{single_conv_forward.3} parent=0 // loop_exit
    _

// kernel: single_conv_forward.2
$region0: #{single_conv_forward.2}
  #allocation0 [shape = 'u32[]', space=smem, size = 0x4, offset = 0x4, fixed_abs, tag = 'smem constant byte address 0x4 - core index']
  #allocation1 [shape = 'u32[144,128]{1,0:T(1,128)}', space=vmem, size = 0x12000, scoped, tag = 'internal scratch']
  #allocation2 [shape = 'f32[18,18,4]{2,1,0:T(8,128)}', space=vmem, size = 0x36000, scoped, tag = 'scratch operand']
  #allocation3 [shape = 'bf16[256,36]{1,0:T(8,128)(2,1)}', space=vmem, size = 0x10000, scoped, tag = 'scratch operand']
  %s0 = inlined_call_operand.vmem [shape: f32[2,16,16,4], index: 0, kind: input, shape index: {}]
  %s1 = inlined_call_operand.vmem [shape: bf16[36,128], index: 1, kind: input, shape index: {}]
  %s2 = inlined_call_operand.vmem [shape: f32[512,128], index: 2, kind: output, shape index: {0}]
  %s3 = inlined_call_operand.vmem [shape: f32[2,128], index: 3, kind: output, shape index: {1}]
  %4 = xla_tuple %s2, %s3
  %s5 = sld [smem:[#allocation0]]
  $region53: #{single_conv_forward.2} parent=0
    _
  %s7 = ssub.s32 1, %s5
  %s8 = scalar_select 0, %s7, %s5
  loop: start=0, step=1, limit=4
  $region2: #{single_conv_forward.2} parent=0 // loop_pre_header
    _
  $region3: #{single_conv_forward.2} parent=0 // loop_header
    %s10 = sphi 0, %s14
    %p11 = scmp.ge.s32.totalorder %s10, 4
    %s20 = sphi 0, %s22
    %s23 = sphi 0, %s20
    %s24 = sphi 0, %s23
    %s40 = sphi 0, %s24
    %s44 = sphi 0, %s44
    %s46 = sphi 0, %s44
    %s47 = sphi 0, %s46
    %s61 = sphi 0, %s47
    %s67 = sphi 0, %s69
    %s70 = sphi 0, %s67
    %s71 = sphi 0, %s70
    %s87 = sphi 0, %s71
    %s91 = sphi 0, %s91
    %s93 = sphi 0, %s91
    %s94 = sphi 0, %s93
    %s108 = sphi 0, %s94
  $region4: #{single_conv_forward.2} parent=0 // loop_header_branch
    %13 = sbr.rel (%p11) target = $region8
  $region5: #{single_conv_forward.2} parent=0 // loop_body
    %s15 = ssub.s32 %s10, 1
    %s16 = ssub.s32 %s10, 2
    %s17 = sadd.s32 %s10, 1
    %s18 = ssub.s32 %s10, %s17
    %p19 = scmp.eq.s32.totalorder %s18, 0
    %s21 = sadd.s32 %s20, 1
    %s22 = scalar_select %p19, %s20, %s21
    %p25 = pneg %p19
    %p26 = scmp.eq.s32.totalorder %s10, 1
    %p27 = por %p25, %p26
    %p28 = scmp.ne.s32.totalorder %s20, %s23
    %p29 = scmp.eq.s32.totalorder %s10, 0
    %p30 = por %p28, %p29
    %p31 = scmp.ne.s32.totalorder %s20, %s23
    %p32 = scmp.eq.s32.totalorder %s15, 1
    %p33 = por %p31, %p32
    %p34 = scmp.ne.s32.totalorder %s23, %s24
    %p35 = scmp.eq.s32.totalorder %s15, 0
    %p36 = por %p34, %p35
    %p37 = scmp.ne.s32.totalorder %s23, %s24
    %p38 = scmp.eq.s32.totalorder %s16, 1
    %p39 = por %p37, %p38
    %p41 = scmp.ne.s32.totalorder %s24, %s40
    %p42 = scmp.eq.s32.totalorder %s16, 0
    %p43 = por %p41, %p42
    %s45 = sadd.s32 %s44, 1
    %p48 = scmp.eq.s32.totalorder %s10, 1
    %p49 = scmp.ne.s32.totalorder %s44, %s46
    %p50 = scmp.eq.s32.totalorder %s10, 0
    %p51 = por %p49, %p50
    %p52 = scmp.ne.s32.totalorder %s44, %s46
    %p53 = scmp.eq.s32.totalorder %s15, 1
    %p54 = por %p52, %p53
    %p55 = scmp.ne.s32.totalorder %s46, %s47
    %p56 = scmp.eq.s32.totalorder %s15, 0
    %p57 = por %p55, %p56
    %p58 = scmp.ne.s32.totalorder %s46, %s47
    %p59 = scmp.eq.s32.totalorder %s16, 1
    %p60 = por %p58, %p59
    %p62 = scmp.ne.s32.totalorder %s47, %s61
    %p63 = scmp.eq.s32.totalorder %s16, 0
    %p64 = por %p62, %p63
    %s65 = ssub.s32 %s10, %s17
    %p66 = scmp.eq.s32.totalorder %s65, 0
    %s68 = sadd.s32 %s67, 1
    %s69 = scalar_select %p66, %s67, %s68
    %p72 = pneg %p66
    %p73 = scmp.eq.s32.totalorder %s10, 1
    %p74 = por %p72, %p73
    %p75 = scmp.ne.s32.totalorder %s67, %s70
    %p76 = scmp.eq.s32.totalorder %s10, 0
    %p77 = por %p75, %p76
    %p78 = scmp.ne.s32.totalorder %s67, %s70
    %p79 = scmp.eq.s32.totalorder %s15, 1
    %p80 = por %p78, %p79
    %p81 = scmp.ne.s32.totalorder %s70, %s71
    %p82 = scmp.eq.s32.totalorder %s15, 0
    %p83 = por %p81, %p82
    %p84 = scmp.ne.s32.totalorder %s70, %s71
    %p85 = scmp.eq.s32.totalorder %s16, 1
    %p86 = por %p84, %p85
    %p88 = scmp.ne.s32.totalorder %s71, %s87
    %p89 = scmp.eq.s32.totalorder %s16, 0
    %p90 = por %p88, %p89
    %s92 = sadd.s32 %s91, 1
    %p95 = scmp.eq.s32.totalorder %s10, 1
    %p96 = scmp.ne.s32.totalorder %s91, %s93
    %p97 = scmp.eq.s32.totalorder %s10, 0
    %p98 = por %p96, %p97
    %p99 = scmp.ne.s32.totalorder %s91, %s93
    %p100 = scmp.eq.s32.totalorder %s15, 1
    %p101 = por %p99, %p100
    %p102 = scmp.ne.s32.totalorder %s93, %s94
    %p103 = scmp.eq.s32.totalorder %s15, 0
    %p104 = por %p102, %p103
    %p105 = scmp.ne.s32.totalorder %s93, %s94
    %p106 = scmp.eq.s32.totalorder %s16, 1
    %p107 = por %p105, %p106
    %p109 = scmp.ne.s32.totalorder %s94, %s108
    %p110 = scmp.eq.s32.totalorder %s16, 0
    %p111 = por %p109, %p110
    %p112 = scmp.le.s32.totalorder 1, %s10
    %p113 = scmp.lt.s32.totalorder %s10, 3
    %p114 = pnand %p112, %p113
    %p115 = pneg %p114
    // Predicated region
    $region9: #{single_conv_forward.2} parent=5 // pred_check
      _
    $region10: #{single_conv_forward.2} parent=5 // pred_check_branch
      %117 = sbr.rel (%p114) target = $region12
    $region11: #{single_conv_forward.2} parent=5 // pred_region
      %s118 = ssub.s32 %s10, 1
      // Predicated region
      $region13: #{single_conv_forward.2} parent=11 // pred_check
        %p119 = pneg %p57
      $region14: #{single_conv_forward.2} parent=11 // pred_check_branch
        %121 = sbr.rel (%p119) target = $region16
      $region15: #{single_conv_forward.2} parent=11 // pred_region
        _
      $region16: #{single_conv_forward.2} parent=11 // pred_fallthru
        _
    $region12: #{single_conv_forward.2} parent=5 // pred_fallthru
      _
    %p122 = scmp.lt.s32.totalorder %s10, 2
    // Predicated region
    $region17: #{single_conv_forward.2} parent=5 // pred_check
      %p123 = pneg %p122
    $region18: #{single_conv_forward.2} parent=5 // pred_check_branch
      %125 = sbr.rel (%p123) target = $region20
    $region19: #{single_conv_forward.2} parent=5 // pred_region
      // Predicated region
      $region21: #{single_conv_forward.2} parent=19 // pred_check
        %p126 = pneg %p30
      $region22: #{single_conv_forward.2} parent=19 // pred_check_branch
        %128 = sbr.rel (%p126) target = $region24
      $region23: #{single_conv_forward.2} parent=19 // pred_region
        %p129 = scmp.lt.s32.totalorder %s10, 1
        %s130 = scalar_select %p129, %s10, 1
        %s131 = smul.addr %s130, 32
        %s132 = smul.addr %s131, 8
        %s133 = scalar_lea.vmem %s0, %s132
      $region24: #{single_conv_forward.2} parent=19 // pred_fallthru
        _
    $region20: #{single_conv_forward.2} parent=5 // pred_fallthru
      _
    %p134 = scmp.le.s32.totalorder 1, %s10
    %p135 = scmp.lt.s32.totalorder %s10, 3
    %p136 = pnand %p134, %p135
    %p137 = pneg %p136
    // Predicated region
    $region25: #{single_conv_forward.2} parent=5 // pred_check
      _
    $region26: #{single_conv_forward.2} parent=5 // pred_check_branch
      %139 = sbr.rel (%p136) target = $region28
    $region27: #{single_conv_forward.2} parent=5 // pred_region
      %s140 = ssub.s32 %s10, 1
      %p141 = scmp.lt.s32.totalorder %s15, 1
      %s142 = scalar_select %p141, %s15, 1
      %s143 = smul.addr %s142, 32
      %s144 = smul.addr %s143, 8
      %s145 = scalar_lea.vmem %s0, %s144
      %p146 = pneg %p36
      %p147 = pneg %p33
      %p148 = pneg %p57
      %p149 = pneg %p54
      %p150 = pneg %p83
      %p151 = pneg %p80
      %s152 = smul.u32 32, %s15
      %p153 = scmp.lt.s32.totalorder %s152, 63
      %s154 = scalar_select %p153, %s152, 63
      %s155 = smul.addr %s154, 8
      %s156 = scalar_lea.vmem %s2, %s155
      %p157 = pneg %p104
      %p158 = pneg %p101
      %p159 = scmp.lt.s32.totalorder %s15, 1
      %s160 = scalar_select %p159, %s15, 1
      %s161 = smul.addr %s160, 32
      %s162 = smul.addr %s161, 8
      %s163 = scalar_lea.vmem %s0, %s162
      %s164 = smul.u32 32, %s15
      %p165 = scmp.lt.s32.totalorder %s164, 63
      %s166 = scalar_select %p165, %s164, 63
      %s167 = smul.addr %s166, 8
      %s168 = scalar_lea.vmem %s2, %s167
      %s169 = smul.u32 32, %s15
      %p171 = scmp.eq.s32.totalorder %s15, 0
      // Predicated region
      $region29: #{single_conv_forward.2} parent=27 // pred_check
        %p172 = pneg %p171
      $region30: #{single_conv_forward.2} parent=27 // pred_check_branch
        %174 = sbr.rel (%p172) target = $region32
      $region31: #{single_conv_forward.2} parent=27 // pred_region
        %175 = vst [vmem:[%s3] sm:$0x3] 0.0
        %vm176 = vcmask 31744
        %177 = vst.msk [vmem:[#allocation2] sm:$0xff] %vm176, 0.0
        %178 = vst.msk [vmem:[#allocation2 + $0x8] sm:$0xff] %vm176, 0.0
        %vm179 = vcmask 25600
        %180 = vst.msk [vmem:[#allocation2 + $0x10] sm:$0x3] %vm179, 0.0
        %s181 = scalar_lea.vmem [#allocation2], 408
        %182 = vst.msk [vmem:[%s181] sm:$0xff] %vm176, 0.0
        %183 = vst.msk [vmem:[%s181 + $0x8] sm:$0xff] %vm176, 0.0
        %184 = vst.msk [vmem:[%s181 + $0x10] sm:$0x3] %vm179, 0.0
        %vm185 = vcmask 24576
        %186 = vst.msk [vmem:[#allocation2] sm:$0x1] %vm185, 0.0
        %187 = vst.msk [vmem:[#allocation2 + $0x18] sm:$0x1] %vm185, 0.0
        %188 = vst.msk [vmem:[#allocation2 + $0x30] sm:$0x1] %vm185, 0.0
        %189 = vst.msk [vmem:[#allocation2 + $0x48] sm:$0x1] %vm185, 0.0
        %190 = vst.msk [vmem:[#allocation2 + $0x60] sm:$0x1] %vm185, 0.0
        %191 = vst.msk [vmem:[#allocation2 + $0x78] sm:$0x1] %vm185, 0.0
        %192 = vst.msk [vmem:[#allocation2 + $0x90] sm:$0x1] %vm185, 0.0
        %193 = vst.msk [vmem:[#allocation2 + $0xa8] sm:$0x1] %vm185, 0.0
        %194 = vst.msk [vmem:[#allocation2 + $0xc0] sm:$0x1] %vm185, 0.0
        %195 = vst.msk [vmem:[#allocation2 + $0xd8] sm:$0x1] %vm185, 0.0
        %196 = vst.msk [vmem:[#allocation2 + $0xf0] sm:$0x1] %vm185, 0.0
        %197 = vst.msk [vmem:[#allocation2 + $0x108] sm:$0x1] %vm185, 0.0
        %198 = vst.msk [vmem:[#allocation2 + $0x120] sm:$0x1] %vm185, 0.0
        %199 = vst.msk [vmem:[#allocation2 + $0x138] sm:$0x1] %vm185, 0.0
        %200 = vst.msk [vmem:[#allocation2 + $0x150] sm:$0x1] %vm185, 0.0
        %201 = vst.msk [vmem:[#allocation2 + $0x168] sm:$0x1] %vm185, 0.0
        %202 = vst.msk [vmem:[#allocation2 + $0x180] sm:$0x1] %vm185, 0.0
        %203 = vst.msk [vmem:[#allocation2 + $0x198] sm:$0x1] %vm185, 0.0
        %204 = vst.msk [vmem:[#allocation2 + $0x11] sm:$0x1] %vm185, 0.0
        %205 = vst.msk [vmem:[#allocation2 + $0x29] sm:$0x1] %vm185, 0.0
        %206 = vst.msk [vmem:[#allocation2 + $0x41] sm:$0x1] %vm185, 0.0
        %207 = vst.msk [vmem:[#allocation2 + $0x59] sm:$0x1] %vm185, 0.0
        %208 = vst.msk [vmem:[#allocation2 + $0x71] sm:$0x1] %vm185, 0.0
        %209 = vst.msk [vmem:[#allocation2 + $0x89] sm:$0x1] %vm185, 0.0
        %210 = vst.msk [vmem:[#allocation2 + $0xa1] sm:$0x1] %vm185, 0.0
        %211 = vst.msk [vmem:[#allocation2 + $0xb9] sm:$0x1] %vm185, 0.0
        %212 = vst.msk [vmem:[#allocation2 + $0xd1] sm:$0x1] %vm185, 0.0
        %213 = vst.msk [vmem:[#allocation2 + $0xe9] sm:$0x1] %vm185, 0.0
        %214 = vst.msk [vmem:[#allocation2 + $0x101] sm:$0x1] %vm185, 0.0
        %215 = vst.msk [vmem:[#allocation2 + $0x119] sm:$0x1] %vm185, 0.0
        %216 = vst.msk [vmem:[#allocation2 + $0x131] sm:$0x1] %vm185, 0.0
        %217 = vst.msk [vmem:[#allocation2 + $0x149] sm:$0x1] %vm185, 0.0
        %218 = vst.msk [vmem:[#allocation2 + $0x161] sm:$0x1] %vm185, 0.0
        %219 = vst.msk [vmem:[#allocation2 + $0x179] sm:$0x1] %vm185, 0.0
        %220 = vst.msk [vmem:[#allocation2 + $0x191] sm:$0x1] %vm185, 0.0
        %221 = vst.msk [vmem:[#allocation2 + $0x1a9] sm:$0x1] %vm185, 0.0
      $region32: #{single_conv_forward.2} parent=27 // pred_fallthru
        _
      %v222 = vld [vmem:[%s163] sm:$0xff]
      %v223 = vld [vmem:[%s163 + $0x8] sm:$0xff]
      %v224 = vld [vmem:[%s163 + $0x10] sm:$0xff]
      %v225 = vld [vmem:[%s163 + $0x18] sm:$0xff]
      %v226 = vld [vmem:[%s163 + $0x20] sm:$0xff]
      %v227 = vld [vmem:[%s163 + $0x28] sm:$0xff]
      %v228 = vld [vmem:[%s163 + $0x30] sm:$0xff]
      %v229 = vld [vmem:[%s163 + $0x38] sm:$0xff]
      %v230 = vld [vmem:[%s163 + $0x40] sm:$0xff]
      %v231 = vld [vmem:[%s163 + $0x48] sm:$0xff]
      %v232 = vld [vmem:[%s163 + $0x50] sm:$0xff]
      %v233 = vld [vmem:[%s163 + $0x58] sm:$0xff]
      %v234 = vld [vmem:[%s163 + $0x60] sm:$0xff]
      %v235 = vld [vmem:[%s163 + $0x68] sm:$0xff]
      %v236 = vld [vmem:[%s163 + $0x70] sm:$0xff]
      %v237 = vld [vmem:[%s163 + $0x78] sm:$0xff]
      %v238 = vld [vmem:[%s163 + $0x80] sm:$0xff]
      %v239 = vld [vmem:[%s163 + $0x88] sm:$0xff]
      %v240 = vld [vmem:[%s163 + $0x90] sm:$0xff]
      %v241 = vld [vmem:[%s163 + $0x98] sm:$0xff]
      %v242 = vld [vmem:[%s163 + $0xa0] sm:$0xff]
      %v243 = vld [vmem:[%s163 + $0xa8] sm:$0xff]
      %v244 = vld [vmem:[%s163 + $0xb0] sm:$0xff]
      %v245 = vld [vmem:[%s163 + $0xb8] sm:$0xff]
      %v246 = vld [vmem:[%s163 + $0xc0] sm:$0xff]
      %v247 = vld [vmem:[%s163 + $0xc8] sm:$0xff]
      %v248 = vld [vmem:[%s163 + $0xd0] sm:$0xff]
      %v249 = vld [vmem:[%s163 + $0xd8] sm:$0xff]
      %v250 = vld [vmem:[%s163 + $0xe0] sm:$0xff]
      %v251 = vld [vmem:[%s163 + $0xe8] sm:$0xff]
      %v252 = vld [vmem:[%s163 + $0xf0] sm:$0xff]
      %v253 = vld [vmem:[%s163 + $0xf8] sm:$0xff]
      %s254 = scalar_lea.vmem [#allocation2], 24
      %vm255 = vcmask 31744
      %256 = vst.msk [vmem:[%s254 + $0x1] sm:$0xff] %vm255, %v222
      %257 = vst.msk [vmem:[%s254 + $0x9] sm:$0xff] %vm255, %v223
      %258 = vst.msk [vmem:[%s254 + $0x19] sm:$0xff] %vm255, %v224
      %259 = vst.msk [vmem:[%s254 + $0x21] sm:$0xff] %vm255, %v225
      %260 = vst.msk [vmem:[%s254 + $0x31] sm:$0xff] %vm255, %v226
      %261 = vst.msk [vmem:[%s254 + $0x39] sm:$0xff] %vm255, %v227
      %262 = vst.msk [vmem:[%s254 + $0x49] sm:$0xff] %vm255, %v228
      %263 = vst.msk [vmem:[%s254 + $0x51] sm:$0xff] %vm255, %v229
      %264 = vst.msk [vmem:[%s254 + $0x61] sm:$0xff] %vm255, %v230
      %265 = vst.msk [vmem:[%s254 + $0x69] sm:$0xff] %vm255, %v231
      %266 = vst.msk [vmem:[%s254 + $0x79] sm:$0xff] %vm255, %v232
      %267 = vst.msk [vmem:[%s254 + $0x81] sm:$0xff] %vm255, %v233
      %268 = vst.msk [vmem:[%s254 + $0x91] sm:$0xff] %vm255, %v234
      %269 = vst.msk [vmem:[%s254 + $0x99] sm:$0xff] %vm255, %v235
      %270 = vst.msk [vmem:[%s254 + $0xa9] sm:$0xff] %vm255, %v236
      %271 = vst.msk [vmem:[%s254 + $0xb1] sm:$0xff] %vm255, %v237
      %272 = vst.msk [vmem:[%s254 + $0xc1] sm:$0xff] %vm255, %v238
      %273 = vst.msk [vmem:[%s254 + $0xc9] sm:$0xff] %vm255, %v239
      %274 = vst.msk [vmem:[%s254 + $0xd9] sm:$0xff] %vm255, %v240
      %275 = vst.msk [vmem:[%s254 + $0xe1] sm:$0xff] %vm255, %v241
      %276 = vst.msk [vmem:[%s254 + $0xf1] sm:$0xff] %vm255, %v242
      %277 = vst.msk [vmem:[%s254 + $0xf9] sm:$0xff] %vm255, %v243
      %278 = vst.msk [vmem:[%s254 + $0x109] sm:$0xff] %vm255, %v244
      %279 = vst.msk [vmem:[%s254 + $0x111] sm:$0xff] %vm255, %v245
      %280 = vst.msk [vmem:[%s254 + $0x121] sm:$0xff] %vm255, %v246
      %281 = vst.msk [vmem:[%s254 + $0x129] sm:$0xff] %vm255, %v247
      %282 = vst.msk [vmem:[%s254 + $0x139] sm:$0xff] %vm255, %v248
      %283 = vst.msk [vmem:[%s254 + $0x141] sm:$0xff] %vm255, %v249
      %284 = vst.msk [vmem:[%s254 + $0x151] sm:$0xff] %vm255, %v250
      %285 = vst.msk [vmem:[%s254 + $0x159] sm:$0xff] %vm255, %v251
      %286 = vst.msk [vmem:[%s254 + $0x169] sm:$0xff] %vm255, %v252
      %287 = vst.msk [vmem:[%s254 + $0x171] sm:$0xff] %vm255, %v253
      %v288 = vld [vmem:[#allocation2] sm:$0xff]
      %v289 = vld [vmem:[#allocation2 + $0x8] sm:$0xff]
      %v290 = vld [vmem:[#allocation2 + $0x10] sm:$0x3]
      %v291 = vld [vmem:[#allocation2 + $0x18] sm:$0xff]
      %v292 = vld [vmem:[#allocation2 + $0x20] sm:$0xff]
      %v293 = vld [vmem:[#allocation2 + $0x28] sm:$0x3]
      %v294 = vld [vmem:[#allocation2 + $0x30] sm:$0xff]
      %v295 = vld [vmem:[#allocation2 + $0x38] sm:$0xff]
      %v296 = vld [vmem:[#allocation2 + $0x40] sm:$0x3]
      %v297 = vld [vmem:[#allocation2 + $0x48] sm:$0xff]
      %v298 = vld [vmem:[#allocation2 + $0x50] sm:$0xff]
      %v299 = vld [vmem:[#allocation2 + $0x58] sm:$0x3]
      %v300 = vld [vmem:[#allocation2 + $0x60] sm:$0xff]
      %v301 = vld [vmem:[#allocation2 + $0x68] sm:$0xff]
      %v302 = vld [vmem:[#allocation2 + $0x70] sm:$0x3]
      %v303 = vld [vmem:[#allocation2 + $0x78] sm:$0xff]
      %v304 = vld [vmem:[#allocation2 + $0x80] sm:$0xff]
      %v305 = vld [vmem:[#allocation2 + $0x88] sm:$0x3]
      %v306 = vld [vmem:[#allocation2 + $0x90] sm:$0xff]
      %v307 = vld [vmem:[#allocation2 + $0x98] sm:$0xff]
      %v308 = vld [vmem:[#allocation2 + $0xa0] sm:$0x3]
      %v309 = vld [vmem:[#allocation2 + $0xa8] sm:$0xff]
      %v310 = vld [vmem:[#allocation2 + $0xb0] sm:$0xff]
      %v311 = vld [vmem:[#allocation2 + $0xb8] sm:$0x3]
      %v312 = vld [vmem:[#allocation2 + $0xc0] sm:$0xff]
      %v313 = vld [vmem:[#allocation2 + $0xc8] sm:$0xff]
      %v314 = vld [vmem:[#allocation2 + $0xd0] sm:$0x3]
      %v315 = vld [vmem:[#allocation2 + $0xd8] sm:$0xff]
      %v316 = vld [vmem:[#allocation2 + $0xe0] sm:$0xff]
      %v317 = vld [vmem:[#allocation2 + $0xe8] sm:$0x3]
      %v318 = vld [vmem:[#allocation2 + $0xf0] sm:$0xff]
      %v319 = vld [vmem:[#allocation2 + $0xf8] sm:$0xff]
      %v320 = vld [vmem:[#allocation2 + $0x100] sm:$0x3]
      %v321 = vld [vmem:[#allocation2 + $0x108] sm:$0xff]
      %v322 = vld [vmem:[#allocation2 + $0x110] sm:$0xff]
      %v323 = vld [vmem:[#allocation2 + $0x118] sm:$0x3]
      %v324 = vld [vmem:[#allocation2 + $0x120] sm:$0xff]
      %v325 = vld [vmem:[#allocation2 + $0x128] sm:$0xff]
      %v326 = vld [vmem:[#allocation2 + $0x130] sm:$0x3]
      %v327 = vld [vmem:[#allocation2 + $0x138] sm:$0xff]
      %v328 = vld [vmem:[#allocation2 + $0x140] sm:$0xff]
      %v329 = vld [vmem:[#allocation2 + $0x148] sm:$0x3]
      %v330 = vld [vmem:[#allocation2 + $0x150] sm:$0xff]
      %v331 = vld [vmem:[#allocation2 + $0x158] sm:$0xff]
      %v332 = vld [vmem:[#allocation2 + $0x160] sm:$0x3]
      %v333 = vld [vmem:[#allocation2 + $0x168] sm:$0xff]
      %v334 = vld [vmem:[#allocation2 + $0x170] sm:$0xff]
      %v335 = vld [vmem:[#allocation2 + $0x178] sm:$0x3]
      %v336 = vld [vmem:[#allocation2 + $0x180] sm:$0xff]
      %v337 = vld [vmem:[#allocation2 + $0x188] sm:$0xff]
      %v338 = vld [vmem:[#allocation2 + $0x190] sm:$0x3]
      %v339 = vld [vmem:[#allocation2 + $0x198] sm:$0xff]
      %v340 = vld [vmem:[#allocation2 + $0x1a0] sm:$0xff]
      %v341 = vld [vmem:[#allocation2 + $0x1a8] sm:$0x3]
      %v342 = vpack.c.bf16 %v289, %v288
      %v343 = vpack.c.bf16 %v292, %v291
      %v344 = vpack.c.bf16 %v295, %v294
      %v345 = vpack.c.bf16 %v298, %v297
      %v346 = vpack.c.bf16 %v301, %v300
      %v347 = vpack.c.bf16 %v304, %v303
      %v348 = vpack.c.bf16 %v307, %v306
      %v349 = vpack.c.bf16 %v310, %v309
      %v350 = vpack.c.bf16 %v313, %v312
      %v351 = vpack.c.bf16 %v316, %v315
      %v352 = vpack.c.bf16 %v319, %v318
      %v353 = vpack.c.bf16 %v322, %v321
      %v354 = vpack.c.bf16 %v325, %v324
      %v355 = vpack.c.bf16 %v328, %v327
      %v356 = vpack.c.bf16 %v331, %v330
      %v357 = vpack.c.bf16 %v334, %v333
      %v374 = vunpack.c.l.b16 %v342
      %v375 = vunpack.c.h.b16 %v342
      %v376 = vunpack.c.l.b16 %v343
      %v377 = vunpack.c.h.b16 %v343
      %v378 = vunpack.c.l.b16 %v344
      %v379 = vunpack.c.h.b16 %v344
      %v380 = vunpack.c.l.b16 %v345
      %v381 = vunpack.c.h.b16 %v345
      %v382 = vunpack.c.l.b16 %v346
      %v383 = vunpack.c.h.b16 %v346
      %v384 = vunpack.c.l.b16 %v347
      %v385 = vunpack.c.h.b16 %v347
      %v386 = vunpack.c.l.b16 %v348
      %v387 = vunpack.c.h.b16 %v348
      %v388 = vunpack.c.l.b16 %v349
      %v389 = vunpack.c.h.b16 %v349
      %v390 = vunpack.c.l.b16 %v350
      %v391 = vunpack.c.h.b16 %v350
      %v392 = vunpack.c.l.b16 %v351
      %v393 = vunpack.c.h.b16 %v351
      %v394 = vunpack.c.l.b16 %v352
      %v395 = vunpack.c.h.b16 %v352
      %v396 = vunpack.c.l.b16 %v353
      %v397 = vunpack.c.h.b16 %v353
      %v398 = vunpack.c.l.b16 %v354
      %v399 = vunpack.c.h.b16 %v354
      %v400 = vunpack.c.l.b16 %v355
      %v401 = vunpack.c.h.b16 %v355
      %v402 = vunpack.c.l.b16 %v356
      %v403 = vunpack.c.h.b16 %v356
      %v404 = vunpack.c.l.b16 %v357
      %v405 = vunpack.c.h.b16 %v357
      %v406 = vpack.c.b16 %v374, %v374
      %v407 = vpack.c.b16 %v375, %v375
      %v408 = vpack.c.b16 %v376, %v376
      %v409 = vpack.c.b16 %v377, %v377
      %v410 = vpack.c.b16 %v378, %v378
      %v411 = vpack.c.b16 %v379, %v379
      %v412 = vpack.c.b16 %v380, %v380
      %v413 = vpack.c.b16 %v381, %v381
      %v414 = vpack.c.b16 %v382, %v382
      %v415 = vpack.c.b16 %v383, %v383
      %v416 = vpack.c.b16 %v384, %v384
      %v417 = vpack.c.b16 %v385, %v385
      %v418 = vpack.c.b16 %v386, %v386
      %v419 = vpack.c.b16 %v387, %v387
      %v420 = vpack.c.b16 %v388, %v388
      %v421 = vpack.c.b16 %v389, %v389
      %v422 = vpack.c.b16 %v390, %v390
      %v423 = vpack.c.b16 %v391, %v391
      %v424 = vpack.c.b16 %v392, %v392
      %v425 = vpack.c.b16 %v393, %v393
      %v426 = vpack.c.b16 %v394, %v394
      %v427 = vpack.c.b16 %v395, %v395
      %v428 = vpack.c.b16 %v396, %v396
      %v429 = vpack.c.b16 %v397, %v397
      %v430 = vpack.c.b16 %v398, %v398
      %v431 = vpack.c.b16 %v399, %v399
      %v432 = vpack.c.b16 %v400, %v400
      %v433 = vpack.c.b16 %v401, %v401
      %v434 = vpack.c.b16 %v402, %v402
      %v435 = vpack.c.b16 %v403, %v403
      %v436 = vpack.c.b16 %v404, %v404
      %v437 = vpack.c.b16 %v405, %v405
      %vm470 = vcmask 27648
      %471 = vst.msk [vmem:[#allocation3] sm:$0xf] %vm470, %v406
      %472 = vst.msk [vmem:[#allocation3 + $0x4] sm:$0xf] %vm470, %v407
      %473 = vst.msk [vmem:[#allocation3 + $0x8] sm:$0xf] %vm470, %v408
      %474 = vst.msk [vmem:[#allocation3 + $0xc] sm:$0xf] %vm470, %v409
      %475 = vst.msk [vmem:[#allocation3 + $0x10] sm:$0xf] %vm470, %v410
      %476 = vst.msk [vmem:[#allocation3 + $0x14] sm:$0xf] %vm470, %v411
      %477 = vst.msk [vmem:[#allocation3 + $0x18] sm:$0xf] %vm470, %v412
      %478 = vst.msk [vmem:[#allocation3 + $0x1c] sm:$0xf] %vm470, %v413
      %479 = vst.msk [vmem:[#allocation3 + $0x20] sm:$0xf] %vm470, %v414
      %480 = vst.msk [vmem:[#allocation3 + $0x24] sm:$0xf] %vm470, %v415
      %481 = vst.msk [vmem:[#allocation3 + $0x28] sm:$0xf] %vm470, %v416
      %482 = vst.msk [vmem:[#allocation3 + $0x2c] sm:$0xf] %vm470, %v417
      %483 = vst.msk [vmem:[#allocation3 + $0x30] sm:$0xf] %vm470, %v418
      %484 = vst.msk [vmem:[#allocation3 + $0x34] sm:$0xf] %vm470, %v419
      %485 = vst.msk [vmem:[#allocation3 + $0x38] sm:$0xf] %vm470, %v420
      %486 = vst.msk [vmem:[#allocation3 + $0x3c] sm:$0xf] %vm470, %v421
      %487 = vst.msk [vmem:[#allocation3 + $0x40] sm:$0xf] %vm470, %v422
      %488 = vst.msk [vmem:[#allocation3 + $0x44] sm:$0xf] %vm470, %v423
      %489 = vst.msk [vmem:[#allocation3 + $0x48] sm:$0xf] %vm470, %v424
      %490 = vst.msk [vmem:[#allocation3 + $0x4c] sm:$0xf] %vm470, %v425
      %491 = vst.msk [vmem:[#allocation3 + $0x50] sm:$0xf] %vm470, %v426
      %492 = vst.msk [vmem:[#allocation3 + $0x54] sm:$0xf] %vm470, %v427
      %493 = vst.msk [vmem:[#allocation3 + $0x58] sm:$0xf] %vm470, %v428
      %494 = vst.msk [vmem:[#allocation3 + $0x5c] sm:$0xf] %vm470, %v429
      %495 = vst.msk [vmem:[#allocation3 + $0x60] sm:$0xf] %vm470, %v430
      %496 = vst.msk [vmem:[#allocation3 + $0x64] sm:$0xf] %vm470, %v431
      %497 = vst.msk [vmem:[#allocation3 + $0x68] sm:$0xf] %vm470, %v432
      %498 = vst.msk [vmem:[#allocation3 + $0x6c] sm:$0xf] %vm470, %v433
      %499 = vst.msk [vmem:[#allocation3 + $0x70] sm:$0xf] %vm470, %v434
      %500 = vst.msk [vmem:[#allocation3 + $0x74] sm:$0xf] %vm470, %v435
      %501 = vst.msk [vmem:[#allocation3 + $0x78] sm:$0xf] %vm470, %v436
      %502 = vst.msk [vmem:[#allocation3 + $0x7c] sm:$0xf] %vm470, %v437
      %vm551 = vcmask 1046528
      %v552 = vrot.slane %v288, 1
      %v553 = vrot.slane %v289, 1
      %v554 = vsel %vm551, %v552, %v553
      %v555 = vrot.slane %v290, 1
      %v556 = vsel %vm551, %v553, %v555
      %v557 = vrot.slane %v291, 1
      %v558 = vrot.slane %v292, 1
      %v559 = vsel %vm551, %v557, %v558
      %v560 = vrot.slane %v293, 1
      %v561 = vsel %vm551, %v558, %v560
      %v562 = vrot.slane %v294, 1
      %v563 = vrot.slane %v295, 1
      %v564 = vsel %vm551, %v562, %v563
      %v565 = vrot.slane %v296, 1
      %v566 = vsel %vm551, %v563, %v565
      %v567 = vrot.slane %v297, 1
      %v568 = vrot.slane %v298, 1
      %v569 = vsel %vm551, %v567, %v568
      %v570 = vrot.slane %v299, 1
      %v571 = vsel %vm551, %v568, %v570
      %v572 = vrot.slane %v300, 1
      %v573 = vrot.slane %v301, 1
      %v574 = vsel %vm551, %v572, %v573
      %v575 = vrot.slane %v302, 1
      %v576 = vsel %vm551, %v573, %v575
      %v577 = vrot.slane %v303, 1
      %v578 = vrot.slane %v304, 1
      %v579 = vsel %vm551, %v577, %v578
      %v580 = vrot.slane %v305, 1
      %v581 = vsel %vm551, %v578, %v580
      %v582 = vrot.slane %v306, 1
      %v583 = vrot.slane %v307, 1
      %v584 = vsel %vm551, %v582, %v583
      %v585 = vrot.slane %v308, 1
      %v586 = vsel %vm551, %v583, %v585
      %v587 = vrot.slane %v309, 1
      %v588 = vrot.slane %v310, 1
      %v589 = vsel %vm551, %v587, %v588
      %v590 = vrot.slane %v311, 1
      %v591 = vsel %vm551, %v588, %v590
      %v592 = vrot.slane %v312, 1
      %v593 = vrot.slane %v313, 1
      %v594 = vsel %vm551, %v592, %v593
      %v595 = vrot.slane %v314, 1
      %v596 = vsel %vm551, %v593, %v595
      %v597 = vrot.slane %v315, 1
      %v598 = vrot.slane %v316, 1
      %v599 = vsel %vm551, %v597, %v598
      %v600 = vrot.slane %v317, 1
      %v601 = vsel %vm551, %v598, %v600
      %v602 = vrot.slane %v318, 1
      %v603 = vrot.slane %v319, 1
      %v604 = vsel %vm551, %v602, %v603
      %v605 = vrot.slane %v320, 1
      %v606 = vsel %vm551, %v603, %v605
      %v607 = vrot.slane %v321, 1
      %v608 = vrot.slane %v322, 1
      %v609 = vsel %vm551, %v607, %v608
      %v610 = vrot.slane %v323, 1
      %v611 = vsel %vm551, %v608, %v610
      %v612 = vrot.slane %v324, 1
      %v613 = vrot.slane %v325, 1
      %v614 = vsel %vm551, %v612, %v613
      %v615 = vrot.slane %v326, 1
      %v616 = vsel %vm551, %v613, %v615
      %v617 = vrot.slane %v327, 1
      %v618 = vrot.slane %v328, 1
      %v619 = vsel %vm551, %v617, %v618
      %v620 = vrot.slane %v329, 1
      %v621 = vsel %vm551, %v618, %v620
      %v622 = vrot.slane %v330, 1
      %v623 = vrot.slane %v331, 1
      %v624 = vsel %vm551, %v622, %v623
      %v625 = vrot.slane %v332, 1
      %v626 = vsel %vm551, %v623, %v625
      %v627 = vrot.slane %v333, 1
      %v628 = vrot.slane %v334, 1
      %v629 = vsel %vm551, %v627, %v628
      %v630 = vrot.slane %v335, 1
      %v631 = vsel %vm551, %v628, %v630
      %v664 = vpack.c.bf16 %v556, %v554
      %v665 = vpack.c.bf16 %v561, %v559
      %v666 = vpack.c.bf16 %v566, %v564
      %v667 = vpack.c.bf16 %v571, %v569
      %v668 = vpack.c.bf16 %v576, %v574
      %v669 = vpack.c.bf16 %v581, %v579
      %v670 = vpack.c.bf16 %v586, %v584
      %v671 = vpack.c.bf16 %v591, %v589
      %v672 = vpack.c.bf16 %v596, %v594
      %v673 = vpack.c.bf16 %v601, %v599
      %v674 = vpack.c.bf16 %v606, %v604
      %v675 = vpack.c.bf16 %v611, %v609
      %v676 = vpack.c.bf16 %v616, %v614
      %v677 = vpack.c.bf16 %v621, %v619
      %v678 = vpack.c.bf16 %v626, %v624
      %v679 = vpack.c.bf16 %v631, %v629
      %v696 = vunpack.c.l.b16 %v664
      %v697 = vunpack.c.h.b16 %v664
      %v698 = vunpack.c.l.b16 %v665
      %v699 = vunpack.c.h.b16 %v665
      %v700 = vunpack.c.l.b16 %v666
      %v701 = vunpack.c.h.b16 %v666
      %v702 = vunpack.c.l.b16 %v667
      %v703 = vunpack.c.h.b16 %v667
      %v704 = vunpack.c.l.b16 %v668
      %v705 = vunpack.c.h.b16 %v668
      %v706 = vunpack.c.l.b16 %v669
      %v707 = vunpack.c.h.b16 %v669
      %v708 = vunpack.c.l.b16 %v670
      %v709 = vunpack.c.h.b16 %v670
      %v710 = vunpack.c.l.b16 %v671
      %v711 = vunpack.c.h.b16 %v671
      %v712 = vunpack.c.l.b16 %v672
      %v713 = vunpack.c.h.b16 %v672
      %v714 = vunpack.c.l.b16 %v673
      %v715 = vunpack.c.h.b16 %v673
      %v716 = vunpack.c.l.b16 %v674
      %v717 = vunpack.c.h.b16 %v674
      %v718 = vunpack.c.l.b16 %v675
      %v719 = vunpack.c.h.b16 %v675
      %v720 = vunpack.c.l.b16 %v676
      %v721 = vunpack.c.h.b16 %v676
      %v722 = vunpack.c.l.b16 %v677
      %v723 = vunpack.c.h.b16 %v677
      %v724 = vunpack.c.l.b16 %v678
      %v725 = vunpack.c.h.b16 %v678
      %v726 = vunpack.c.l.b16 %v679
      %v727 = vunpack.c.h.b16 %v679
      %v728 = vpack.c.b16 %v696, %v696
      %v729 = vpack.c.b16 %v697, %v697
      %v730 = vpack.c.b16 %v698, %v698
      %v731 = vpack.c.b16 %v699, %v699
      %v732 = vpack.c.b16 %v700, %v700
      %v733 = vpack.c.b16 %v701, %v701
      %v734 = vpack.c.b16 %v702, %v702
      %v735 = vpack.c.b16 %v703, %v703
      %v736 = vpack.c.b16 %v704, %v704
      %v737 = vpack.c.b16 %v705, %v705
      %v738 = vpack.c.b16 %v706, %v706
      %v739 = vpack.c.b16 %v707, %v707
      %v740 = vpack.c.b16 %v708, %v708
      %v741 = vpack.c.b16 %v709, %v709
      %v742 = vpack.c.b16 %v710, %v710
      %v743 = vpack.c.b16 %v711, %v711
      %v744 = vpack.c.b16 %v712, %v712
      %v745 = vpack.c.b16 %v713, %v713
      %v746 = vpack.c.b16 %v714, %v714
      %v747 = vpack.c.b16 %v715, %v715
      %v748 = vpack.c.b16 %v716, %v716
      %v749 = vpack.c.b16 %v717, %v717
      %v750 = vpack.c.b16 %v718, %v718
      %v751 = vpack.c.b16 %v719, %v719
      %v752 = vpack.c.b16 %v720, %v720
      %v753 = vpack.c.b16 %v721, %v721
      %v754 = vpack.c.b16 %v722, %v722
      %v755 = vpack.c.b16 %v723, %v723
      %v756 = vpack.c.b16 %v724, %v724
      %v757 = vpack.c.b16 %v725, %v725
      %v758 = vpack.c.b16 %v726, %v726
      %v759 = vpack.c.b16 %v727, %v727
      %760 = vrot.lane.b32.xlu0 %v728, 4
      %v761 = vpop.permute.xlu0 %760
      %762 = vrot.lane.b32.xlu0 %v729, 4
      %v763 = vpop.permute.xlu0 %762
      %764 = vrot.lane.b32.xlu0 %v730, 4
      %v765 = vpop.permute.xlu0 %764
      %766 = vrot.lane.b32.xlu0 %v731, 4
      %v767 = vpop.permute.xlu0 %766
      %768 = vrot.lane.b32.xlu0 %v732, 4
      %v769 = vpop.permute.xlu0 %768
      %770 = vrot.lane.b32.xlu0 %v733, 4
      %v771 = vpop.permute.xlu0 %770
      %772 = vrot.lane.b32.xlu0 %v734, 4
      %v773 = vpop.permute.xlu0 %772
      %774 = vrot.lane.b32.xlu0 %v735, 4
      %v775 = vpop.permute.xlu0 %774
      %776 = vrot.lane.b32.xlu0 %v736, 4
      %v777 = vpop.permute.xlu0 %776
      %778 = vrot.lane.b32.xlu0 %v737, 4
      %v779 = vpop.permute.xlu0 %778
      %780 = vrot.lane.b32.xlu0 %v738, 4
      %v781 = vpop.permute.xlu0 %780
      %782 = vrot.lane.b32.xlu0 %v739, 4
      %v783 = vpop.permute.xlu0 %782
      %784 = vrot.lane.b32.xlu0 %v740, 4
      %v785 = vpop.permute.xlu0 %784
      %786 = vrot.lane.b32.xlu0 %v741, 4
      %v787 = vpop.permute.xlu0 %786
      %788 = vrot.lane.b32.xlu0 %v742, 4
      %v789 = vpop.permute.xlu0 %788
      %790 = vrot.lane.b32.xlu0 %v743, 4
      %v791 = vpop.permute.xlu0 %790
      %792 = vrot.lane.b32.xlu0 %v744, 4
      %v793 = vpop.permute.xlu0 %792
      %794 = vrot.lane.b32.xlu0 %v745, 4
      %v795 = vpop.permute.xlu0 %794
      %796 = vrot.lane.b32.xlu0 %v746, 4
      %v797 = vpop.permute.xlu0 %796
      %798 = vrot.lane.b32.xlu0 %v747, 4
      %v799 = vpop.permute.xlu0 %798
      %800 = vrot.lane.b32.xlu0 %v748, 4
      %v801 = vpop.permute.xlu0 %800
      %802 = vrot.lane.b32.xlu0 %v749, 4
      %v803 = vpop.permute.xlu0 %802
      %804 = vrot.lane.b32.xlu0 %v750, 4
      %v805 = vpop.permute.xlu0 %804
      %806 = vrot.lane.b32.xlu0 %v751, 4
      %v807 = vpop.permute.xlu0 %806
      %808 = vrot.lane.b32.xlu0 %v752, 4
      %v809 = vpop.permute.xlu0 %808
      %810 = vrot.lane.b32.xlu0 %v753, 4
      %v811 = vpop.permute.xlu0 %810
      %812 = vrot.lane.b32.xlu0 %v754, 4
      %v813 = vpop.permute.xlu0 %812
      %814 = vrot.lane.b32.xlu0 %v755, 4
      %v815 = vpop.permute.xlu0 %814
      %816 = vrot.lane.b32.xlu0 %v756, 4
      %v817 = vpop.permute.xlu0 %816
      %818 = vrot.lane.b32.xlu0 %v757, 4
      %v819 = vpop.permute.xlu0 %818
      %820 = vrot.lane.b32.xlu0 %v758, 4
      %v821 = vpop.permute.xlu0 %820
      %822 = vrot.lane.b32.xlu0 %v759, 4
      %v823 = vpop.permute.xlu0 %822
      %vm856 = vcmask 60448
      %857 = vst.msk [vmem:[#allocation3] sm:$0xf] %vm856, %v761
      %858 = vst.msk [vmem:[#allocation3 + $0x4] sm:$0xf] %vm856, %v763
      %859 = vst.msk [vmem:[#allocation3 + $0x8] sm:$0xf] %vm856, %v765
      %860 = vst.msk [vmem:[#allocation3 + $0xc] sm:$0xf] %vm856, %v767
      %861 = vst.msk [vmem:[#allocation3 + $0x10] sm:$0xf] %vm856, %v769
      %862 = vst.msk [vmem:[#allocation3 + $0x14] sm:$0xf] %vm856, %v771
      %863 = vst.msk [vmem:[#allocation3 + $0x18] sm:$0xf] %vm856, %v773
      %864 = vst.msk [vmem:[#allocation3 + $0x1c] sm:$0xf] %vm856, %v775
      %865 = vst.msk [vmem:[#allocation3 + $0x20] sm:$0xf] %vm856, %v777
      %866 = vst.msk [vmem:[#allocation3 + $0x24] sm:$0xf] %vm856, %v779
      %867 = vst.msk [vmem:[#allocation3 + $0x28] sm:$0xf] %vm856, %v781
      %868 = vst.msk [vmem:[#allocation3 + $0x2c] sm:$0xf] %vm856, %v783
      %869 = vst.msk [vmem:[#allocation3 + $0x30] sm:$0xf] %vm856, %v785
      %870 = vst.msk [vmem:[#allocation3 + $0x34] sm:$0xf] %vm856, %v787
      %871 = vst.msk [vmem:[#allocation3 + $0x38] sm:$0xf] %vm856, %v789
      %872 = vst.msk [vmem:[#allocation3 + $0x3c] sm:$0xf] %vm856, %v791
      %873 = vst.msk [vmem:[#allocation3 + $0x40] sm:$0xf] %vm856, %v793
      %874 = vst.msk [vmem:[#allocation3 + $0x44] sm:$0xf] %vm856, %v795
      %875 = vst.msk [vmem:[#allocation3 + $0x48] sm:$0xf] %vm856, %v797
      %876 = vst.msk [vmem:[#allocation3 + $0x4c] sm:$0xf] %vm856, %v799
      %877 = vst.msk [vmem:[#allocation3 + $0x50] sm:$0xf] %vm856, %v801
      %878 = vst.msk [vmem:[#allocation3 + $0x54] sm:$0xf] %vm856, %v803
      %879 = vst.msk [vmem:[#allocation3 + $0x58] sm:$0xf] %vm856, %v805
      %880 = vst.msk [vmem:[#allocation3 + $0x5c] sm:$0xf] %vm856, %v807
      %881 = vst.msk [vmem:[#allocation3 + $0x60] sm:$0xf] %vm856, %v809
      %882 = vst.msk [vmem:[#allocation3 + $0x64] sm:$0xf] %vm856, %v811
      %883 = vst.msk [vmem:[#allocation3 + $0x68] sm:$0xf] %vm856, %v813
      %884 = vst.msk [vmem:[#allocation3 + $0x6c] sm:$0xf] %vm856, %v815
      %885 = vst.msk [vmem:[#allocation3 + $0x70] sm:$0xf] %vm856, %v817
      %886 = vst.msk [vmem:[#allocation3 + $0x74] sm:$0xf] %vm856, %v819
      %887 = vst.msk [vmem:[#allocation3 + $0x78] sm:$0xf] %vm856, %v821
      %888 = vst.msk [vmem:[#allocation3 + $0x7c] sm:$0xf] %vm856, %v823
      %vm889 = vcmask 1045504
      %v890 = vrot.slane %v288, 2
      %v891 = vrot.slane %v289, 2
      %v892 = vsel %vm889, %v890, %v891
      %v893 = vrot.slane %v290, 2
      %v894 = vsel %vm889, %v891, %v893
      %v895 = vrot.slane %v291, 2
      %v896 = vrot.slane %v292, 2
      %v897 = vsel %vm889, %v895, %v896
      %v898 = vrot.slane %v293, 2
      %v899 = vsel %vm889, %v896, %v898
      %v900 = vrot.slane %v294, 2
      %v901 = vrot.slane %v295, 2
      %v902 = vsel %vm889, %v900, %v901
      %v903 = vrot.slane %v296, 2
      %v904 = vsel %vm889, %v901, %v903
      %v905 = vrot.slane %v297, 2
      %v906 = vrot.slane %v298, 2
      %v907 = vsel %vm889, %v905, %v906
      %v908 = vrot.slane %v299, 2
      %v909 = vsel %vm889, %v906, %v908
      %v910 = vrot.slane %v300, 2
      %v911 = vrot.slane %v301, 2
      %v912 = vsel %vm889, %v910, %v911
      %v913 = vrot.slane %v302, 2
      %v914 = vsel %vm889, %v911, %v913
      %v915 = vrot.slane %v303, 2
      %v916 = vrot.slane %v304, 2
      %v917 = vsel %vm889, %v915, %v916
      %v918 = vrot.slane %v305, 2
      %v919 = vsel %vm889, %v916, %v918
      %v920 = vrot.slane %v306, 2
      %v921 = vrot.slane %v307, 2
      %v922 = vsel %vm889, %v920, %v921
      %v923 = vrot.slane %v308, 2
      %v924 = vsel %vm889, %v921, %v923
      %v925 = vrot.slane %v309, 2
      %v926 = vrot.slane %v310, 2
      %v927 = vsel %vm889, %v925, %v926
      %v928 = vrot.slane %v311, 2
      %v929 = vsel %vm889, %v926, %v928
      %v930 = vrot.slane %v312, 2
      %v931 = vrot.slane %v313, 2
      %v932 = vsel %vm889, %v930, %v931
      %v933 = vrot.slane %v314, 2
      %v934 = vsel %vm889, %v931, %v933
      %v935 = vrot.slane %v315, 2
      %v936 = vrot.slane %v316, 2
      %v937 = vsel %vm889, %v935, %v936
      %v938 = vrot.slane %v317, 2
      %v939 = vsel %vm889, %v936, %v938
      %v940 = vrot.slane %v318, 2
      %v941 = vrot.slane %v319, 2
      %v942 = vsel %vm889, %v940, %v941
      %v943 = vrot.slane %v320, 2
      %v944 = vsel %vm889, %v941, %v943
      %v945 = vrot.slane %v321, 2
      %v946 = vrot.slane %v322, 2
      %v947 = vsel %vm889, %v945, %v946
      %v948 = vrot.slane %v323, 2
      %v949 = vsel %vm889, %v946, %v948
      %v950 = vrot.slane %v324, 2
      %v951 = vrot.slane %v325, 2
      %v952 = vsel %vm889, %v950, %v951
      %v953 = vrot.slane %v326, 2
      %v954 = vsel %vm889, %v951, %v953
      %v955 = vrot.slane %v327, 2
      %v956 = vrot.slane %v328, 2
      %v957 = vsel %vm889, %v955, %v956
      %v958 = vrot.slane %v329, 2
      %v959 = vsel %vm889, %v956, %v958
      %v960 = vrot.slane %v330, 2
      %v961 = vrot.slane %v331, 2
      %v962 = vsel %vm889, %v960, %v961
      %v963 = vrot.slane %v332, 2
      %v964 = vsel %vm889, %v961, %v963
      %v965 = vrot.slane %v333, 2
      %v966 = vrot.slane %v334, 2
      %v967 = vsel %vm889, %v965, %v966
      %v968 = vrot.slane %v335, 2
      %v969 = vsel %vm889, %v966, %v968
      %v1002 = vpack.c.bf16 %v894, %v892
      %v1003 = vpack.c.bf16 %v899, %v897
      %v1004 = vpack.c.bf16 %v904, %v902
      %v1005 = vpack.c.bf16 %v909, %v907
      %v1006 = vpack.c.bf16 %v914, %v912
      %v1007 = vpack.c.bf16 %v919, %v917
      %v1008 = vpack.c.bf16 %v924, %v922
      %v1009 = vpack.c.bf16 %v929, %v927
      %v1010 = vpack.c.bf16 %v934, %v932
      %v1011 = vpack.c.bf16 %v939, %v937
      %v1012 = vpack.c.bf16 %v944, %v942
      %v1013 = vpack.c.bf16 %v949, %v947
      %v1014 = vpack.c.bf16 %v954, %v952
      %v1015 = vpack.c.bf16 %v959, %v957
      %v1016 = vpack.c.bf16 %v964, %v962
      %v1017 = vpack.c.bf16 %v969, %v967
      %v1034 = vunpack.c.l.b16 %v1002
      %v1035 = vunpack.c.h.b16 %v1002
      %v1036 = vunpack.c.l.b16 %v1003
      %v1037 = vunpack.c.h.b16 %v1003
      %v1038 = vunpack.c.l.b16 %v1004
      %v1039 = vunpack.c.h.b16 %v1004
      %v1040 = vunpack.c.l.b16 %v1005
      %v1041 = vunpack.c.h.b16 %v1005
      %v1042 = vunpack.c.l.b16 %v1006
      %v1043 = vunpack.c.h.b16 %v1006
      %v1044 = vunpack.c.l.b16 %v1007
      %v1045 = vunpack.c.h.b16 %v1007
      %v1046 = vunpack.c.l.b16 %v1008
      %v1047 = vunpack.c.h.b16 %v1008
      %v1048 = vunpack.c.l.b16 %v1009
      %v1049 = vunpack.c.h.b16 %v1009
      %v1050 = vunpack.c.l.b16 %v1010
      %v1051 = vunpack.c.h.b16 %v1010
      %v1052 = vunpack.c.l.b16 %v1011
      %v1053 = vunpack.c.h.b16 %v1011
      %v1054 = vunpack.c.l.b16 %v1012
      %v1055 = vunpack.c.h.b16 %v1012
      %v1056 = vunpack.c.l.b16 %v1013
      %v1057 = vunpack.c.h.b16 %v1013
      %v1058 = vunpack.c.l.b16 %v1014
      %v1059 = vunpack.c.h.b16 %v1014
      %v1060 = vunpack.c.l.b16 %v1015
      %v1061 = vunpack.c.h.b16 %v1015
      %v1062 = vunpack.c.l.b16 %v1016
      %v1063 = vunpack.c.h.b16 %v1016
      %v1064 = vunpack.c.l.b16 %v1017
      %v1065 = vunpack.c.h.b16 %v1017
      %v1066 = vpack.c.b16 %v1034, %v1034
      %v1067 = vpack.c.b16 %v1035, %v1035
      %v1068 = vpack.c.b16 %v1036, %v1036
      %v1069 = vpack.c.b16 %v1037, %v1037
      %v1070 = vpack.c.b16 %v1038, %v1038
      %v1071 = vpack.c.b16 %v1039, %v1039
      %v1072 = vpack.c.b16 %v1040, %v1040
      %v1073 = vpack.c.b16 %v1041, %v1041
      %v1074 = vpack.c.b16 %v1042, %v1042
      %v1075 = vpack.c.b16 %v1043, %v1043
      %v1076 = vpack.c.b16 %v1044, %v1044
      %v1077 = vpack.c.b16 %v1045, %v1045
      %v1078 = vpack.c.b16 %v1046, %v1046
      %v1079 = vpack.c.b16 %v1047, %v1047
      %v1080 = vpack.c.b16 %v1048, %v1048
      %v1081 = vpack.c.b16 %v1049, %v1049
      %v1082 = vpack.c.b16 %v1050, %v1050
      %v1083 = vpack.c.b16 %v1051, %v1051
      %v1084 = vpack.c.b16 %v1052, %v1052
      %v1085 = vpack.c.b16 %v1053, %v1053
      %v1086 = vpack.c.b16 %v1054, %v1054
      %v1087 = vpack.c.b16 %v1055, %v1055
      %v1088 = vpack.c.b16 %v1056, %v1056
      %v1089 = vpack.c.b16 %v1057, %v1057
      %v1090 = vpack.c.b16 %v1058, %v1058
      %v1091 = vpack.c.b16 %v1059, %v1059
      %v1092 = vpack.c.b16 %v1060, %v1060
      %v1093 = vpack.c.b16 %v1061, %v1061
      %v1094 = vpack.c.b16 %v1062, %v1062
      %v1095 = vpack.c.b16 %v1063, %v1063
      %v1096 = vpack.c.b16 %v1064, %v1064
      %v1097 = vpack.c.b16 %v1065, %v1065
      %1098 = vrot.lane.b32.xlu0 %v1066, 8
      %v1099 = vpop.permute.xlu0 %1098
      %1100 = vrot.lane.b32.xlu0 %v1067, 8
      %v1101 = vpop.permute.xlu0 %1100
      %1102 = vrot.lane.b32.xlu0 %v1068, 8
      %v1103 = vpop.permute.xlu0 %1102
      %1104 = vrot.lane.b32.xlu0 %v1069, 8
      %v1105 = vpop.permute.xlu0 %1104
      %1106 = vrot.lane.b32.xlu0 %v1070, 8
      %v1107 = vpop.permute.xlu0 %1106
      %1108 = vrot.lane.b32.xlu0 %v1071, 8
      %v1109 = vpop.permute.xlu0 %1108
      %1110 = vrot.lane.b32.xlu0 %v1072, 8
      %v1111 = vpop.permute.xlu0 %1110
      %1112 = vrot.lane.b32.xlu0 %v1073, 8
      %v1113 = vpop.permute.xlu0 %1112
      %1114 = vrot.lane.b32.xlu0 %v1074, 8
      %v1115 = vpop.permute.xlu0 %1114
      %1116 = vrot.lane.b32.xlu0 %v1075, 8
      %v1117 = vpop.permute.xlu0 %1116
      %1118 = vrot.lane.b32.xlu0 %v1076, 8
      %v1119 = vpop.permute.xlu0 %1118
      %1120 = vrot.lane.b32.xlu0 %v1077, 8
      %v1121 = vpop.permute.xlu0 %1120
      %1122 = vrot.lane.b32.xlu0 %v1078, 8
      %v1123 = vpop.permute.xlu0 %1122
      %1124 = vrot.lane.b32.xlu0 %v1079, 8
      %v1125 = vpop.permute.xlu0 %1124
      %1126 = vrot.lane.b32.xlu0 %v1080, 8
      %v1127 = vpop.permute.xlu0 %1126
      %1128 = vrot.lane.b32.xlu0 %v1081, 8
      %v1129 = vpop.permute.xlu0 %1128
      %1130 = vrot.lane.b32.xlu0 %v1082, 8
      %v1131 = vpop.permute.xlu0 %1130
      %1132 = vrot.lane.b32.xlu0 %v1083, 8
      %v1133 = vpop.permute.xlu0 %1132
      %1134 = vrot.lane.b32.xlu0 %v1084, 8
      %v1135 = vpop.permute.xlu0 %1134
      %1136 = vrot.lane.b32.xlu0 %v1085, 8
      %v1137 = vpop.permute.xlu0 %1136
      %1138 = vrot.lane.b32.xlu0 %v1086, 8
      %v1139 = vpop.permute.xlu0 %1138
      %1140 = vrot.lane.b32.xlu0 %v1087, 8
      %v1141 = vpop.permute.xlu0 %1140
      %1142 = vrot.lane.b32.xlu0 %v1088, 8
      %v1143 = vpop.permute.xlu0 %1142
      %1144 = vrot.lane.b32.xlu0 %v1089, 8
      %v1145 = vpop.permute.xlu0 %1144
      %1146 = vrot.lane.b32.xlu0 %v1090, 8
      %v1147 = vpop.permute.xlu0 %1146
      %1148 = vrot.lane.b32.xlu0 %v1091, 8
      %v1149 = vpop.permute.xlu0 %1148
      %1150 = vrot.lane.b32.xlu0 %v1092, 8
      %v1151 = vpop.permute.xlu0 %1150
      %1152 = vrot.lane.b32.xlu0 %v1093, 8
      %v1153 = vpop.permute.xlu0 %1152
      %1154 = vrot.lane.b32.xlu0 %v1094, 8
      %v1155 = vpop.permute.xlu0 %1154
      %1156 = vrot.lane.b32.xlu0 %v1095, 8
      %v1157 = vpop.permute.xlu0 %1156
      %1158 = vrot.lane.b32.xlu0 %v1096, 8
      %v1159 = vpop.permute.xlu0 %1158
      %1160 = vrot.lane.b32.xlu0 %v1097, 8
      %v1161 = vpop.permute.xlu0 %1160
      %vm1194 = vcmask 93248
      %1195 = vst.msk [vmem:[#allocation3] sm:$0xf] %vm1194, %v1099
      %1196 = vst.msk [vmem:[#allocation3 + $0x4] sm:$0xf] %vm1194, %v1101
      %1197 = vst.msk [vmem:[#allocation3 + $0x8] sm:$0xf] %vm1194, %v1103
      %1198 = vst.msk [vmem:[#allocation3 + $0xc] sm:$0xf] %vm1194, %v1105
      %1199 = vst.msk [vmem:[#allocation3 + $0x10] sm:$0xf] %vm1194, %v1107
      %1200 = vst.msk [vmem:[#allocation3 + $0x14] sm:$0xf] %vm1194, %v1109
      %1201 = vst.msk [vmem:[#allocation3 + $0x18] sm:$0xf] %vm1194, %v1111
      %1202 = vst.msk [vmem:[#allocation3 + $0x1c] sm:$0xf] %vm1194, %v1113
      %1203 = vst.msk [vmem:[#allocation3 + $0x20] sm:$0xf] %vm1194, %v1115
      %1204 = vst.msk [vmem:[#allocation3 + $0x24] sm:$0xf] %vm1194, %v1117
      %1205 = vst.msk [vmem:[#allocation3 + $0x28] sm:$0xf] %vm1194, %v1119
      %1206 = vst.msk [vmem:[#allocation3 + $0x2c] sm:$0xf] %vm1194, %v1121
      %1207 = vst.msk [vmem:[#allocation3 + $0x30] sm:$0xf] %vm1194, %v1123
      %1208 = vst.msk [vmem:[#allocation3 + $0x34] sm:$0xf] %vm1194, %v1125
      %1209 = vst.msk [vmem:[#allocation3 + $0x38] sm:$0xf] %vm1194, %v1127
      %1210 = vst.msk [vmem:[#allocation3 + $0x3c] sm:$0xf] %vm1194, %v1129
      %1211 = vst.msk [vmem:[#allocation3 + $0x40] sm:$0xf] %vm1194, %v1131
      %1212 = vst.msk [vmem:[#allocation3 + $0x44] sm:$0xf] %vm1194, %v1133
      %1213 = vst.msk [vmem:[#allocation3 + $0x48] sm:$0xf] %vm1194, %v1135
      %1214 = vst.msk [vmem:[#allocation3 + $0x4c] sm:$0xf] %vm1194, %v1137
      %1215 = vst.msk [vmem:[#allocation3 + $0x50] sm:$0xf] %vm1194, %v1139
      %1216 = vst.msk [vmem:[#allocation3 + $0x54] sm:$0xf] %vm1194, %v1141
      %1217 = vst.msk [vmem:[#allocation3 + $0x58] sm:$0xf] %vm1194, %v1143
      %1218 = vst.msk [vmem:[#allocation3 + $0x5c] sm:$0xf] %vm1194, %v1145
      %1219 = vst.msk [vmem:[#allocation3 + $0x60] sm:$0xf] %vm1194, %v1147
      %1220 = vst.msk [vmem:[#allocation3 + $0x64] sm:$0xf] %vm1194, %v1149
      %1221 = vst.msk [vmem:[#allocation3 + $0x68] sm:$0xf] %vm1194, %v1151
      %1222 = vst.msk [vmem:[#allocation3 + $0x6c] sm:$0xf] %vm1194, %v1153
      %1223 = vst.msk [vmem:[#allocation3 + $0x70] sm:$0xf] %vm1194, %v1155
      %1224 = vst.msk [vmem:[#allocation3 + $0x74] sm:$0xf] %vm1194, %v1157
      %1225 = vst.msk [vmem:[#allocation3 + $0x78] sm:$0xf] %vm1194, %v1159
      %1226 = vst.msk [vmem:[#allocation3 + $0x7c] sm:$0xf] %vm1194, %v1161
      %v1227 = vpack.c.bf16 %v337, %v336
      %v1229 = vunpack.c.l.b16 %v1227
      %v1230 = vunpack.c.h.b16 %v1227
      %v1231 = vpack.c.b16 %v1229, %v1229
      %v1232 = vpack.c.b16 %v1230, %v1230
      %1233 = vrot.lane.b32.xlu0 %v408, 12
      %v1234 = vpop.permute.xlu0 %1233
      %1235 = vrot.lane.b32.xlu0 %v409, 12
      %v1236 = vpop.permute.xlu0 %1235
      %1237 = vrot.lane.b32.xlu0 %v410, 12
      %v1238 = vpop.permute.xlu0 %1237
      %1239 = vrot.lane.b32.xlu0 %v411, 12
      %v1240 = vpop.permute.xlu0 %1239
      %1241 = vrot.lane.b32.xlu0 %v412, 12
      %v1242 = vpop.permute.xlu0 %1241
      %1243 = vrot.lane.b32.xlu0 %v413, 12
      %v1244 = vpop.permute.xlu0 %1243
      %1245 = vrot.lane.b32.xlu0 %v414, 12
      %v1246 = vpop.permute.xlu0 %1245
      %1247 = vrot.lane.b32.xlu0 %v415, 12
      %v1248 = vpop.permute.xlu0 %1247
      %1249 = vrot.lane.b32.xlu0 %v416, 12
      %v1250 = vpop.permute.xlu0 %1249
      %1251 = vrot.lane.b32.xlu0 %v417, 12
      %v1252 = vpop.permute.xlu0 %1251
      %1253 = vrot.lane.b32.xlu0 %v418, 12
      %v1254 = vpop.permute.xlu0 %1253
      %1255 = vrot.lane.b32.xlu0 %v419, 12
      %v1256 = vpop.permute.xlu0 %1255
      %1257 = vrot.lane.b32.xlu0 %v420, 12
      %v1258 = vpop.permute.xlu0 %1257
      %1259 = vrot.lane.b32.xlu0 %v421, 12
      %v1260 = vpop.permute.xlu0 %1259
      %1261 = vrot.lane.b32.xlu0 %v422, 12
      %v1262 = vpop.permute.xlu0 %1261
      %1263 = vrot.lane.b32.xlu0 %v423, 12
      %v1264 = vpop.permute.xlu0 %1263
      %1265 = vrot.lane.b32.xlu0 %v424, 12
      %v1266 = vpop.permute.xlu0 %1265
      %1267 = vrot.lane.b32.xlu0 %v425, 12
      %v1268 = vpop.permute.xlu0 %1267
      %1269 = vrot.lane.b32.xlu0 %v426, 12
      %v1270 = vpop.permute.xlu0 %1269
      %1271 = vrot.lane.b32.xlu0 %v427, 12
      %v1272 = vpop.permute.xlu0 %1271
      %1273 = vrot.lane.b32.xlu0 %v428, 12
      %v1274 = vpop.permute.xlu0 %1273
      %1275 = vrot.lane.b32.xlu0 %v429, 12
      %v1276 = vpop.permute.xlu0 %1275
      %1277 = vrot.lane.b32.xlu0 %v430, 12
      %v1278 = vpop.permute.xlu0 %1277
      %1279 = vrot.lane.b32.xlu0 %v431, 12
      %v1280 = vpop.permute.xlu0 %1279
      %1281 = vrot.lane.b32.xlu0 %v432, 12
      %v1282 = vpop.permute.xlu0 %1281
      %1283 = vrot.lane.b32.xlu0 %v433, 12
      %v1284 = vpop.permute.xlu0 %1283
      %1285 = vrot.lane.b32.xlu0 %v434, 12
      %v1286 = vpop.permute.xlu0 %1285
      %1287 = vrot.lane.b32.xlu0 %v435, 12
      %v1288 = vpop.permute.xlu0 %1287
      %1289 = vrot.lane.b32.xlu0 %v436, 12
      %v1290 = vpop.permute.xlu0 %1289
      %1291 = vrot.lane.b32.xlu0 %v437, 12
      %v1292 = vpop.permute.xlu0 %1291
      %1293 = vrot.lane.b32.xlu0 %v1231, 12
      %v1294 = vpop.permute.xlu0 %1293
      %1295 = vrot.lane.b32.xlu0 %v1232, 12
      %v1296 = vpop.permute.xlu0 %1295
      %vm1329 = vcmask 126048
      %1330 = vst.msk [vmem:[#allocation3] sm:$0xf] %vm1329, %v1234
      %1331 = vst.msk [vmem:[#allocation3 + $0x4] sm:$0xf] %vm1329, %v1236
      %1332 = vst.msk [vmem:[#allocation3 + $0x8] sm:$0xf] %vm1329, %v1238
      %1333 = vst.msk [vmem:[#allocation3 + $0xc] sm:$0xf] %vm1329, %v1240
      %1334 = vst.msk [vmem:[#allocation3 + $0x10] sm:$0xf] %vm1329, %v1242
      %1335 = vst.msk [vmem:[#allocation3 + $0x14] sm:$0xf] %vm1329, %v1244
      %1336 = vst.msk [vmem:[#allocation3 + $0x18] sm:$0xf] %vm1329, %v1246
      %1337 = vst.msk [vmem:[#allocation3 + $0x1c] sm:$0xf] %vm1329, %v1248
      %1338 = vst.msk [vmem:[#allocation3 + $0x20] sm:$0xf] %vm1329, %v1250
      %1339 = vst.msk [vmem:[#allocation3 + $0x24] sm:$0xf] %vm1329, %v1252
      %1340 = vst.msk [vmem:[#allocation3 + $0x28] sm:$0xf] %vm1329, %v1254
      %1341 = vst.msk [vmem:[#allocation3 + $0x2c] sm:$0xf] %vm1329, %v1256
      %1342 = vst.msk [vmem:[#allocation3 + $0x30] sm:$0xf] %vm1329, %v1258
      %1343 = vst.msk [vmem:[#allocation3 + $0x34] sm:$0xf] %vm1329, %v1260
      %1344 = vst.msk [vmem:[#allocation3 + $0x38] sm:$0xf] %vm1329, %v1262
      %1345 = vst.msk [vmem:[#allocation3 + $0x3c] sm:$0xf] %vm1329, %v1264
      %1346 = vst.msk [vmem:[#allocation3 + $0x40] sm:$0xf] %vm1329, %v1266
      %1347 = vst.msk [vmem:[#allocation3 + $0x44] sm:$0xf] %vm1329, %v1268
      %1348 = vst.msk [vmem:[#allocation3 + $0x48] sm:$0xf] %vm1329, %v1270
      %1349 = vst.msk [vmem:[#allocation3 + $0x4c] sm:$0xf] %vm1329, %v1272
      %1350 = vst.msk [vmem:[#allocation3 + $0x50] sm:$0xf] %vm1329, %v1274
      %1351 = vst.msk [vmem:[#allocation3 + $0x54] sm:$0xf] %vm1329, %v1276
      %1352 = vst.msk [vmem:[#allocation3 + $0x58] sm:$0xf] %vm1329, %v1278
      %1353 = vst.msk [vmem:[#allocation3 + $0x5c] sm:$0xf] %vm1329, %v1280
      %1354 = vst.msk [vmem:[#allocation3 + $0x60] sm:$0xf] %vm1329, %v1282
      %1355 = vst.msk [vmem:[#allocation3 + $0x64] sm:$0xf] %vm1329, %v1284
      %1356 = vst.msk [vmem:[#allocation3 + $0x68] sm:$0xf] %vm1329, %v1286
      %1357 = vst.msk [vmem:[#allocation3 + $0x6c] sm:$0xf] %vm1329, %v1288
      %1358 = vst.msk [vmem:[#allocation3 + $0x70] sm:$0xf] %vm1329, %v1290
      %1359 = vst.msk [vmem:[#allocation3 + $0x74] sm:$0xf] %vm1329, %v1292
      %1360 = vst.msk [vmem:[#allocation3 + $0x78] sm:$0xf] %vm1329, %v1294
      %1361 = vst.msk [vmem:[#allocation3 + $0x7c] sm:$0xf] %vm1329, %v1296
      %v1365 = vrot.slane %v336, 1
      %v1366 = vrot.slane %v337, 1
      %v1367 = vsel %vm551, %v1365, %v1366
      %v1368 = vrot.slane %v338, 1
      %v1369 = vsel %vm551, %v1366, %v1368
      %v1372 = vpack.c.bf16 %v1369, %v1367
      %v1374 = vunpack.c.l.b16 %v1372
      %v1375 = vunpack.c.h.b16 %v1372
      %v1376 = vpack.c.b16 %v1374, %v1374
      %v1377 = vpack.c.b16 %v1375, %v1375
      %1378 = vrot.lane.b32.xlu0 %v730, 16
      %v1379 = vpop.permute.xlu0 %1378
      %1380 = vrot.lane.b32.xlu0 %v731, 16
      %v1381 = vpop.permute.xlu0 %1380
      %1382 = vrot.lane.b32.xlu0 %v732, 16
      %v1383 = vpop.permute.xlu0 %1382
      %1384 = vrot.lane.b32.xlu0 %v733, 16
      %v1385 = vpop.permute.xlu0 %1384
      %1386 = vrot.lane.b32.xlu0 %v734, 16
      %v1387 = vpop.permute.xlu0 %1386
      %1388 = vrot.lane.b32.xlu0 %v735, 16
      %v1389 = vpop.permute.xlu0 %1388
      %1390 = vrot.lane.b32.xlu0 %v736, 16
      %v1391 = vpop.permute.xlu0 %1390
      %1392 = vrot.lane.b32.xlu0 %v737, 16
      %v1393 = vpop.permute.xlu0 %1392
      %1394 = vrot.lane.b32.xlu0 %v738, 16
      %v1395 = vpop.permute.xlu0 %1394
      %1396 = vrot.lane.b32.xlu0 %v739, 16
      %v1397 = vpop.permute.xlu0 %1396
      %1398 = vrot.lane.b32.xlu0 %v740, 16
      %v1399 = vpop.permute.xlu0 %1398
      %1400 = vrot.lane.b32.xlu0 %v741, 16
      %v1401 = vpop.permute.xlu0 %1400
      %1402 = vrot.lane.b32.xlu0 %v742, 16
      %v1403 = vpop.permute.xlu0 %1402
      %1404 = vrot.lane.b32.xlu0 %v743, 16
      %v1405 = vpop.permute.xlu0 %1404
      %1406 = vrot.lane.b32.xlu0 %v744, 16
      %v1407 = vpop.permute.xlu0 %1406
      %1408 = vrot.lane.b32.xlu0 %v745, 16
      %v1409 = vpop.permute.xlu0 %1408
      %1410 = vrot.lane.b32.xlu0 %v746, 16
      %v1411 = vpop.permute.xlu0 %1410
      %1412 = vrot.lane.b32.xlu0 %v747, 16
      %v1413 = vpop.permute.xlu0 %1412
      %1414 = vrot.lane.b32.xlu0 %v748, 16
      %v1415 = vpop.permute.xlu0 %1414
      %1416 = vrot.lane.b32.xlu0 %v749, 16
      %v1417 = vpop.permute.xlu0 %1416
      %1418 = vrot.lane.b32.xlu0 %v750, 16
      %v1419 = vpop.permute.xlu0 %1418
      %1420 = vrot.lane.b32.xlu0 %v751, 16
      %v1421 = vpop.permute.xlu0 %1420
      %1422 = vrot.lane.b32.xlu0 %v752, 16
      %v1423 = vpop.permute.xlu0 %1422
      %1424 = vrot.lane.b32.xlu0 %v753, 16
      %v1425 = vpop.permute.xlu0 %1424
      %1426 = vrot.lane.b32.xlu0 %v754, 16
      %v1427 = vpop.permute.xlu0 %1426
      %1428 = vrot.lane.b32.xlu0 %v755, 16
      %v1429 = vpop.permute.xlu0 %1428
      %1430 = vrot.lane.b32.xlu0 %v756, 16
      %v1431 = vpop.permute.xlu0 %1430
      %1432 = vrot.lane.b32.xlu0 %v757, 16
      %v1433 = vpop.permute.xlu0 %1432
      %1434 = vrot.lane.b32.xlu0 %v758, 16
      %v1435 = vpop.permute.xlu0 %1434
      %1436 = vrot.lane.b32.xlu0 %v759, 16
      %v1437 = vpop.permute.xlu0 %1436
      %1438 = vrot.lane.b32.xlu0 %v1376, 16
      %v1439 = vpop.permute.xlu0 %1438
      %1440 = vrot.lane.b32.xlu0 %v1377, 16
      %v1441 = vpop.permute.xlu0 %1440
      %vm1474 = vcmask 158848
      %1475 = vst.msk [vmem:[#allocation3] sm:$0xf] %vm1474, %v1379
      %1476 = vst.msk [vmem:[#allocation3 + $0x4] sm:$0xf] %vm1474, %v1381
      %1477 = vst.msk [vmem:[#allocation3 + $0x8] sm:$0xf] %vm1474, %v1383
      %1478 = vst.msk [vmem:[#allocation3 + $0xc] sm:$0xf] %vm1474, %v1385
      %1479 = vst.msk [vmem:[#allocation3 + $0x10] sm:$0xf] %vm1474, %v1387
      %1480 = vst.msk [vmem:[#allocation3 + $0x14] sm:$0xf] %vm1474, %v1389
      %1481 = vst.msk [vmem:[#allocation3 + $0x18] sm:$0xf] %vm1474, %v1391
      %1482 = vst.msk [vmem:[#allocation3 + $0x1c] sm:$0xf] %vm1474, %v1393
      %1483 = vst.msk [vmem:[#allocation3 + $0x20] sm:$0xf] %vm1474, %v1395
      %1484 = vst.msk [vmem:[#allocation3 + $0x24] sm:$0xf] %vm1474, %v1397
      %1485 = vst.msk [vmem:[#allocation3 + $0x28] sm:$0xf] %vm1474, %v1399
      %1486 = vst.msk [vmem:[#allocation3 + $0x2c] sm:$0xf] %vm1474, %v1401
      %1487 = vst.msk [vmem:[#allocation3 + $0x30] sm:$0xf] %vm1474, %v1403
      %1488 = vst.msk [vmem:[#allocation3 + $0x34] sm:$0xf] %vm1474, %v1405
      %1489 = vst.msk [vmem:[#allocation3 + $0x38] sm:$0xf] %vm1474, %v1407
      %1490 = vst.msk [vmem:[#allocation3 + $0x3c] sm:$0xf] %vm1474, %v1409
      %1491 = vst.msk [vmem:[#allocation3 + $0x40] sm:$0xf] %vm1474, %v1411
      %1492 = vst.msk [vmem:[#allocation3 + $0x44] sm:$0xf] %vm1474, %v1413
      %1493 = vst.msk [vmem:[#allocation3 + $0x48] sm:$0xf] %vm1474, %v1415
      %1494 = vst.msk [vmem:[#allocation3 + $0x4c] sm:$0xf] %vm1474, %v1417
      %1495 = vst.msk [vmem:[#allocation3 + $0x50] sm:$0xf] %vm1474, %v1419
      %1496 = vst.msk [vmem:[#allocation3 + $0x54] sm:$0xf] %vm1474, %v1421
      %1497 = vst.msk [vmem:[#allocation3 + $0x58] sm:$0xf] %vm1474, %v1423
      %1498 = vst.msk [vmem:[#allocation3 + $0x5c] sm:$0xf] %vm1474, %v1425
      %1499 = vst.msk [vmem:[#allocation3 + $0x60] sm:$0xf] %vm1474, %v1427
      %1500 = vst.msk [vmem:[#allocation3 + $0x64] sm:$0xf] %vm1474, %v1429
      %1501 = vst.msk [vmem:[#allocation3 + $0x68] sm:$0xf] %vm1474, %v1431
      %1502 = vst.msk [vmem:[#allocation3 + $0x6c] sm:$0xf] %vm1474, %v1433
      %1503 = vst.msk [vmem:[#allocation3 + $0x70] sm:$0xf] %vm1474, %v1435
      %1504 = vst.msk [vmem:[#allocation3 + $0x74] sm:$0xf] %vm1474, %v1437
      %1505 = vst.msk [vmem:[#allocation3 + $0x78] sm:$0xf] %vm1474, %v1439
      %1506 = vst.msk [vmem:[#allocation3 + $0x7c] sm:$0xf] %vm1474, %v1441
      %v1507 = vrot.slane %v336, 2
      %v1508 = vrot.slane %v337, 2
      %v1509 = vsel %vm889, %v1507, %v1508
      %v1510 = vrot.slane %v338, 2
      %v1511 = vsel %vm889, %v1508, %v1510
      %v1514 = vpack.c.bf16 %v1511, %v1509
      %v1516 = vunpack.c.l.b16 %v1514
      %v1517 = vunpack.c.h.b16 %v1514
      %v1518 = vpack.c.b16 %v1516, %v1516
      %v1519 = vpack.c.b16 %v1517, %v1517
      %1520 = vrot.lane.b32.xlu0 %v1068, 20
      %v1521 = vpop.permute.xlu0 %1520
      %1522 = vrot.lane.b32.xlu0 %v1069, 20
      %v1523 = vpop.permute.xlu0 %1522
      %1524 = vrot.lane.b32.xlu0 %v1070, 20
      %v1525 = vpop.permute.xlu0 %1524
      %1526 = vrot.lane.b32.xlu0 %v1071, 20
      %v1527 = vpop.permute.xlu0 %1526
      %1528 = vrot.lane.b32.xlu0 %v1072, 20
      %v1529 = vpop.permute.xlu0 %1528
      %1530 = vrot.lane.b32.xlu0 %v1073, 20
      %v1531 = vpop.permute.xlu0 %1530
      %1532 = vrot.lane.b32.xlu0 %v1074, 20
      %v1533 = vpop.permute.xlu0 %1532
      %1534 = vrot.lane.b32.xlu0 %v1075, 20
      %v1535 = vpop.permute.xlu0 %1534
      %1536 = vrot.lane.b32.xlu0 %v1076, 20
      %v1537 = vpop.permute.xlu0 %1536
      %1538 = vrot.lane.b32.xlu0 %v1077, 20
      %v1539 = vpop.permute.xlu0 %1538
      %1540 = vrot.lane.b32.xlu0 %v1078, 20
      %v1541 = vpop.permute.xlu0 %1540
      %1542 = vrot.lane.b32.xlu0 %v1079, 20
      %v1543 = vpop.permute.xlu0 %1542
      %1544 = vrot.lane.b32.xlu0 %v1080, 20
      %v1545 = vpop.permute.xlu0 %1544
      %1546 = vrot.lane.b32.xlu0 %v1081, 20
      %v1547 = vpop.permute.xlu0 %1546
      %1548 = vrot.lane.b32.xlu0 %v1082, 20
      %v1549 = vpop.permute.xlu0 %1548
      %1550 = vrot.lane.b32.xlu0 %v1083, 20
      %v1551 = vpop.permute.xlu0 %1550
      %1552 = vrot.lane.b32.xlu0 %v1084, 20
      %v1553 = vpop.permute.xlu0 %1552
      %1554 = vrot.lane.b32.xlu0 %v1085, 20
      %v1555 = vpop.permute.xlu0 %1554
      %1556 = vrot.lane.b32.xlu0 %v1086, 20
      %v1557 = vpop.permute.xlu0 %1556
      %1558 = vrot.lane.b32.xlu0 %v1087, 20
      %v1559 = vpop.permute.xlu0 %1558
      %1560 = vrot.lane.b32.xlu0 %v1088, 20
      %v1561 = vpop.permute.xlu0 %1560
      %1562 = vrot.lane.b32.xlu0 %v1089, 20
      %v1563 = vpop.permute.xlu0 %1562
      %1564 = vrot.lane.b32.xlu0 %v1090, 20
      %v1565 = vpop.permute.xlu0 %1564
      %1566 = vrot.lane.b32.xlu0 %v1091, 20
      %v1567 = vpop.permute.xlu0 %1566
      %1568 = vrot.lane.b32.xlu0 %v1092, 20
      %v1569 = vpop.permute.xlu0 %1568
      %1570 = vrot.lane.b32.xlu0 %v1093, 20
      %v1571 = vpop.permute.xlu0 %1570
      %1572 = vrot.lane.b32.xlu0 %v1094, 20
      %v1573 = vpop.permute.xlu0 %1572
      %1574 = vrot.lane.b32.xlu0 %v1095, 20
      %v1575 = vpop.permute.xlu0 %1574
      %1576 = vrot.lane.b32.xlu0 %v1096, 20
      %v1577 = vpop.permute.xlu0 %1576
      %1578 = vrot.lane.b32.xlu0 %v1097, 20
      %v1579 = vpop.permute.xlu0 %1578
      %1580 = vrot.lane.b32.xlu0 %v1518, 20
      %v1581 = vpop.permute.xlu0 %1580
      %1582 = vrot.lane.b32.xlu0 %v1519, 20
      %v1583 = vpop.permute.xlu0 %1582
      %vm1616 = vcmask 191648
      %1617 = vst.msk [vmem:[#allocation3] sm:$0xf] %vm1616, %v1521
      %1618 = vst.msk [vmem:[#allocation3 + $0x4] sm:$0xf] %vm1616, %v1523
      %1619 = vst.msk [vmem:[#allocation3 + $0x8] sm:$0xf] %vm1616, %v1525
      %1620 = vst.msk [vmem:[#allocation3 + $0xc] sm:$0xf] %vm1616, %v1527
      %1621 = vst.msk [vmem:[#allocation3 + $0x10] sm:$0xf] %vm1616, %v1529
      %1622 = vst.msk [vmem:[#allocation3 + $0x14] sm:$0xf] %vm1616, %v1531
      %1623 = vst.msk [vmem:[#allocation3 + $0x18] sm:$0xf] %vm1616, %v1533
      %1624 = vst.msk [vmem:[#allocation3 + $0x1c] sm:$0xf] %vm1616, %v1535
      %1625 = vst.msk [vmem:[#allocation3 + $0x20] sm:$0xf] %vm1616, %v1537
      %1626 = vst.msk [vmem:[#allocation3 + $0x24] sm:$0xf] %vm1616, %v1539
      %1627 = vst.msk [vmem:[#allocation3 + $0x28] sm:$0xf] %vm1616, %v1541
      %1628 = vst.msk [vmem:[#allocation3 + $0x2c] sm:$0xf] %vm1616, %v1543
      %1629 = vst.msk [vmem:[#allocation3 + $0x30] sm:$0xf] %vm1616, %v1545
      %1630 = vst.msk [vmem:[#allocation3 + $0x34] sm:$0xf] %vm1616, %v1547
      %1631 = vst.msk [vmem:[#allocation3 + $0x38] sm:$0xf] %vm1616, %v1549
      %1632 = vst.msk [vmem:[#allocation3 + $0x3c] sm:$0xf] %vm1616, %v1551
      %1633 = vst.msk [vmem:[#allocation3 + $0x40] sm:$0xf] %vm1616, %v1553
      %1634 = vst.msk [vmem:[#allocation3 + $0x44] sm:$0xf] %vm1616, %v1555
      %1635 = vst.msk [vmem:[#allocation3 + $0x48] sm:$0xf] %vm1616, %v1557
      %1636 = vst.msk [vmem:[#allocation3 + $0x4c] sm:$0xf] %vm1616, %v1559
      %1637 = vst.msk [vmem:[#allocation3 + $0x50] sm:$0xf] %vm1616, %v1561
      %1638 = vst.msk [vmem:[#allocation3 + $0x54] sm:$0xf] %vm1616, %v1563
      %1639 = vst.msk [vmem:[#allocation3 + $0x58] sm:$0xf] %vm1616, %v1565
      %1640 = vst.msk [vmem:[#allocation3 + $0x5c] sm:$0xf] %vm1616, %v1567
      %1641 = vst.msk [vmem:[#allocation3 + $0x60] sm:$0xf] %vm1616, %v1569
      %1642 = vst.msk [vmem:[#allocation3 + $0x64] sm:$0xf] %vm1616, %v1571
      %1643 = vst.msk [vmem:[#allocation3 + $0x68] sm:$0xf] %vm1616, %v1573
      %1644 = vst.msk [vmem:[#allocation3 + $0x6c] sm:$0xf] %vm1616, %v1575
      %1645 = vst.msk [vmem:[#allocation3 + $0x70] sm:$0xf] %vm1616, %v1577
      %1646 = vst.msk [vmem:[#allocation3 + $0x74] sm:$0xf] %vm1616, %v1579
      %1647 = vst.msk [vmem:[#allocation3 + $0x78] sm:$0xf] %vm1616, %v1581
      %1648 = vst.msk [vmem:[#allocation3 + $0x7c] sm:$0xf] %vm1616, %v1583
      %v1649 = vpack.c.bf16 %v340, %v339
      %v1651 = vunpack.c.l.b16 %v1649
      %v1652 = vunpack.c.h.b16 %v1649
      %v1653 = vpack.c.b16 %v1651, %v1651
      %v1654 = vpack.c.b16 %v1652, %v1652
      %1655 = vrot.lane.b32.xlu0 %v410, 24
      %v1656 = vpop.permute.xlu0 %1655
      %1657 = vrot.lane.b32.xlu0 %v411, 24
      %v1658 = vpop.permute.xlu0 %1657
      %1659 = vrot.lane.b32.xlu0 %v412, 24
      %v1660 = vpop.permute.xlu0 %1659
      %1661 = vrot.lane.b32.xlu0 %v413, 24
      %v1662 = vpop.permute.xlu0 %1661
      %1663 = vrot.lane.b32.xlu0 %v414, 24
      %v1664 = vpop.permute.xlu0 %1663
      %1665 = vrot.lane.b32.xlu0 %v415, 24
      %v1666 = vpop.permute.xlu0 %1665
      %1667 = vrot.lane.b32.xlu0 %v416, 24
      %v1668 = vpop.permute.xlu0 %1667
      %1669 = vrot.lane.b32.xlu0 %v417, 24
      %v1670 = vpop.permute.xlu0 %1669
      %1671 = vrot.lane.b32.xlu0 %v418, 24
      %v1672 = vpop.permute.xlu0 %1671
      %1673 = vrot.lane.b32.xlu0 %v419, 24
      %v1674 = vpop.permute.xlu0 %1673
      %1675 = vrot.lane.b32.xlu0 %v420, 24
      %v1676 = vpop.permute.xlu0 %1675
      %1677 = vrot.lane.b32.xlu0 %v421, 24
      %v1678 = vpop.permute.xlu0 %1677
      %1679 = vrot.lane.b32.xlu0 %v422, 24
      %v1680 = vpop.permute.xlu0 %1679
      %1681 = vrot.lane.b32.xlu0 %v423, 24
      %v1682 = vpop.permute.xlu0 %1681
      %1683 = vrot.lane.b32.xlu0 %v424, 24
      %v1684 = vpop.permute.xlu0 %1683
      %1685 = vrot.lane.b32.xlu0 %v425, 24
      %v1686 = vpop.permute.xlu0 %1685
      %1687 = vrot.lane.b32.xlu0 %v426, 24
      %v1688 = vpop.permute.xlu0 %1687
      %1689 = vrot.lane.b32.xlu0 %v427, 24
      %v1690 = vpop.permute.xlu0 %1689
      %1691 = vrot.lane.b32.xlu0 %v428, 24
      %v1692 = vpop.permute.xlu0 %1691
      %1693 = vrot.lane.b32.xlu0 %v429, 24
      %v1694 = vpop.permute.xlu0 %1693
      %1695 = vrot.lane.b32.xlu0 %v430, 24
      %v1696 = vpop.permute.xlu0 %1695
      %1697 = vrot.lane.b32.xlu0 %v431, 24
      %v1698 = vpop.permute.xlu0 %1697
      %1699 = vrot.lane.b32.xlu0 %v432, 24
      %v1700 = vpop.permute.xlu0 %1699
      %1701 = vrot.lane.b32.xlu0 %v433, 24
      %v1702 = vpop.permute.xlu0 %1701
      %1703 = vrot.lane.b32.xlu0 %v434, 24
      %v1704 = vpop.permute.xlu0 %1703
      %1705 = vrot.lane.b32.xlu0 %v435, 24
      %v1706 = vpop.permute.xlu0 %1705
      %1707 = vrot.lane.b32.xlu0 %v436, 24
      %v1708 = vpop.permute.xlu0 %1707
      %1709 = vrot.lane.b32.xlu0 %v437, 24
      %v1710 = vpop.permute.xlu0 %1709
      %1711 = vrot.lane.b32.xlu0 %v1231, 24
      %v1712 = vpop.permute.xlu0 %1711
      %1713 = vrot.lane.b32.xlu0 %v1232, 24
      %v1714 = vpop.permute.xlu0 %1713
      %1715 = vrot.lane.b32.xlu0 %v1653, 24
      %v1716 = vpop.permute.xlu0 %1715
      %1717 = vrot.lane.b32.xlu0 %v1654, 24
      %v1718 = vpop.permute.xlu0 %1717
      %vm1751 = vcmask 224448
      %1752 = vst.msk [vmem:[#allocation3] sm:$0xf] %vm1751, %v1656
      %1753 = vst.msk [vmem:[#allocation3 + $0x4] sm:$0xf] %vm1751, %v1658
      %1754 = vst.msk [vmem:[#allocation3 + $0x8] sm:$0xf] %vm1751, %v1660
      %1755 = vst.msk [vmem:[#allocation3 + $0xc] sm:$0xf] %vm1751, %v1662
      %1756 = vst.msk [vmem:[#allocation3 + $0x10] sm:$0xf] %vm1751, %v1664
      %1757 = vst.msk [vmem:[#allocation3 + $0x14] sm:$0xf] %vm1751, %v1666
      %1758 = vst.msk [vmem:[#allocation3 + $0x18] sm:$0xf] %vm1751, %v1668
      %1759 = vst.msk [vmem:[#allocation3 + $0x1c] sm:$0xf] %vm1751, %v1670
      %1760 = vst.msk [vmem:[#allocation3 + $0x20] sm:$0xf] %vm1751, %v1672
      %1761 = vst.msk [vmem:[#allocation3 + $0x24] sm:$0xf] %vm1751, %v1674
      %1762 = vst.msk [vmem:[#allocation3 + $0x28] sm:$0xf] %vm1751, %v1676
      %1763 = vst.msk [vmem:[#allocation3 + $0x2c] sm:$0xf] %vm1751, %v1678
      %1764 = vst.msk [vmem:[#allocation3 + $0x30] sm:$0xf] %vm1751, %v1680
      %1765 = vst.msk [vmem:[#allocation3 + $0x34] sm:$0xf] %vm1751, %v1682
      %1766 = vst.msk [vmem:[#allocation3 + $0x38] sm:$0xf] %vm1751, %v1684
      %1767 = vst.msk [vmem:[#allocation3 + $0x3c] sm:$0xf] %vm1751, %v1686
      %1768 = vst.msk [vmem:[#allocation3 + $0x40] sm:$0xf] %vm1751, %v1688
      %1769 = vst.msk [vmem:[#allocation3 + $0x44] sm:$0xf] %vm1751, %v1690
      %1770 = vst.msk [vmem:[#allocation3 + $0x48] sm:$0xf] %vm1751, %v1692
      %1771 = vst.msk [vmem:[#allocation3 + $0x4c] sm:$0xf] %vm1751, %v1694
      %1772 = vst.msk [vmem:[#allocation3 + $0x50] sm:$0xf] %vm1751, %v1696
      %1773 = vst.msk [vmem:[#allocation3 + $0x54] sm:$0xf] %vm1751, %v1698
      %1774 = vst.msk [vmem:[#allocation3 + $0x58] sm:$0xf] %vm1751, %v1700
      %1775 = vst.msk [vmem:[#allocation3 + $0x5c] sm:$0xf] %vm1751, %v1702
      %1776 = vst.msk [vmem:[#allocation3 + $0x60] sm:$0xf] %vm1751, %v1704
      %1777 = vst.msk [vmem:[#allocation3 + $0x64] sm:$0xf] %vm1751, %v1706
      %1778 = vst.msk [vmem:[#allocation3 + $0x68] sm:$0xf] %vm1751, %v1708
      %1779 = vst.msk [vmem:[#allocation3 + $0x6c] sm:$0xf] %vm1751, %v1710
      %1780 = vst.msk [vmem:[#allocation3 + $0x70] sm:$0xf] %vm1751, %v1712
      %1781 = vst.msk [vmem:[#allocation3 + $0x74] sm:$0xf] %vm1751, %v1714
      %1782 = vst.msk [vmem:[#allocation3 + $0x78] sm:$0xf] %vm1751, %v1716
      %1783 = vst.msk [vmem:[#allocation3 + $0x7c] sm:$0xf] %vm1751, %v1718
      %v1787 = vrot.slane %v339, 1
      %v1788 = vrot.slane %v340, 1
      %v1789 = vsel %vm551, %v1787, %v1788
      %v1790 = vrot.slane %v341, 1
      %v1791 = vsel %vm551, %v1788, %v1790
      %v1794 = vpack.c.bf16 %v1791, %v1789
      %v1796 = vunpack.c.l.b16 %v1794
      %v1797 = vunpack.c.h.b16 %v1794
      %v1798 = vpack.c.b16 %v1796, %v1796
      %v1799 = vpack.c.b16 %v1797, %v1797
      %1800 = vrot.lane.b32.xlu0 %v732, 28
      %v1801 = vpop.permute.xlu0 %1800
      %1802 = vrot.lane.b32.xlu0 %v733, 28
      %v1803 = vpop.permute.xlu0 %1802
      %1804 = vrot.lane.b32.xlu0 %v734, 28
      %v1805 = vpop.permute.xlu0 %1804
      %1806 = vrot.lane.b32.xlu0 %v735, 28
      %v1807 = vpop.permute.xlu0 %1806
      %1808 = vrot.lane.b32.xlu0 %v736, 28
      %v1809 = vpop.permute.xlu0 %1808
      %1810 = vrot.lane.b32.xlu0 %v737, 28
      %v1811 = vpop.permute.xlu0 %1810
      %1812 = vrot.lane.b32.xlu0 %v738, 28
      %v1813 = vpop.permute.xlu0 %1812
      %1814 = vrot.lane.b32.xlu0 %v739, 28
      %v1815 = vpop.permute.xlu0 %1814
      %1816 = vrot.lane.b32.xlu0 %v740, 28
      %v1817 = vpop.permute.xlu0 %1816
      %1818 = vrot.lane.b32.xlu0 %v741, 28
      %v1819 = vpop.permute.xlu0 %1818
      %1820 = vrot.lane.b32.xlu0 %v742, 28
      %v1821 = vpop.permute.xlu0 %1820
      %1822 = vrot.lane.b32.xlu0 %v743, 28
      %v1823 = vpop.permute.xlu0 %1822
      %1824 = vrot.lane.b32.xlu0 %v744, 28
      %v1825 = vpop.permute.xlu0 %1824
      %1826 = vrot.lane.b32.xlu0 %v745, 28
      %v1827 = vpop.permute.xlu0 %1826
      %1828 = vrot.lane.b32.xlu0 %v746, 28
      %v1829 = vpop.permute.xlu0 %1828
      %1830 = vrot.lane.b32.xlu0 %v747, 28
      %v1831 = vpop.permute.xlu0 %1830
      %1832 = vrot.lane.b32.xlu0 %v748, 28
      %v1833 = vpop.permute.xlu0 %1832
      %1834 = vrot.lane.b32.xlu0 %v749, 28
      %v1835 = vpop.permute.xlu0 %1834
      %1836 = vrot.lane.b32.xlu0 %v750, 28
      %v1837 = vpop.permute.xlu0 %1836
      %1838 = vrot.lane.b32.xlu0 %v751, 28
      %v1839 = vpop.permute.xlu0 %1838
      %1840 = vrot.lane.b32.xlu0 %v752, 28
      %v1841 = vpop.permute.xlu0 %1840
      %1842 = vrot.lane.b32.xlu0 %v753, 28
      %v1843 = vpop.permute.xlu0 %1842
      %1844 = vrot.lane.b32.xlu0 %v754, 28
      %v1845 = vpop.permute.xlu0 %1844
      %1846 = vrot.lane.b32.xlu0 %v755, 28
      %v1847 = vpop.permute.xlu0 %1846
      %1848 = vrot.lane.b32.xlu0 %v756, 28
      %v1849 = vpop.permute.xlu0 %1848
      %1850 = vrot.lane.b32.xlu0 %v757, 28
      %v1851 = vpop.permute.xlu0 %1850
      %1852 = vrot.lane.b32.xlu0 %v758, 28
      %v1853 = vpop.permute.xlu0 %1852
      %1854 = vrot.lane.b32.xlu0 %v759, 28
      %v1855 = vpop.permute.xlu0 %1854
      %1856 = vrot.lane.b32.xlu0 %v1376, 28
      %v1857 = vpop.permute.xlu0 %1856
      %1858 = vrot.lane.b32.xlu0 %v1377, 28
      %v1859 = vpop.permute.xlu0 %1858
      %1860 = vrot.lane.b32.xlu0 %v1798, 28
      %v1861 = vpop.permute.xlu0 %1860
      %1862 = vrot.lane.b32.xlu0 %v1799, 28
      %v1863 = vpop.permute.xlu0 %1862
      %vm1896 = vcmask 257248
      %1897 = vst.msk [vmem:[#allocation3] sm:$0xf] %vm1896, %v1801
      %1898 = vst.msk [vmem:[#allocation3 + $0x4] sm:$0xf] %vm1896, %v1803
      %1899 = vst.msk [vmem:[#allocation3 + $0x8] sm:$0xf] %vm1896, %v1805
      %1900 = vst.msk [vmem:[#allocation3 + $0xc] sm:$0xf] %vm1896, %v1807
      %1901 = vst.msk [vmem:[#allocation3 + $0x10] sm:$0xf] %vm1896, %v1809
      %1902 = vst.msk [vmem:[#allocation3 + $0x14] sm:$0xf] %vm1896, %v1811
      %1903 = vst.msk [vmem:[#allocation3 + $0x18] sm:$0xf] %vm1896, %v1813
      %1904 = vst.msk [vmem:[#allocation3 + $0x1c] sm:$0xf] %vm1896, %v1815
      %1905 = vst.msk [vmem:[#allocation3 + $0x20] sm:$0xf] %vm1896, %v1817
      %1906 = vst.msk [vmem:[#allocation3 + $0x24] sm:$0xf] %vm1896, %v1819
      %1907 = vst.msk [vmem:[#allocation3 + $0x28] sm:$0xf] %vm1896, %v1821
      %1908 = vst.msk [vmem:[#allocation3 + $0x2c] sm:$0xf] %vm1896, %v1823
      %1909 = vst.msk [vmem:[#allocation3 + $0x30] sm:$0xf] %vm1896, %v1825
      %1910 = vst.msk [vmem:[#allocation3 + $0x34] sm:$0xf] %vm1896, %v1827
      %1911 = vst.msk [vmem:[#allocation3 + $0x38] sm:$0xf] %vm1896, %v1829
      %1912 = vst.msk [vmem:[#allocation3 + $0x3c] sm:$0xf] %vm1896, %v1831
      %1913 = vst.msk [vmem:[#allocation3 + $0x40] sm:$0xf] %vm1896, %v1833
      %1914 = vst.msk [vmem:[#allocation3 + $0x44] sm:$0xf] %vm1896, %v1835
      %1915 = vst.msk [vmem:[#allocation3 + $0x48] sm:$0xf] %vm1896, %v1837
      %1916 = vst.msk [vmem:[#allocation3 + $0x4c] sm:$0xf] %vm1896, %v1839
      %1917 = vst.msk [vmem:[#allocation3 + $0x50] sm:$0xf] %vm1896, %v1841
      %1918 = vst.msk [vmem:[#allocation3 + $0x54] sm:$0xf] %vm1896, %v1843
      %1919 = vst.msk [vmem:[#allocation3 + $0x58] sm:$0xf] %vm1896, %v1845
      %1920 = vst.msk [vmem:[#allocation3 + $0x5c] sm:$0xf] %vm1896, %v1847
      %1921 = vst.msk [vmem:[#allocation3 + $0x60] sm:$0xf] %vm1896, %v1849
      %1922 = vst.msk [vmem:[#allocation3 + $0x64] sm:$0xf] %vm1896, %v1851
      %1923 = vst.msk [vmem:[#allocation3 + $0x68] sm:$0xf] %vm1896, %v1853
      %1924 = vst.msk [vmem:[#allocation3 + $0x6c] sm:$0xf] %vm1896, %v1855
      %1925 = vst.msk [vmem:[#allocation3 + $0x70] sm:$0xf] %vm1896, %v1857
      %1926 = vst.msk [vmem:[#allocation3 + $0x74] sm:$0xf] %vm1896, %v1859
      %1927 = vst.msk [vmem:[#allocation3 + $0x78] sm:$0xf] %vm1896, %v1861
      %1928 = vst.msk [vmem:[#allocation3 + $0x7c] sm:$0xf] %vm1896, %v1863
      %v1929 = vrot.slane %v339, 2
      %v1930 = vrot.slane %v340, 2
      %v1931 = vsel %vm889, %v1929, %v1930
      %v1932 = vrot.slane %v341, 2
      %v1933 = vsel %vm889, %v1930, %v1932
      %v1936 = vpack.c.bf16 %v1933, %v1931
      %v1938 = vunpack.c.l.b16 %v1936
      %v1939 = vunpack.c.h.b16 %v1936
      %v1940 = vpack.c.b16 %v1938, %v1938
      %v1941 = vpack.c.b16 %v1939, %v1939
      %1942 = vrot.lane.b32.xlu0 %v1070, 32
      %v1943 = vpop.permute.xlu0 %1942
      %1944 = vrot.lane.b32.xlu0 %v1071, 32
      %v1945 = vpop.permute.xlu0 %1944
      %1946 = vrot.lane.b32.xlu0 %v1072, 32
      %v1947 = vpop.permute.xlu0 %1946
      %1948 = vrot.lane.b32.xlu0 %v1073, 32
      %v1949 = vpop.permute.xlu0 %1948
      %1950 = vrot.lane.b32.xlu0 %v1074, 32
      %v1951 = vpop.permute.xlu0 %1950
      %1952 = vrot.lane.b32.xlu0 %v1075, 32
      %v1953 = vpop.permute.xlu0 %1952
      %1954 = vrot.lane.b32.xlu0 %v1076, 32
      %v1955 = vpop.permute.xlu0 %1954
      %1956 = vrot.lane.b32.xlu0 %v1077, 32
      %v1957 = vpop.permute.xlu0 %1956
      %1958 = vrot.lane.b32.xlu0 %v1078, 32
      %v1959 = vpop.permute.xlu0 %1958
      %1960 = vrot.lane.b32.xlu0 %v1079, 32
      %v1961 = vpop.permute.xlu0 %1960
      %1962 = vrot.lane.b32.xlu0 %v1080, 32
      %v1963 = vpop.permute.xlu0 %1962
      %1964 = vrot.lane.b32.xlu0 %v1081, 32
      %v1965 = vpop.permute.xlu0 %1964
      %1966 = vrot.lane.b32.xlu0 %v1082, 32
      %v1967 = vpop.permute.xlu0 %1966
      %1968 = vrot.lane.b32.xlu0 %v1083, 32
      %v1969 = vpop.permute.xlu0 %1968
      %1970 = vrot.lane.b32.xlu0 %v1084, 32
      %v1971 = vpop.permute.xlu0 %1970
      %1972 = vrot.lane.b32.xlu0 %v1085, 32
      %v1973 = vpop.permute.xlu0 %1972
      %1974 = vrot.lane.b32.xlu0 %v1086, 32
      %v1975 = vpop.permute.xlu0 %1974
      %1976 = vrot.lane.b32.xlu0 %v1087, 32
      %v1977 = vpop.permute.xlu0 %1976
      %1978 = vrot.lane.b32.xlu0 %v1088, 32
      %v1979 = vpop.permute.xlu0 %1978
      %1980 = vrot.lane.b32.xlu0 %v1089, 32
      %v1981 = vpop.permute.xlu0 %1980
      %1982 = vrot.lane.b32.xlu0 %v1090, 32
      %v1983 = vpop.permute.xlu0 %1982
      %1984 = vrot.lane.b32.xlu0 %v1091, 32
      %v1985 = vpop.permute.xlu0 %1984
      %1986 = vrot.lane.b32.xlu0 %v1092, 32
      %v1987 = vpop.permute.xlu0 %1986
      %1988 = vrot.lane.b32.xlu0 %v1093, 32
      %v1989 = vpop.permute.xlu0 %1988
      %1990 = vrot.lane.b32.xlu0 %v1094, 32
      %v1991 = vpop.permute.xlu0 %1990
      %1992 = vrot.lane.b32.xlu0 %v1095, 32
      %v1993 = vpop.permute.xlu0 %1992
      %1994 = vrot.lane.b32.xlu0 %v1096, 32
      %v1995 = vpop.permute.xlu0 %1994
      %1996 = vrot.lane.b32.xlu0 %v1097, 32
      %v1997 = vpop.permute.xlu0 %1996
      %1998 = vrot.lane.b32.xlu0 %v1518, 32
      %v1999 = vpop.permute.xlu0 %1998
      %2000 = vrot.lane.b32.xlu0 %v1519, 32
      %v2001 = vpop.permute.xlu0 %2000
      %2002 = vrot.lane.b32.xlu0 %v1940, 32
      %v2003 = vpop.permute.xlu0 %2002
      %2004 = vrot.lane.b32.xlu0 %v1941, 32
      %v2005 = vpop.permute.xlu0 %2004
      %vm2038 = vcmask 290048
      %2039 = vst.msk [vmem:[#allocation3] sm:$0xf] %vm2038, %v1943
      %2040 = vst.msk [vmem:[#allocation3 + $0x4] sm:$0xf] %vm2038, %v1945
      %2041 = vst.msk [vmem:[#allocation3 + $0x8] sm:$0xf] %vm2038, %v1947
      %2042 = vst.msk [vmem:[#allocation3 + $0xc] sm:$0xf] %vm2038, %v1949
      %2043 = vst.msk [vmem:[#allocation3 + $0x10] sm:$0xf] %vm2038, %v1951
      %2044 = vst.msk [vmem:[#allocation3 + $0x14] sm:$0xf] %vm2038, %v1953
      %2045 = vst.msk [vmem:[#allocation3 + $0x18] sm:$0xf] %vm2038, %v1955
      %2046 = vst.msk [vmem:[#allocation3 + $0x1c] sm:$0xf] %vm2038, %v1957
      %2047 = vst.msk [vmem:[#allocation3 + $0x20] sm:$0xf] %vm2038, %v1959
      %2048 = vst.msk [vmem:[#allocation3 + $0x24] sm:$0xf] %vm2038, %v1961
      %2049 = vst.msk [vmem:[#allocation3 + $0x28] sm:$0xf] %vm2038, %v1963
      %2050 = vst.msk [vmem:[#allocation3 + $0x2c] sm:$0xf] %vm2038, %v1965
      %2051 = vst.msk [vmem:[#allocation3 + $0x30] sm:$0xf] %vm2038, %v1967
      %2052 = vst.msk [vmem:[#allocation3 + $0x34] sm:$0xf] %vm2038, %v1969
      %2053 = vst.msk [vmem:[#allocation3 + $0x38] sm:$0xf] %vm2038, %v1971
      %2054 = vst.msk [vmem:[#allocation3 + $0x3c] sm:$0xf] %vm2038, %v1973
      %2055 = vst.msk [vmem:[#allocation3 + $0x40] sm:$0xf] %vm2038, %v1975
      %2056 = vst.msk [vmem:[#allocation3 + $0x44] sm:$0xf] %vm2038, %v1977
      %2057 = vst.msk [vmem:[#allocation3 + $0x48] sm:$0xf] %vm2038, %v1979
      %2058 = vst.msk [vmem:[#allocation3 + $0x4c] sm:$0xf] %vm2038, %v1981
      %2059 = vst.msk [vmem:[#allocation3 + $0x50] sm:$0xf] %vm2038, %v1983
      %2060 = vst.msk [vmem:[#allocation3 + $0x54] sm:$0xf] %vm2038, %v1985
      %2061 = vst.msk [vmem:[#allocation3 + $0x58] sm:$0xf] %vm2038, %v1987
      %2062 = vst.msk [vmem:[#allocation3 + $0x5c] sm:$0xf] %vm2038, %v1989
      %2063 = vst.msk [vmem:[#allocation3 + $0x60] sm:$0xf] %vm2038, %v1991
      %2064 = vst.msk [vmem:[#allocation3 + $0x64] sm:$0xf] %vm2038, %v1993
      %2065 = vst.msk [vmem:[#allocation3 + $0x68] sm:$0xf] %vm2038, %v1995
      %2066 = vst.msk [vmem:[#allocation3 + $0x6c] sm:$0xf] %vm2038, %v1997
      %2067 = vst.msk [vmem:[#allocation3 + $0x70] sm:$0xf] %vm2038, %v1999
      %2068 = vst.msk [vmem:[#allocation3 + $0x74] sm:$0xf] %vm2038, %v2001
      %2069 = vst.msk [vmem:[#allocation3 + $0x78] sm:$0xf] %vm2038, %v2003
      %2070 = vst.msk [vmem:[#allocation3 + $0x7c] sm:$0xf] %vm2038, %v2005
      %v2071 = vld [vmem:[#allocation3] sm:$0xf]
      %v2072 = vld [vmem:[#allocation3 + $0x4] sm:$0xf]
      %v2073 = vld [vmem:[#allocation3 + $0x8] sm:$0xf]
      %v2074 = vld [vmem:[#allocation3 + $0xc] sm:$0xf]
      %v2075 = vld [vmem:[#allocation3 + $0x10] sm:$0xf]
      %v2076 = vld [vmem:[#allocation3 + $0x14] sm:$0xf]
      %v2077 = vld [vmem:[#allocation3 + $0x18] sm:$0xf]
      %v2078 = vld [vmem:[#allocation3 + $0x1c] sm:$0xf]
      %v2079 = vld [vmem:[#allocation3 + $0x20] sm:$0xf]
      %v2080 = vld [vmem:[#allocation3 + $0x24] sm:$0xf]
      %v2081 = vld [vmem:[#allocation3 + $0x28] sm:$0xf]
      %v2082 = vld [vmem:[#allocation3 + $0x2c] sm:$0xf]
      %v2083 = vld [vmem:[#allocation3 + $0x30] sm:$0xf]
      %v2084 = vld [vmem:[#allocation3 + $0x34] sm:$0xf]
      %v2085 = vld [vmem:[#allocation3 + $0x38] sm:$0xf]
      %v2086 = vld [vmem:[#allocation3 + $0x3c] sm:$0xf]
      %v2087 = vld [vmem:[#allocation3 + $0x40] sm:$0xf]
      %v2088 = vld [vmem:[#allocation3 + $0x44] sm:$0xf]
      %v2089 = vld [vmem:[#allocation3 + $0x48] sm:$0xf]
      %v2090 = vld [vmem:[#allocation3 + $0x4c] sm:$0xf]
      %v2091 = vld [vmem:[#allocation3 + $0x50] sm:$0xf]
      %v2092 = vld [vmem:[#allocation3 + $0x54] sm:$0xf]
      %v2093 = vld [vmem:[#allocation3 + $0x58] sm:$0xf]
      %v2094 = vld [vmem:[#allocation3 + $0x5c] sm:$0xf]
      %v2095 = vld [vmem:[#allocation3 + $0x60] sm:$0xf]
      %v2096 = vld [vmem:[#allocation3 + $0x64] sm:$0xf]
      %v2097 = vld [vmem:[#allocation3 + $0x68] sm:$0xf]
      %v2098 = vld [vmem:[#allocation3 + $0x6c] sm:$0xf]
      %v2099 = vld [vmem:[#allocation3 + $0x70] sm:$0xf]
      %v2100 = vld [vmem:[#allocation3 + $0x74] sm:$0xf]
      %v2101 = vld [vmem:[#allocation3 + $0x78] sm:$0xf]
      %v2102 = vld [vmem:[#allocation3 + $0x7c] sm:$0xf]
      %v2103 = vld [vmem:[%s1] sm:$0xf]
      %v2104 = vld [vmem:[%s1 + $0x4] sm:$0xf]
      %v2105 = vld [vmem:[%s1 + $0x8] sm:$0xf]
      %v2106 = vld [vmem:[%s1 + $0xc] sm:$0xf]
      %v2107 = vld [vmem:[%s1 + $0x10] sm:$0x3]
      %v2140 = vunpack.c.l.b16 %v2071
      %v2141 = vunpack.c.l.b16 %v2072
      %v2142 = vunpack.c.l.b16 %v2073
      %v2143 = vunpack.c.l.b16 %v2074
      %v2144 = vunpack.c.l.b16 %v2075
      %v2145 = vunpack.c.l.b16 %v2076
      %v2146 = vunpack.c.l.b16 %v2077
      %v2147 = vunpack.c.l.b16 %v2078
      %v2148 = vunpack.c.l.b16 %v2079
      %v2149 = vunpack.c.l.b16 %v2080
      %v2150 = vunpack.c.l.b16 %v2081
      %v2151 = vunpack.c.l.b16 %v2082
      %v2152 = vunpack.c.l.b16 %v2083
      %v2153 = vunpack.c.l.b16 %v2084
      %v2154 = vunpack.c.l.b16 %v2085
      %v2155 = vunpack.c.l.b16 %v2086
      %v2156 = vunpack.c.l.b16 %v2087
      %v2157 = vunpack.c.l.b16 %v2088
      %v2158 = vunpack.c.l.b16 %v2089
      %v2159 = vunpack.c.l.b16 %v2090
      %v2160 = vunpack.c.l.b16 %v2091
      %v2161 = vunpack.c.l.b16 %v2092
      %v2162 = vunpack.c.l.b16 %v2093
      %v2163 = vunpack.c.l.b16 %v2094
      %v2164 = vunpack.c.l.b16 %v2095
      %v2165 = vunpack.c.l.b16 %v2096
      %v2166 = vunpack.c.l.b16 %v2097
      %v2167 = vunpack.c.l.b16 %v2098
      %v2168 = vunpack.c.l.b16 %v2099
      %v2169 = vunpack.c.l.b16 %v2100
      %v2170 = vunpack.c.l.b16 %v2101
      %v2171 = vunpack.c.l.b16 %v2102
      %v2172 = vpack.c.b16 %v2141, %v2140
      %v2173 = vpack.c.b16 %v2143, %v2142
      %v2174 = vpack.c.b16 %v2145, %v2144
      %v2175 = vpack.c.b16 %v2147, %v2146
      %v2176 = vpack.c.b16 %v2149, %v2148
      %v2177 = vpack.c.b16 %v2151, %v2150
      %v2178 = vpack.c.b16 %v2153, %v2152
      %v2179 = vpack.c.b16 %v2155, %v2154
      %v2180 = vpack.c.b16 %v2157, %v2156
      %v2181 = vpack.c.b16 %v2159, %v2158
      %v2182 = vpack.c.b16 %v2161, %v2160
      %v2183 = vpack.c.b16 %v2163, %v2162
      %v2184 = vpack.c.b16 %v2165, %v2164
      %v2185 = vpack.c.b16 %v2167, %v2166
      %v2186 = vpack.c.b16 %v2169, %v2168
      %v2187 = vpack.c.b16 %v2171, %v2170
      %v2193 = vunpack.c.l.b16 %v2103
      %v2194 = vunpack.c.l.b16 %v2104
      %v2195 = vunpack.c.l.b16 %v2105
      %v2196 = vunpack.c.l.b16 %v2106
      %v2197 = vunpack.c.l.b16 %v2107
      %v2198 = vpack.c.b16 %v2194, %v2193
      %v2199 = vpack.c.b16 %v2196, %v2195
      %v2200 = vpack.c.b16 %v2197, %v2197
      %vm2203 = vcmask 293888
      %v2205 = vsel %vm2203, %v2172, 0
      %v2208 = vsel %vm2203, %v2173, 0
      %v2211 = vsel %vm2203, %v2174, 0
      %v2214 = vsel %vm2203, %v2175, 0
      %v2217 = vsel %vm2203, %v2176, 0
      %v2220 = vsel %vm2203, %v2177, 0
      %v2223 = vsel %vm2203, %v2178, 0
      %v2226 = vsel %vm2203, %v2179, 0
      %v2229 = vsel %vm2203, %v2180, 0
      %v2232 = vsel %vm2203, %v2181, 0
      %v2235 = vsel %vm2203, %v2182, 0
      %v2238 = vsel %vm2203, %v2183, 0
      %v2241 = vsel %vm2203, %v2184, 0
      %v2244 = vsel %vm2203, %v2185, 0
      %v2247 = vsel %vm2203, %v2186, 0
      %v2250 = vsel %vm2203, %v2187, 0
      %vm2252 = vcmask 1041408
      %v2254 = vsel %vm2252, %v2200, 0
      %2256 = vmatprep.subr.bf16.mxu0 0
      %2257 = vmatpush1.bf16.msra.mxu0 0
      %2258 = vmatprep.subr.bf16.mxu0 0
      %2259 = vmatpush1.bf16.msra.mxu0 0
      %2260 = vmatprep.subr.bf16.mxu0 0
      %2261 = vmatpush1.bf16.msra.mxu0 0
      %2262 = vmatprep.subr.bf16.mxu0 0
      %2263 = vmatpush1.bf16.msra.mxu0 0
      %2264 = vmatprep.subr.bf16.mxu0 0
      %2265 = vmatpush1.bf16.msra.mxu0 0
      %2266 = vmatprep.subr.bf16.mxu0 0
      %2267 = vmatpush1.bf16.msra.mxu0 %v2254
      %2268 = vmatprep.subr.bf16.mxu0 0
      %2269 = vmatpush1.bf16.msra.mxu0 %v2199
      %2270 = vmatprep.subr.bf16.mxu0 0
      %2271 = vmatpush1.bf16.msra.mxu0 %v2198
      %2272 = vmatprep.subr.bf16.mxu0 0
      %2273 = vmatpush2.bf16.msra.mxu0 0
      %2274 = vmatprep.subr.bf16.mxu0 0
      %2275 = vmatpush2.bf16.msra.mxu0 0
      %2276 = vmatprep.subr.bf16.mxu0 0
      %2277 = vmatpush2.bf16.msra.mxu0 0
      %2278 = vmatprep.subr.bf16.mxu0 0
      %2279 = vmatpush2.bf16.msra.mxu0 0
      %2280 = vmatprep.subr.bf16.mxu0 0
      %2281 = vmatpush2.bf16.msra.mxu0 0
      %2282 = vmatprep.subr.bf16.mxu0 0
      %2283 = vmatpush2.bf16.msra.mxu0 0
      %2284 = vmatprep.subr.bf16.mxu0 0
      %2285 = vmatpush2.bf16.msra.mxu0 0
      %2286 = vmatprep.subr.bf16.mxu0 0
      %2287 = vmatpush2.bf16.msra.mxu0 0
      %2288 = vmatprep.mubr.bf16.mxu0 0
      %2289 = vmatmul.mubr.bf16.gmra.mxu0 %v2205
      %v2290 = vpop.f32.mrf.mxu0
      %v2291 = vadd.f32 0.0, %v2290
      %v2292 = vpop.f32.mrf.mxu0
      %v2293 = vpop.f32.mrf.mxu0
      %v2294 = vadd.f32 0.0, %v2293
      %v2295 = vpop.f32.mrf.mxu0
      %2296 = vmatprep.mubr.bf16.mxu0 0
      %2297 = vmatmul.mubr.bf16.gmra.mxu0 %v2208
      %v2298 = vpop.f32.mrf.mxu0
      %v2299 = vadd.f32 0.0, %v2298
      %v2300 = vpop.f32.mrf.mxu0
      %v2301 = vpop.f32.mrf.mxu0
      %v2302 = vadd.f32 0.0, %v2301
      %v2303 = vpop.f32.mrf.mxu0
      %2304 = vmatprep.mubr.bf16.mxu0 0
      %2305 = vmatmul.mubr.bf16.gmra.mxu0 %v2211
      %v2306 = vpop.f32.mrf.mxu0
      %v2307 = vadd.f32 0.0, %v2306
      %v2308 = vpop.f32.mrf.mxu0
      %v2309 = vpop.f32.mrf.mxu0
      %v2310 = vadd.f32 0.0, %v2309
      %v2311 = vpop.f32.mrf.mxu0
      %2312 = vmatprep.mubr.bf16.mxu0 0
      %2313 = vmatmul.mubr.bf16.gmra.mxu0 %v2214
      %v2314 = vpop.f32.mrf.mxu0
      %v2315 = vadd.f32 0.0, %v2314
      %v2316 = vpop.f32.mrf.mxu0
      %v2317 = vpop.f32.mrf.mxu0
      %v2318 = vadd.f32 0.0, %v2317
      %v2319 = vpop.f32.mrf.mxu0
      %2320 = vmatprep.mubr.bf16.mxu0 0
      %2321 = vmatmul.mubr.bf16.gmra.mxu0 %v2217
      %v2322 = vpop.f32.mrf.mxu0
      %v2323 = vadd.f32 0.0, %v2322
      %v2324 = vpop.f32.mrf.mxu0
      %v2325 = vpop.f32.mrf.mxu0
      %v2326 = vadd.f32 0.0, %v2325
      %v2327 = vpop.f32.mrf.mxu0
      %2328 = vmatprep.mubr.bf16.mxu0 0
      %2329 = vmatmul.mubr.bf16.gmra.mxu0 %v2220
      %v2330 = vpop.f32.mrf.mxu0
      %v2331 = vadd.f32 0.0, %v2330
      %v2332 = vpop.f32.mrf.mxu0
      %v2333 = vpop.f32.mrf.mxu0
      %v2334 = vadd.f32 0.0, %v2333
      %v2335 = vpop.f32.mrf.mxu0
      %2336 = vmatprep.mubr.bf16.mxu0 0
      %2337 = vmatmul.mubr.bf16.gmra.mxu0 %v2223
      %v2338 = vpop.f32.mrf.mxu0
      %v2339 = vadd.f32 0.0, %v2338
      %v2340 = vpop.f32.mrf.mxu0
      %v2341 = vpop.f32.mrf.mxu0
      %v2342 = vadd.f32 0.0, %v2341
      %v2343 = vpop.f32.mrf.mxu0
      %2344 = vmatprep.mubr.bf16.mxu0 0
      %2345 = vmatmul.mubr.bf16.gmra.mxu0 %v2226
      %v2346 = vpop.f32.mrf.mxu0
      %v2347 = vadd.f32 0.0, %v2346
      %v2348 = vpop.f32.mrf.mxu0
      %v2349 = vpop.f32.mrf.mxu0
      %v2350 = vadd.f32 0.0, %v2349
      %v2351 = vpop.f32.mrf.mxu0
      %2352 = vmatprep.mubr.bf16.mxu0 0
      %2353 = vmatmul.mubr.bf16.gmra.mxu0 %v2229
      %v2354 = vpop.f32.mrf.mxu0
      %v2355 = vadd.f32 0.0, %v2354
      %v2356 = vpop.f32.mrf.mxu0
      %v2357 = vpop.f32.mrf.mxu0
      %v2358 = vadd.f32 0.0, %v2357
      %v2359 = vpop.f32.mrf.mxu0
      %2360 = vmatprep.mubr.bf16.mxu0 0
      %2361 = vmatmul.mubr.bf16.gmra.mxu0 %v2232
      %v2362 = vpop.f32.mrf.mxu0
      %v2363 = vadd.f32 0.0, %v2362
      %v2364 = vpop.f32.mrf.mxu0
      %v2365 = vpop.f32.mrf.mxu0
      %v2366 = vadd.f32 0.0, %v2365
      %v2367 = vpop.f32.mrf.mxu0
      %2368 = vmatprep.mubr.bf16.mxu0 0
      %2369 = vmatmul.mubr.bf16.gmra.mxu0 %v2235
      %v2370 = vpop.f32.mrf.mxu0
      %v2371 = vadd.f32 0.0, %v2370
      %v2372 = vpop.f32.mrf.mxu0
      %v2373 = vpop.f32.mrf.mxu0
      %v2374 = vadd.f32 0.0, %v2373
      %v2375 = vpop.f32.mrf.mxu0
      %2376 = vmatprep.mubr.bf16.mxu0 0
      %2377 = vmatmul.mubr.bf16.gmra.mxu0 %v2238
      %v2378 = vpop.f32.mrf.mxu0
      %v2379 = vadd.f32 0.0, %v2378
      %v2380 = vpop.f32.mrf.mxu0
      %v2381 = vpop.f32.mrf.mxu0
      %v2382 = vadd.f32 0.0, %v2381
      %v2383 = vpop.f32.mrf.mxu0
      %2384 = vmatprep.mubr.bf16.mxu0 0
      %2385 = vmatmul.mubr.bf16.gmra.mxu0 %v2241
      %v2386 = vpop.f32.mrf.mxu0
      %v2387 = vadd.f32 0.0, %v2386
      %v2388 = vpop.f32.mrf.mxu0
      %v2389 = vpop.f32.mrf.mxu0
      %v2390 = vadd.f32 0.0, %v2389
      %v2391 = vpop.f32.mrf.mxu0
      %2392 = vmatprep.mubr.bf16.mxu0 0
      %2393 = vmatmul.mubr.bf16.gmra.mxu0 %v2244
      %v2394 = vpop.f32.mrf.mxu0
      %v2395 = vadd.f32 0.0, %v2394
      %v2396 = vpop.f32.mrf.mxu0
      %v2397 = vpop.f32.mrf.mxu0
      %v2398 = vadd.f32 0.0, %v2397
      %v2399 = vpop.f32.mrf.mxu0
      %2400 = vmatprep.mubr.bf16.mxu0 0
      %2401 = vmatmul.mubr.bf16.gmra.mxu0 %v2247
      %v2402 = vpop.f32.mrf.mxu0
      %v2403 = vadd.f32 0.0, %v2402
      %v2404 = vpop.f32.mrf.mxu0
      %v2405 = vpop.f32.mrf.mxu0
      %v2406 = vadd.f32 0.0, %v2405
      %v2407 = vpop.f32.mrf.mxu0
      %2408 = vmatprep.mubr.bf16.mxu0 0
      %2409 = vmatmul.mubr.bf16.gmra.mxu0 %v2250
      %v2410 = vpop.f32.mrf.mxu0
      %v2411 = vadd.f32 0.0, %v2410
      %v2412 = vpop.f32.mrf.mxu0
      %v2413 = vpop.f32.mrf.mxu0
      %v2414 = vadd.f32 0.0, %v2413
      %v2415 = vpop.f32.mrf.mxu0
      %2416 = vdwg.mxu0
      %2417 = vst [vmem:[%s168] sm:$0xff] %v2291
      %2418 = vst [vmem:[%s168 + $0x8] sm:$0xff] %v2294
      %2419 = vst [vmem:[%s168 + $0x10] sm:$0xff] %v2299
      %2420 = vst [vmem:[%s168 + $0x18] sm:$0xff] %v2302
      %2421 = vst [vmem:[%s168 + $0x20] sm:$0xff] %v2307
      %2422 = vst [vmem:[%s168 + $0x28] sm:$0xff] %v2310
      %2423 = vst [vmem:[%s168 + $0x30] sm:$0xff] %v2315
      %2424 = vst [vmem:[%s168 + $0x38] sm:$0xff] %v2318
      %2425 = vst [vmem:[%s168 + $0x40] sm:$0xff] %v2323
      %2426 = vst [vmem:[%s168 + $0x48] sm:$0xff] %v2326
      %2427 = vst [vmem:[%s168 + $0x50] sm:$0xff] %v2331
      %2428 = vst [vmem:[%s168 + $0x58] sm:$0xff] %v2334
      %2429 = vst [vmem:[%s168 + $0x60] sm:$0xff] %v2339
      %2430 = vst [vmem:[%s168 + $0x68] sm:$0xff] %v2342
      %2431 = vst [vmem:[%s168 + $0x70] sm:$0xff] %v2347
      %2432 = vst [vmem:[%s168 + $0x78] sm:$0xff] %v2350
      %2433 = vst [vmem:[%s168 + $0x80] sm:$0xff] %v2355
      %2434 = vst [vmem:[%s168 + $0x88] sm:$0xff] %v2358
      %2435 = vst [vmem:[%s168 + $0x90] sm:$0xff] %v2363
      %2436 = vst [vmem:[%s168 + $0x98] sm:$0xff] %v2366
      %2437 = vst [vmem:[%s168 + $0xa0] sm:$0xff] %v2371
      %2438 = vst [vmem:[%s168 + $0xa8] sm:$0xff] %v2374
      %2439 = vst [vmem:[%s168 + $0xb0] sm:$0xff] %v2379
      %2440 = vst [vmem:[%s168 + $0xb8] sm:$0xff] %v2382
      %2441 = vst [vmem:[%s168 + $0xc0] sm:$0xff] %v2387
      %2442 = vst [vmem:[%s168 + $0xc8] sm:$0xff] %v2390
      %2443 = vst [vmem:[%s168 + $0xd0] sm:$0xff] %v2395
      %2444 = vst [vmem:[%s168 + $0xd8] sm:$0xff] %v2398
      %2445 = vst [vmem:[%s168 + $0xe0] sm:$0xff] %v2403
      %2446 = vst [vmem:[%s168 + $0xe8] sm:$0xff] %v2406
      %2447 = vst [vmem:[%s168 + $0xf0] sm:$0xff] %v2411
      %2448 = vst [vmem:[%s168 + $0xf8] sm:$0xff] %v2414
      %v2449 = vadd.f32 %v2291, %v2294
      %v2450 = vadd.f32 %v2449, %v2299
      %v2451 = vadd.f32 %v2450, %v2302
      %v2452 = vadd.f32 %v2451, %v2307
      %v2453 = vadd.f32 %v2452, %v2310
      %v2454 = vadd.f32 %v2453, %v2315
      %v2455 = vadd.f32 %v2454, %v2318
      %v2456 = vadd.f32 %v2455, %v2323
      %v2457 = vadd.f32 %v2456, %v2326
      %v2458 = vadd.f32 %v2457, %v2331
      %v2459 = vadd.f32 %v2458, %v2334
      %v2460 = vadd.f32 %v2459, %v2339
      %v2461 = vadd.f32 %v2460, %v2342
      %v2462 = vadd.f32 %v2461, %v2347
      %v2463 = vadd.f32 %v2462, %v2350
      %v2464 = vadd.f32 %v2463, %v2355
      %v2465 = vadd.f32 %v2464, %v2358
      %v2466 = vadd.f32 %v2465, %v2363
      %v2467 = vadd.f32 %v2466, %v2366
      %v2468 = vadd.f32 %v2467, %v2371
      %v2469 = vadd.f32 %v2468, %v2374
      %v2470 = vadd.f32 %v2469, %v2379
      %v2471 = vadd.f32 %v2470, %v2382
      %v2472 = vadd.f32 %v2471, %v2387
      %v2473 = vadd.f32 %v2472, %v2390
      %v2474 = vadd.f32 %v2473, %v2395
      %v2475 = vadd.f32 %v2474, %v2398
      %v2476 = vadd.f32 %v2475, %v2403
      %v2477 = vadd.f32 %v2476, %v2406
      %v2478 = vadd.f32 %v2477, %v2411
      %v2479 = vadd.f32 %v2478, %v2414
      %v2480 = vrot.slane %v2479, 4
      %v2481 = vadd.f32 %v2479, %v2480
      %v2482 = vrot.slane %v2481, 2
      %v2483 = vadd.f32 %v2481, %v2482
      %v2484 = vrot.slane %v2483, 1
      %v2485 = vadd.f32 %v2483, %v2484
      %v2486 = vmul.f32 %v2291, %v2291
      %v2487 = vmul.f32 %v2294, %v2294
      %v2488 = vmul.f32 %v2299, %v2299
      %v2489 = vmul.f32 %v2302, %v2302
      %v2490 = vmul.f32 %v2307, %v2307
      %v2491 = vmul.f32 %v2310, %v2310
      %v2492 = vmul.f32 %v2315, %v2315
      %v2493 = vmul.f32 %v2318, %v2318
      %v2494 = vmul.f32 %v2323, %v2323
      %v2495 = vmul.f32 %v2326, %v2326
      %v2496 = vmul.f32 %v2331, %v2331
      %v2497 = vmul.f32 %v2334, %v2334
      %v2498 = vmul.f32 %v2339, %v2339
      %v2499 = vmul.f32 %v2342, %v2342
      %v2500 = vmul.f32 %v2347, %v2347
      %v2501 = vmul.f32 %v2350, %v2350
      %v2502 = vmul.f32 %v2355, %v2355
      %v2503 = vmul.f32 %v2358, %v2358
      %v2504 = vmul.f32 %v2363, %v2363
      %v2505 = vmul.f32 %v2366, %v2366
      %v2506 = vmul.f32 %v2371, %v2371
      %v2507 = vmul.f32 %v2374, %v2374
      %v2508 = vmul.f32 %v2379, %v2379
      %v2509 = vmul.f32 %v2382, %v2382
      %v2510 = vmul.f32 %v2387, %v2387
      %v2511 = vmul.f32 %v2390, %v2390
      %v2512 = vmul.f32 %v2395, %v2395
      %v2513 = vmul.f32 %v2398, %v2398
      %v2514 = vmul.f32 %v2403, %v2403
      %v2515 = vmul.f32 %v2406, %v2406
      %v2516 = vmul.f32 %v2411, %v2411
      %v2517 = vmul.f32 %v2414, %v2414
      %v2518 = vadd.f32 %v2486, %v2487
      %v2519 = vadd.f32 %v2518, %v2488
      %v2520 = vadd.f32 %v2519, %v2489
      %v2521 = vadd.f32 %v2520, %v2490
      %v2522 = vadd.f32 %v2521, %v2491
      %v2523 = vadd.f32 %v2522, %v2492
      %v2524 = vadd.f32 %v2523, %v2493
      %v2525 = vadd.f32 %v2524, %v2494
      %v2526 = vadd.f32 %v2525, %v2495
      %v2527 = vadd.f32 %v2526, %v2496
      %v2528 = vadd.f32 %v2527, %v2497
      %v2529 = vadd.f32 %v2528, %v2498
      %v2530 = vadd.f32 %v2529, %v2499
      %v2531 = vadd.f32 %v2530, %v2500
      %v2532 = vadd.f32 %v2531, %v2501
      %v2533 = vadd.f32 %v2532, %v2502
      %v2534 = vadd.f32 %v2533, %v2503
      %v2535 = vadd.f32 %v2534, %v2504
      %v2536 = vadd.f32 %v2535, %v2505
      %v2537 = vadd.f32 %v2536, %v2506
      %v2538 = vadd.f32 %v2537, %v2507
      %v2539 = vadd.f32 %v2538, %v2508
      %v2540 = vadd.f32 %v2539, %v2509
      %v2541 = vadd.f32 %v2540, %v2510
      %v2542 = vadd.f32 %v2541, %v2511
      %v2543 = vadd.f32 %v2542, %v2512
      %v2544 = vadd.f32 %v2543, %v2513
      %v2545 = vadd.f32 %v2544, %v2514
      %v2546 = vadd.f32 %v2545, %v2515
      %v2547 = vadd.f32 %v2546, %v2516
      %v2548 = vadd.f32 %v2547, %v2517
      %v2549 = vrot.slane %v2548, 4
      %v2550 = vadd.f32 %v2548, %v2549
      %v2551 = vrot.slane %v2550, 2
      %v2552 = vadd.f32 %v2550, %v2551
      %v2553 = vrot.slane %v2552, 1
      %v2554 = vadd.f32 %v2552, %v2553
      %v2555 = vld [vmem:[%s3] sm:$0x1]
      %v2556 = vadd.f32 %v2555, %v2485
      %2557 = vst [vmem:[%s3] sm:$0x1] %v2556
      %v2558 = vld [vmem:[%s3 + $0x1] sm:$0x1]
      %v2559 = vadd.f32 %v2558, %v2554
      %2560 = vst [vmem:[%s3 + $0x1] sm:$0x1] %v2559
      %s2561 = smul.u32 32, %s15
      %p2562 = scmp.lt.s32.totalorder %s2561, 63
      %s2563 = scalar_select %p2562, %s2561, 63
      %s2564 = smul.addr %s2563, 8
      %s2565 = scalar_lea.vmem %s2, %s2564
      // Predicated region
      $region33: #{single_conv_forward.2} parent=27 // pred_check
        %p2566 = pneg %p80
      $region34: #{single_conv_forward.2} parent=27 // pred_check_branch
        %2568 = sbr.rel (%p2566) target = $region36
      $region35: #{single_conv_forward.2} parent=27 // pred_region
        %s2569 = smul.u32 32, %s15
      $region36: #{single_conv_forward.2} parent=27 // pred_fallthru
        _
      // Predicated region
      $region37: #{single_conv_forward.2} parent=27 // pred_check
        %p2570 = pneg %p101
      $region38: #{single_conv_forward.2} parent=27 // pred_check_branch
        %2572 = sbr.rel (%p2570) target = $region40
      $region39: #{single_conv_forward.2} parent=27 // pred_region
        _
      $region40: #{single_conv_forward.2} parent=27 // pred_fallthru
        _
      // Predicated region
      $region41: #{single_conv_forward.2} parent=27 // pred_check
        %p2573 = pneg %p101
      $region42: #{single_conv_forward.2} parent=27 // pred_check_branch
        %2575 = sbr.rel (%p2573) target = $region44
      $region43: #{single_conv_forward.2} parent=27 // pred_region
        _
      $region44: #{single_conv_forward.2} parent=27 // pred_fallthru
        _
    $region28: #{single_conv_forward.2} parent=5 // pred_fallthru
      _
    %p2576 = scmp.le.s32.totalorder 2, %s10
    // Predicated region
    $region45: #{single_conv_forward.2} parent=5 // pred_check
      %p2577 = pneg %p2576
    $region46: #{single_conv_forward.2} parent=5 // pred_check_branch
      %2579 = sbr.rel (%p2577) target = $region48
    $region47: #{single_conv_forward.2} parent=5 // pred_region
      %s2580 = ssub.s32 %s10, 2
      // Predicated region
      $region49: #{single_conv_forward.2} parent=47 // pred_check
        %p2581 = pneg %p86
      $region50: #{single_conv_forward.2} parent=47 // pred_check_branch
        %2583 = sbr.rel (%p2581) target = $region52
      $region51: #{single_conv_forward.2} parent=47 // pred_region
        %s2584 = smul.u32 32, %s16
        %p2585 = scmp.lt.s32.totalorder %s2584, 63
        %s2586 = scalar_select %p2585, %s2584, 63
        %s2587 = smul.addr %s2586, 8
        %s2588 = scalar_lea.vmem %s2, %s2587
      $region52: #{single_conv_forward.2} parent=47 // pred_fallthru
        _
    $region48: #{single_conv_forward.2} parent=5 // pred_fallthru
      _
  $region6: #{single_conv_forward.2} parent=0 // loop_footer
    %s14 = sadd.s32 1, %s10
  $region7: #{single_conv_forward.2} parent=0 // loop_footer_branch
    %9 = sbr.rel target = $region3
  $region8: #{single_conv_forward.2} parent=0 // loop_exit
    _

</llo_original>
